<compile_context>
chip_gen: v7x
topology: tpu7x:2x2x1
jax: 0.10.0
libtpu: 0.0.40
codegen_flags: <defaults>
</compile_context>

<pallas_src>
import functools

import jax
import jax.numpy as jnp
import numpy as np
from jax.experimental import pallas as pl
from jax.experimental.pallas import tpu as pltpu


# ----------------------------- Pallas kernel ------------------------------- #

def seq2seq_kernel(x_ref,                             # (T_enc, B, 1) raw input
                   ew0row_ref,                        # (1, 4H) enc layer-0 W_ih column (input_size==1)
                   ewih_hi_ref, ewhh_ref, eb_ref,     # enc: (L-1,H,4H), (L,H,4H), (L,1,4H)
                   dw0fold_ref,                       # dec layer-0 folded input proj: (H, 4H)
                   dwih_hi_ref, dwhh_ref, db_ref,     # dec: (L-1,H,4H), (L,H,4H), (L,1,4H)
                   db0_first_ref,                     # (1, 4H) original dec layer-0 bias (t==0 only)
                   lw_ref, lb_ref,                    # linear: (1,H), (1,1) (output write only)
                   out_ref,                           # (T_dec, B)
                   *, num_layers, seq_len_dec):
    L = num_layers
    T_enc, B, _ = x_ref.shape
    G = ewhh_ref.shape[-1]
    H = G // 4

    dotf = functools.partial(jnp.dot, preferred_element_type=jnp.float32)

    def cell_update(gates, c_prev):
        # Full-width activations: 2 EUP pushes per cell instead of 4 narrow
        # ones ((B,4H) is still a single vreg at B=2, H=32); gate slices after.
        sig = jax.nn.sigmoid(gates)
        th = jnp.tanh(gates)
        i = sig[:, 0 * H:1 * H]
        f = sig[:, 1 * H:2 * H]
        g = th[:, 2 * H:3 * H]
        o = sig[:, 3 * H:4 * H]
        c_new = f * c_prev + i * g
        h_new = o * jnp.tanh(c_new)
        return h_new, c_new

    # Hoist all per-layer weight/bias reads out of the unrolled loops.
    ewhh = [ewhh_ref[l] for l in range(L)]
    eb = [eb_ref[l] for l in range(L)]
    ewih_hi = [ewih_hi_ref[l] for l in range(L - 1)]
    dwhh = [dwhh_ref[l] for l in range(L)]
    db = [db_ref[l] for l in range(L)]
    dwih_hi = [dwih_hi_ref[l] for l in range(L - 1)]
    dw0fold = dw0fold_ref[...]
    db0_first = db0_first_ref[...]
    lw = lw_ref[...]                                   # (1, H)
    lb = lb_ref[...]                                   # (1, 1)

    h = [jnp.zeros((B, H), jnp.float32) for _ in range(L)]
    c = [jnp.zeros((B, H), jnp.float32) for _ in range(L)]

    # Encoder layer-0 input gates: rank-1 projection (input_size == 1) with the
    # layer-0 bias folded in. One broadcast mul+add over the full (T_enc,B,4H)
    # block, entirely off the recurrence chain (done in-kernel: single dispatch).
    xgates = x_ref[...] * ew0row_ref[...] + eb[0]      # (T_enc, B, 4H)

    # ----------------- encoder: wavefront (diagonal) schedule ------------- #
    # Macro-step s computes cell (layer l, time t = s - l) for all valid l.
    # Cells within a macro-step only depend on macro-step s-1, so their
    # MXU/EUP latencies overlap: serial chain = T_enc + L - 1 cells, not T_enc*L.
    # Layers are visited top-down so h[l-1] still holds time t when layer l reads it.
    for s in range(T_enc + L - 1):
        for l in range(min(L - 1, s), -1, -1):
            t = s - l
            if t >= T_enc:
                continue
            if l == 0:
                # xgates already contains input proj + bias -> one trailing add.
                gates = dotf(h[0], ewhh[0]) + xgates[t]
            else:
                # Bias pre-summed with the dot whose operand is a previous-step
                # value, so only one VPU add trails the critical matmul.
                gates = dotf(h[l - 1], ewih_hi[l - 1]) + (dotf(h[l], ewhh[l]) + eb[l])
            h[l], c[l] = cell_update(gates, c[l])

    # -------------- decoder: strictly serial (y-feedback folded) ---------- #
    # The feedback Linear is folded into the layer-0 input projection:
    #   y_{t-1} * W_ih_row0 == h_top_{t-1} @ dw0fold  (+ lb*W_ih_row0, in db[0])
    # so y never sits on the recurrence path. No wavefront is possible here:
    # layer 0 @ t depends on layer L-1 @ t-1 through dw0fold.
    h_top_prev = h[L - 1]
    h_tops = []
    for t in range(seq_len_dec):
        if t == 0:
            # First decoder input is literally zero -> recurrent term + raw bias.
            g0 = dotf(h[0], dwhh[0]) + db0_first
        else:
            g0 = dotf(h_top_prev, dw0fold) + (dotf(h[0], dwhh[0]) + db[0])
        h[0], c[0] = cell_update(g0, c[0])
        for l in range(1, L):
            gl = dotf(h[l - 1], dwih_hi[l - 1]) + (dotf(h[l], dwhh[l]) + db[l])
            h[l], c[l] = cell_update(gl, c[l])
        h_top_prev = h[L - 1]
        h_tops.append(h_top_prev)

    # Output Linear batched once after the recurrence: one lane-reduce + bias
    # instead of seq_len_dec per-step reduces + iota selects; one dense store,
    # already in the module's (T_dec, B) layout.
    h_stack = jnp.stack(h_tops, axis=0)                # (T_dec, B, H)
    out_ref[...] = jnp.sum(h_stack * lw, axis=-1) + lb  # (T_dec, B)


# ------------------------------ wrapper ------------------------------------ #

def _pack_params(enc_layers, dec_layers, lin_w, lin_b, hidden_size):
    """Host-side (numpy) weight packing, done once per parameter set."""
    H = hidden_size
    L = len(enc_layers)

    def stack_T(mats):
        return np.stack([np.asarray(m, np.float32).T for m in mats])

    # ------------------- encoder weight packing ------------------- #
    ew0row = np.asarray(enc_layers[0]["w_ih"], np.float32)[:, 0][None, :]      # (1, 4H)
    ewhh = stack_T([p["w_hh"] for p in enc_layers])                            # (L, H, 4H)
    eb = np.stack([(np.asarray(p["b_ih"], np.float32)
                    + np.asarray(p["b_hh"], np.float32))[None, :]
                   for p in enc_layers])                                       # (L, 1, 4H)
    ewih_hi = (stack_T([p["w_ih"] for p in enc_layers[1:]]) if L > 1
               else np.zeros((1, H, 4 * H), np.float32))                       # dummy if L==1

    # ----------- decoder weight packing (+ Linear feedback fold) ----------- #
    d0row = np.asarray(dec_layers[0]["w_ih"], np.float32)[:, 0]                # (4H,)
    dwhh = stack_T([p["w_hh"] for p in dec_layers])                            # (L, H, 4H)
    db_raw = [np.asarray(p["b_ih"], np.float32) + np.asarray(p["b_hh"], np.float32)
              for p in dec_layers]
    lw_np = np.asarray(lin_w, np.float32).reshape(1, H)
    lb_np = np.asarray(lin_b, np.float32).reshape(1, 1)

    dw0fold = lw_np.T @ d0row[None, :]                                         # (H, 4H)
    db = np.stack([b[None, :] for b in db_raw])                                # (L, 1, 4H)
    db0_first = db_raw[0][None, :].copy()                                      # (1, 4H)
    db[0, 0] = db_raw[0] + lb_np[0, 0] * d0row                                 # + fold bias
    dwih_hi = (stack_T([p["w_ih"] for p in dec_layers[1:]]) if L > 1
               else np.zeros((1, H, 4 * H), np.float32))                       # dummy if L==1

    return tuple(jnp.asarray(a) for a in
                 (ew0row, ewih_hi, ewhh, eb, dw0fold, dwih_hi, dwhh, db,
                  db0_first, lw_np, lb_np))


@functools.partial(jax.jit, static_argnames=("num_layers", "seq_len_dec"))
def _seq2seq_device(x, ew0row, ewih_hi, ewhh, eb, dw0fold, dwih_hi, dwhh, db,
                    db0_first, lw, lb, *, num_layers, seq_len_dec):
    """Single-dispatch forward: transpose + Pallas kernel + trailing reshape."""
    B, T_enc, _ = x.shape
    H = ewhh.shape[1]
    L = num_layers

    x_tm = jnp.transpose(x.astype(jnp.float32), (1, 0, 2))        # (T_enc, B, 1)
    args = (x_tm, ew0row, ewih_hi, ewhh, eb, dw0fold, dwih_hi, dwhh, db,
            db0_first, lw, lb)

    # Advisory cost estimate (no grid / no tiling: the ~100 KB working set
    # trivially fits VMEM on v5e/v6e/v7x; megacore/second-TC not used because
    # the recurrence is strictly serial at B=2).
    steps = T_enc + seq_len_dec
    flops = int(2 * steps * (2 * L) * B * H * 4 * H)
    transcendentals = int(steps * L * B * (2 * 4 * H + H))
    bytes_accessed = int(sum(int(np.prod(a.shape)) * 4 for a in args)
                         + seq_len_dec * B * 4)

    vmem = pl.BlockSpec(memory_space=pltpu.MemorySpace.VMEM)
    out_tb = pl.pallas_call(
        functools.partial(seq2seq_kernel, num_layers=L,
                          seq_len_dec=seq_len_dec),
        out_shape=jax.ShapeDtypeStruct((seq_len_dec, B), jnp.float32),
        in_specs=[vmem] * len(args),
        out_specs=vmem,
        cost_estimate=pl.CostEstimate(flops=flops,
                                      transcendentals=transcendentals,
                                      bytes_accessed=bytes_accessed),
    )(*args)

    # Match PyTorch output: (sequence_length, batch, 1); fused into the dispatch.
    return out_tb[:, :, None]


def seq2seq_forward(x, enc_layers, dec_layers, lin_w, lin_b,
                    hidden_size, sequence_length):
    B, T_enc, in_size = x.shape
    assert in_size == 1, "Seq2SeqA decoder feedback requires input_size == 1"
    packed = _pack_params(enc_layers, dec_layers, lin_w, lin_b, hidden_size)
    return _seq2seq_device(x, *packed, num_layers=len(enc_layers),
                           seq_len_dec=sequence_length)


# --------------------------- parameter init -------------------------------- #

def init_params(key, input_size, hidden_size, num_layers):
    H = hidden_size
    bound = 1.0 / np.sqrt(H)
    keys = iter(jax.random.split(key, 8 * num_layers + 4))

    def u(shape):
        return jax.random.uniform(next(keys), shape, jnp.float32, -bound, bound)

    def lstm(in_size):
        layers = []
        for l in range(num_layers):
            isz = in_size if l == 0 else H
            layers.append(dict(w_ih=u((4 * H, isz)), w_hh=u((4 * H, H)),
                               b_ih=u((4 * H,)), b_hh=u((4 * H,))))
        return layers

    enc = lstm(input_size)
    dec = lstm(input_size)
    lin_w = u((1, H))
    lin_b = u((1,))
    return enc, dec, lin_w, lin_b


# ------------------------- pure-JAX reference ------------------------------ #

def reference_forward(x, enc, dec, lin_w, lin_b, hidden_size, sequence_length):
    B, T, _ = x.shape
    L = len(enc)
    H = hidden_size

    def cell(p, x_in, h, c):
        gates = x_in @ p["w_ih"].T + h @ p["w_hh"].T + p["b_ih"] + p["b_hh"]
        i, f, g, o = jnp.split(gates, 4, axis=-1)
        c = jax.nn.sigmoid(f) * c + jax.nn.sigmoid(i) * jnp.tanh(g)
        h = jax.nn.sigmoid(o) * jnp.tanh(c)
        return h, c

    h = [jnp.zeros((B, H), jnp.float32) for _ in range(L)]
    c = [jnp.zeros((B, H), jnp.float32) for _ in range(L)]
    for t in range(T):
        x_in = x[:, t, :]
        for l in range(L):
            h[l], c[l] = cell(enc[l], x_in, h[l], c[l])
            x_in = h[l]

    y = jnp.zeros((B, 1), jnp.float32)
    outs = []
    for _ in range(sequence_length):
        x_in = y
        for l in range(L):
            h[l], c[l] = cell(dec[l], x_in, h[l], c[l])
            x_in = h[l]
        y = h[L - 1] @ lin_w.T + lin_b
        outs.append(y)
    return jnp.stack(outs, axis=0)                        # (T_dec, B, 1)


# --------------------------------- main ------------------------------------ #

if __name__ == "__main__":
    # Module hyperparameters (input_size must be 1 for the decoder feedback).
    input_size, hidden_size, num_layers = 1, 32, 2
    batch_size, sequence_length = 2, 8

    key = jax.random.PRNGKey(0)
    kx, kp = jax.random.split(key)
    x = jax.random.normal(kx, (batch_size, sequence_length, input_size),
                          jnp.float32)
    enc, dec, lin_w, lin_b = init_params(kp, input_size, hidden_size, num_layers)

    out = seq2seq_forward(x, enc, dec, lin_w, lin_b,
                          hidden_size, sequence_length)
    out = jax.block_until_ready(out)

    ref = reference_forward(x, enc, dec, lin_w, lin_b,
                            hidden_size, sequence_length)
    np.testing.assert_allclose(np.asarray(out), np.asarray(ref),
                               rtol=1e-5, atol=1e-5)
    assert out.shape == (sequence_length, batch_size, 1)
    print("KERNEL_OK")
</pallas_src>

<mosaic_0001>
module attributes {stable_mosaic.version = 11 : i64} {
  func.func @seq2seq_kernel(%arg0: memref<8x2x1xf32, #tpu.memory_space<vmem>>, %arg1: memref<1x128xf32, #tpu.memory_space<vmem>>, %arg2: memref<1x32x128xf32, #tpu.memory_space<vmem>>, %arg3: memref<2x32x128xf32, #tpu.memory_space<vmem>>, %arg4: memref<2x1x128xf32, #tpu.memory_space<vmem>>, %arg5: memref<32x128xf32, #tpu.memory_space<vmem>>, %arg6: memref<1x32x128xf32, #tpu.memory_space<vmem>>, %arg7: memref<2x32x128xf32, #tpu.memory_space<vmem>>, %arg8: memref<2x1x128xf32, #tpu.memory_space<vmem>>, %arg9: memref<1x128xf32, #tpu.memory_space<vmem>>, %arg10: memref<1x32xf32, #tpu.memory_space<vmem>>, %arg11: memref<1x1xf32, #tpu.memory_space<vmem>>, %arg12: memref<8x2xf32, #tpu.memory_space<vmem>>) attributes {dimension_semantics = [], scalar_prefetch = 0 : i64, scratch_operands = 0 : i64, tpu.core_type = #tpu.core_type<tc>} {
    %c0 = arith.constant 0 : index
    %c0_0 = arith.constant 0 : index
    %c0_1 = arith.constant 0 : index
    %0 = vector.load %arg3[%c0, %c0_0, %c0_1] : memref<2x32x128xf32, #tpu.memory_space<vmem>>, vector<1x32x128xf32>
    %1 = vector.shape_cast %0 : vector<1x32x128xf32> to vector<32x128xf32>
    %c1 = arith.constant 1 : index
    %c0_2 = arith.constant 0 : index
    %c0_3 = arith.constant 0 : index
    %2 = vector.load %arg3[%c1, %c0_2, %c0_3] : memref<2x32x128xf32, #tpu.memory_space<vmem>>, vector<1x32x128xf32>
    %3 = vector.shape_cast %2 : vector<1x32x128xf32> to vector<32x128xf32>
    %c0_4 = arith.constant 0 : index
    %c0_5 = arith.constant 0 : index
    %c0_6 = arith.constant 0 : index
    %4 = vector.load %arg4[%c0_4, %c0_5, %c0_6] : memref<2x1x128xf32, #tpu.memory_space<vmem>>, vector<1x1x128xf32>
    %5 = vector.shape_cast %4 : vector<1x1x128xf32> to vector<1x128xf32>
    %c1_7 = arith.constant 1 : index
    %c0_8 = arith.constant 0 : index
    %c0_9 = arith.constant 0 : index
    %6 = vector.load %arg4[%c1_7, %c0_8, %c0_9] : memref<2x1x128xf32, #tpu.memory_space<vmem>>, vector<1x1x128xf32>
    %7 = vector.shape_cast %6 : vector<1x1x128xf32> to vector<1x128xf32>
    %c0_10 = arith.constant 0 : index
    %c0_11 = arith.constant 0 : index
    %c0_12 = arith.constant 0 : index
    %8 = vector.load %arg2[%c0_10, %c0_11, %c0_12] : memref<1x32x128xf32, #tpu.memory_space<vmem>>, vector<1x32x128xf32>
    %9 = vector.shape_cast %8 : vector<1x32x128xf32> to vector<32x128xf32>
    %c0_13 = arith.constant 0 : index
    %c0_14 = arith.constant 0 : index
    %c0_15 = arith.constant 0 : index
    %10 = vector.load %arg7[%c0_13, %c0_14, %c0_15] : memref<2x32x128xf32, #tpu.memory_space<vmem>>, vector<1x32x128xf32>
    %11 = vector.shape_cast %10 : vector<1x32x128xf32> to vector<32x128xf32>
    %c1_16 = arith.constant 1 : index
    %c0_17 = arith.constant 0 : index
    %c0_18 = arith.constant 0 : index
    %12 = vector.load %arg7[%c1_16, %c0_17, %c0_18] : memref<2x32x128xf32, #tpu.memory_space<vmem>>, vector<1x32x128xf32>
    %13 = vector.shape_cast %12 : vector<1x32x128xf32> to vector<32x128xf32>
    %c0_19 = arith.constant 0 : index
    %c0_20 = arith.constant 0 : index
    %c0_21 = arith.constant 0 : index
    %14 = vector.load %arg8[%c0_19, %c0_20, %c0_21] : memref<2x1x128xf32, #tpu.memory_space<vmem>>, vector<1x1x128xf32>
    %15 = vector.shape_cast %14 : vector<1x1x128xf32> to vector<1x128xf32>
    %c1_22 = arith.constant 1 : index
    %c0_23 = arith.constant 0 : index
    %c0_24 = arith.constant 0 : index
    %16 = vector.load %arg8[%c1_22, %c0_23, %c0_24] : memref<2x1x128xf32, #tpu.memory_space<vmem>>, vector<1x1x128xf32>
    %17 = vector.shape_cast %16 : vector<1x1x128xf32> to vector<1x128xf32>
    %c0_25 = arith.constant 0 : index
    %c0_26 = arith.constant 0 : index
    %c0_27 = arith.constant 0 : index
    %18 = vector.load %arg6[%c0_25, %c0_26, %c0_27] : memref<1x32x128xf32, #tpu.memory_space<vmem>>, vector<1x32x128xf32>
    %19 = vector.shape_cast %18 : vector<1x32x128xf32> to vector<32x128xf32>
    %c0_28 = arith.constant 0 : index
    %c0_29 = arith.constant 0 : index
    %20 = vector.load %arg5[%c0_28, %c0_29] : memref<32x128xf32, #tpu.memory_space<vmem>>, vector<32x128xf32>
    %c0_30 = arith.constant 0 : index
    %c0_31 = arith.constant 0 : index
    %21 = vector.load %arg9[%c0_30, %c0_31] : memref<1x128xf32, #tpu.memory_space<vmem>>, vector<1x128xf32>
    %c0_32 = arith.constant 0 : index
    %c0_33 = arith.constant 0 : index
    %22 = vector.load %arg10[%c0_32, %c0_33] : memref<1x32xf32, #tpu.memory_space<vmem>>, vector<1x32xf32>
    %c0_34 = arith.constant 0 : index
    %c0_35 = arith.constant 0 : index
    %23 = vector.load %arg11[%c0_34, %c0_35] : memref<1x1xf32, #tpu.memory_space<vmem>>, vector<1x1xf32>
    %cst = arith.constant 0.000000e+00 : f32
    %24 = vector.broadcast %cst : f32 to vector<2x32xf32>
    %cst_36 = arith.constant 0.000000e+00 : f32
    %25 = vector.broadcast %cst_36 : f32 to vector<2x32xf32>
    %cst_37 = arith.constant 0.000000e+00 : f32
    %26 = vector.broadcast %cst_37 : f32 to vector<2x32xf32>
    %cst_38 = arith.constant 0.000000e+00 : f32
    %27 = vector.broadcast %cst_38 : f32 to vector<2x32xf32>
    %c0_39 = arith.constant 0 : index
    %c0_40 = arith.constant 0 : index
    %c0_41 = arith.constant 0 : index
    %28 = vector.load %arg0[%c0_39, %c0_40, %c0_41] : memref<8x2x1xf32, #tpu.memory_space<vmem>>, vector<8x2x1xf32>
    %c0_42 = arith.constant 0 : index
    %c0_43 = arith.constant 0 : index
    %29 = vector.load %arg1[%c0_42, %c0_43] : memref<1x128xf32, #tpu.memory_space<vmem>>, vector<1x128xf32>
    %30 = vector.shape_cast %29 : vector<1x128xf32> to vector<1x1x128xf32>
    %31 = vector.broadcast %28 : vector<8x2x1xf32> to vector<8x2x128xf32>
    %32 = vector.broadcast %30 : vector<1x1x128xf32> to vector<8x2x128xf32>
    %33 = arith.mulf %31, %32 : vector<8x2x128xf32>
    %34 = vector.shape_cast %5 : vector<1x128xf32> to vector<1x1x128xf32>
    %35 = vector.broadcast %34 : vector<1x1x128xf32> to vector<8x2x128xf32>
    %36 = arith.addf %33, %35 : vector<8x2x128xf32>
    %cst_44 = arith.constant dense<0.000000e+00> : vector<2x128xf32>
    %37 = tpu.matmul %24, %1, %cst_44 {dimension_numbers = #tpu.dot_dimension_numbers<[1], [0], [0], [1], [0, 0, 1, 1], [], []>} : vector<2x32xf32>, vector<32x128xf32>, vector<2x128xf32> -> vector<2x128xf32>
    %38 = vector.extract_strided_slice %36 {offsets = [0, 0, 0], sizes = [1, 2, 128], strides = [1, 1, 1]} : vector<8x2x128xf32> to vector<1x2x128xf32>
    %39 = vector.shape_cast %38 : vector<1x2x128xf32> to vector<2x128xf32>
    %40 = arith.addf %37, %39 : vector<2x128xf32>
    %41 = arith.negf %40 : vector<2x128xf32>
    %42 = math.exp %41 : vector<2x128xf32>
    %cst_45 = arith.constant 1.000000e+00 : f32
    %43 = vector.broadcast %cst_45 : f32 to vector<2x128xf32>
    %44 = arith.addf %43, %42 : vector<2x128xf32>
    %45 = arith.divf %43, %44 : vector<2x128xf32>
    %46 = math.tanh %40 : vector<2x128xf32>
    %47 = vector.extract_strided_slice %45 {offsets = [0, 0], sizes = [2, 32], strides = [1, 1]} : vector<2x128xf32> to vector<2x32xf32>
    %48 = vector.extract_strided_slice %45 {offsets = [0, 32], sizes = [2, 32], strides = [1, 1]} : vector<2x128xf32> to vector<2x32xf32>
    %49 = vector.extract_strided_slice %46 {offsets = [0, 64], sizes = [2, 32], strides = [1, 1]} : vector<2x128xf32> to vector<2x32xf32>
    %50 = vector.extract_strided_slice %45 {offsets = [0, 96], sizes = [2, 32], strides = [1, 1]} : vector<2x128xf32> to vector<2x32xf32>
    %51 = arith.mulf %48, %26 : vector<2x32xf32>
    %52 = arith.mulf %47, %49 : vector<2x32xf32>
    %53 = arith.addf %51, %52 : vector<2x32xf32>
    %54 = math.tanh %53 : vector<2x32xf32>
    %55 = arith.mulf %50, %54 : vector<2x32xf32>
    %cst_46 = arith.constant dense<0.000000e+00> : vector<2x128xf32>
    %56 = tpu.matmul %55, %9, %cst_46 {dimension_numbers = #tpu.dot_dimension_numbers<[1], [0], [0], [1], [0, 0, 1, 1], [], []>} : vector<2x32xf32>, vector<32x128xf32>, vector<2x128xf32> -> vector<2x128xf32>
    %cst_47 = arith.constant dense<0.000000e+00> : vector<2x128xf32>
    %57 = tpu.matmul %25, %3, %cst_47 {dimension_numbers = #tpu.dot_dimension_numbers<[1], [0], [0], [1], [0, 0, 1, 1], [], []>} : vector<2x32xf32>, vector<32x128xf32>, vector<2x128xf32> -> vector<2x128xf32>
    %58 = vector.broadcast %7 : vector<1x128xf32> to vector<2x128xf32>
    %59 = arith.addf %57, %58 : vector<2x128xf32>
    %60 = arith.addf %56, %59 : vector<2x128xf32>
    %61 = arith.negf %60 : vector<2x128xf32>
    %62 = math.exp %61 : vector<2x128xf32>
    %cst_48 = arith.constant 1.000000e+00 : f32
    %63 = vector.broadcast %cst_48 : f32 to vector<2x128xf32>
    %64 = arith.addf %63, %62 : vector<2x128xf32>
    %65 = arith.divf %63, %64 : vector<2x128xf32>
    %66 = math.tanh %60 : vector<2x128xf32>
    %67 = vector.extract_strided_slice %65 {offsets = [0, 0], sizes = [2, 32], strides = [1, 1]} : vector<2x128xf32> to vector<2x32xf32>
    %68 = vector.extract_strided_slice %65 {offsets = [0, 32], sizes = [2, 32], strides = [1, 1]} : vector<2x128xf32> to vector<2x32xf32>
    %69 = vector.extract_strided_slice %66 {offsets = [0, 64], sizes = [2, 32], strides = [1, 1]} : vector<2x128xf32> to vector<2x32xf32>
    %70 = vector.extract_strided_slice %65 {offsets = [0, 96], sizes = [2, 32], strides = [1, 1]} : vector<2x128xf32> to vector<2x32xf32>
    %71 = arith.mulf %68, %27 : vector<2x32xf32>
    %72 = arith.mulf %67, %69 : vector<2x32xf32>
    %73 = arith.addf %71, %72 : vector<2x32xf32>
    %74 = math.tanh %73 : vector<2x32xf32>
    %75 = arith.mulf %70, %74 : vector<2x32xf32>
    %cst_49 = arith.constant dense<0.000000e+00> : vector<2x128xf32>
    %76 = tpu.matmul %55, %1, %cst_49 {dimension_numbers = #tpu.dot_dimension_numbers<[1], [0], [0], [1], [0, 0, 1, 1], [], []>} : vector<2x32xf32>, vector<32x128xf32>, vector<2x128xf32> -> vector<2x128xf32>
    %77 = vector.extract_strided_slice %36 {offsets = [1, 0, 0], sizes = [1, 2, 128], strides = [1, 1, 1]} : vector<8x2x128xf32> to vector<1x2x128xf32>
    %78 = vector.shape_cast %77 : vector<1x2x128xf32> to vector<2x128xf32>
    %79 = arith.addf %76, %78 : vector<2x128xf32>
    %80 = arith.negf %79 : vector<2x128xf32>
    %81 = math.exp %80 : vector<2x128xf32>
    %cst_50 = arith.constant 1.000000e+00 : f32
    %82 = vector.broadcast %cst_50 : f32 to vector<2x128xf32>
    %83 = arith.addf %82, %81 : vector<2x128xf32>
    %84 = arith.divf %82, %83 : vector<2x128xf32>
    %85 = math.tanh %79 : vector<2x128xf32>
    %86 = vector.extract_strided_slice %84 {offsets = [0, 0], sizes = [2, 32], strides = [1, 1]} : vector<2x128xf32> to vector<2x32xf32>
    %87 = vector.extract_strided_slice %84 {offsets = [0, 32], sizes = [2, 32], strides = [1, 1]} : vector<2x128xf32> to vector<2x32xf32>
    %88 = vector.extract_strided_slice %85 {offsets = [0, 64], sizes = [2, 32], strides = [1, 1]} : vector<2x128xf32> to vector<2x32xf32>
    %89 = vector.extract_strided_slice %84 {offsets = [0, 96], sizes = [2, 32], strides = [1, 1]} : vector<2x128xf32> to vector<2x32xf32>
    %90 = arith.mulf %87, %53 : vector<2x32xf32>
    %91 = arith.mulf %86, %88 : vector<2x32xf32>
    %92 = arith.addf %90, %91 : vector<2x32xf32>
    %93 = math.tanh %92 : vector<2x32xf32>
    %94 = arith.mulf %89, %93 : vector<2x32xf32>
    %cst_51 = arith.constant dense<0.000000e+00> : vector<2x128xf32>
    %95 = tpu.matmul %94, %9, %cst_51 {dimension_numbers = #tpu.dot_dimension_numbers<[1], [0], [0], [1], [0, 0, 1, 1], [], []>} : vector<2x32xf32>, vector<32x128xf32>, vector<2x128xf32> -> vector<2x128xf32>
    %cst_52 = arith.constant dense<0.000000e+00> : vector<2x128xf32>
    %96 = tpu.matmul %75, %3, %cst_52 {dimension_numbers = #tpu.dot_dimension_numbers<[1], [0], [0], [1], [0, 0, 1, 1], [], []>} : vector<2x32xf32>, vector<32x128xf32>, vector<2x128xf32> -> vector<2x128xf32>
    %97 = vector.broadcast %7 : vector<1x128xf32> to vector<2x128xf32>
    %98 = arith.addf %96, %97 : vector<2x128xf32>
    %99 = arith.addf %95, %98 : vector<2x128xf32>
    %100 = arith.negf %99 : vector<2x128xf32>
    %101 = math.exp %100 : vector<2x128xf32>
    %cst_53 = arith.constant 1.000000e+00 : f32
    %102 = vector.broadcast %cst_53 : f32 to vector<2x128xf32>
    %103 = arith.addf %102, %101 : vector<2x128xf32>
    %104 = arith.divf %102, %103 : vector<2x128xf32>
    %105 = math.tanh %99 : vector<2x128xf32>
    %106 = vector.extract_strided_slice %104 {offsets = [0, 0], sizes = [2, 32], strides = [1, 1]} : vector<2x128xf32> to vector<2x32xf32>
    %107 = vector.extract_strided_slice %104 {offsets = [0, 32], sizes = [2, 32], strides = [1, 1]} : vector<2x128xf32> to vector<2x32xf32>
    %108 = vector.extract_strided_slice %105 {offsets = [0, 64], sizes = [2, 32], strides = [1, 1]} : vector<2x128xf32> to vector<2x32xf32>
    %109 = vector.extract_strided_slice %104 {offsets = [0, 96], sizes = [2, 32], strides = [1, 1]} : vector<2x128xf32> to vector<2x32xf32>
    %110 = arith.mulf %107, %73 : vector<2x32xf32>
    %111 = arith.mulf %106, %108 : vector<2x32xf32>
    %112 = arith.addf %110, %111 : vector<2x32xf32>
    %113 = math.tanh %112 : vector<2x32xf32>
    %114 = arith.mulf %109, %113 : vector<2x32xf32>
    %cst_54 = arith.constant dense<0.000000e+00> : vector<2x128xf32>
    %115 = tpu.matmul %94, %1, %cst_54 {dimension_numbers = #tpu.dot_dimension_numbers<[1], [0], [0], [1], [0, 0, 1, 1], [], []>} : vector<2x32xf32>, vector<32x128xf32>, vector<2x128xf32> -> vector<2x128xf32>
    %116 = vector.extract_strided_slice %36 {offsets = [2, 0, 0], sizes = [1, 2, 128], strides = [1, 1, 1]} : vector<8x2x128xf32> to vector<1x2x128xf32>
    %117 = vector.shape_cast %116 : vector<1x2x128xf32> to vector<2x128xf32>
    %118 = arith.addf %115, %117 : vector<2x128xf32>
    %119 = arith.negf %118 : vector<2x128xf32>
    %120 = math.exp %119 : vector<2x128xf32>
    %cst_55 = arith.constant 1.000000e+00 : f32
    %121 = vector.broadcast %cst_55 : f32 to vector<2x128xf32>
    %122 = arith.addf %121, %120 : vector<2x128xf32>
    %123 = arith.divf %121, %122 : vector<2x128xf32>
    %124 = math.tanh %118 : vector<2x128xf32>
    %125 = vector.extract_strided_slice %123 {offsets = [0, 0], sizes = [2, 32], strides = [1, 1]} : vector<2x128xf32> to vector<2x32xf32>
    %126 = vector.extract_strided_slice %123 {offsets = [0, 32], sizes = [2, 32], strides = [1, 1]} : vector<2x128xf32> to vector<2x32xf32>
    %127 = vector.extract_strided_slice %124 {offsets = [0, 64], sizes = [2, 32], strides = [1, 1]} : vector<2x128xf32> to vector<2x32xf32>
    %128 = vector.extract_strided_slice %123 {offsets = [0, 96], sizes = [2, 32], strides = [1, 1]} : vector<2x128xf32> to vector<2x32xf32>
    %129 = arith.mulf %126, %92 : vector<2x32xf32>
    %130 = arith.mulf %125, %127 : vector<2x32xf32>
    %131 = arith.addf %129, %130 : vector<2x32xf32>
    %132 = math.tanh %131 : vector<2x32xf32>
    %133 = arith.mulf %128, %132 : vector<2x32xf32>
    %cst_56 = arith.constant dense<0.000000e+00> : vector<2x128xf32>
    %134 = tpu.matmul %133, %9, %cst_56 {dimension_numbers = #tpu.dot_dimension_numbers<[1], [0], [0], [1], [0, 0, 1, 1], [], []>} : vector<2x32xf32>, vector<32x128xf32>, vector<2x128xf32> -> vector<2x128xf32>
    %cst_57 = arith.constant dense<0.000000e+00> : vector<2x128xf32>
    %135 = tpu.matmul %114, %3, %cst_57 {dimension_numbers = #tpu.dot_dimension_numbers<[1], [0], [0], [1], [0, 0, 1, 1], [], []>} : vector<2x32xf32>, vector<32x128xf32>, vector<2x128xf32> -> vector<2x128xf32>
    %136 = vector.broadcast %7 : vector<1x128xf32> to vector<2x128xf32>
    %137 = arith.addf %135, %136 : vector<2x128xf32>
    %138 = arith.addf %134, %137 : vector<2x128xf32>
    %139 = arith.negf %138 : vector<2x128xf32>
    %140 = math.exp %139 : vector<2x128xf32>
    %cst_58 = arith.constant 1.000000e+00 : f32
    %141 = vector.broadcast %cst_58 : f32 to vector<2x128xf32>
    %142 = arith.addf %141, %140 : vector<2x128xf32>
    %143 = arith.divf %141, %142 : vector<2x128xf32>
    %144 = math.tanh %138 : vector<2x128xf32>
    %145 = vector.extract_strided_slice %143 {offsets = [0, 0], sizes = [2, 32], strides = [1, 1]} : vector<2x128xf32> to vector<2x32xf32>
    %146 = vector.extract_strided_slice %143 {offsets = [0, 32], sizes = [2, 32], strides = [1, 1]} : vector<2x128xf32> to vector<2x32xf32>
    %147 = vector.extract_strided_slice %144 {offsets = [0, 64], sizes = [2, 32], strides = [1, 1]} : vector<2x128xf32> to vector<2x32xf32>
    %148 = vector.extract_strided_slice %143 {offsets = [0, 96], sizes = [2, 32], strides = [1, 1]} : vector<2x128xf32> to vector<2x32xf32>
    %149 = arith.mulf %146, %112 : vector<2x32xf32>
    %150 = arith.mulf %145, %147 : vector<2x32xf32>
    %151 = arith.addf %149, %150 : vector<2x32xf32>
    %152 = math.tanh %151 : vector<2x32xf32>
    %153 = arith.mulf %148, %152 : vector<2x32xf32>
    %cst_59 = arith.constant dense<0.000000e+00> : vector<2x128xf32>
    %154 = tpu.matmul %133, %1, %cst_59 {dimension_numbers = #tpu.dot_dimension_numbers<[1], [0], [0], [1], [0, 0, 1, 1], [], []>} : vector<2x32xf32>, vector<32x128xf32>, vector<2x128xf32> -> vector<2x128xf32>
    %155 = vector.extract_strided_slice %36 {offsets = [3, 0, 0], sizes = [1, 2, 128], strides = [1, 1, 1]} : vector<8x2x128xf32> to vector<1x2x128xf32>
    %156 = vector.shape_cast %155 : vector<1x2x128xf32> to vector<2x128xf32>
    %157 = arith.addf %154, %156 : vector<2x128xf32>
    %158 = arith.negf %157 : vector<2x128xf32>
    %159 = math.exp %158 : vector<2x128xf32>
    %cst_60 = arith.constant 1.000000e+00 : f32
    %160 = vector.broadcast %cst_60 : f32 to vector<2x128xf32>
    %161 = arith.addf %160, %159 : vector<2x128xf32>
    %162 = arith.divf %160, %161 : vector<2x128xf32>
    %163 = math.tanh %157 : vector<2x128xf32>
    %164 = vector.extract_strided_slice %162 {offsets = [0, 0], sizes = [2, 32], strides = [1, 1]} : vector<2x128xf32> to vector<2x32xf32>
    %165 = vector.extract_strided_slice %162 {offsets = [0, 32], sizes = [2, 32], strides = [1, 1]} : vector<2x128xf32> to vector<2x32xf32>
    %166 = vector.extract_strided_slice %163 {offsets = [0, 64], sizes = [2, 32], strides = [1, 1]} : vector<2x128xf32> to vector<2x32xf32>
    %167 = vector.extract_strided_slice %162 {offsets = [0, 96], sizes = [2, 32], strides = [1, 1]} : vector<2x128xf32> to vector<2x32xf32>
    %168 = arith.mulf %165, %131 : vector<2x32xf32>
    %169 = arith.mulf %164, %166 : vector<2x32xf32>
    %170 = arith.addf %168, %169 : vector<2x32xf32>
    %171 = math.tanh %170 : vector<2x32xf32>
    %172 = arith.mulf %167, %171 : vector<2x32xf32>
    %cst_61 = arith.constant dense<0.000000e+00> : vector<2x128xf32>
    %173 = tpu.matmul %172, %9, %cst_61 {dimension_numbers = #tpu.dot_dimension_numbers<[1], [0], [0], [1], [0, 0, 1, 1], [], []>} : vector<2x32xf32>, vector<32x128xf32>, vector<2x128xf32> -> vector<2x128xf32>
    %cst_62 = arith.constant dense<0.000000e+00> : vector<2x128xf32>
    %174 = tpu.matmul %153, %3, %cst_62 {dimension_numbers = #tpu.dot_dimension_numbers<[1], [0], [0], [1], [0, 0, 1, 1], [], []>} : vector<2x32xf32>, vector<32x128xf32>, vector<2x128xf32> -> vector<2x128xf32>
    %175 = vector.broadcast %7 : vector<1x128xf32> to vector<2x128xf32>
    %176 = arith.addf %174, %175 : vector<2x128xf32>
    %177 = arith.addf %173, %176 : vector<2x128xf32>
    %178 = arith.negf %177 : vector<2x128xf32>
    %179 = math.exp %178 : vector<2x128xf32>
    %cst_63 = arith.constant 1.000000e+00 : f32
    %180 = vector.broadcast %cst_63 : f32 to vector<2x128xf32>
    %181 = arith.addf %180, %179 : vector<2x128xf32>
    %182 = arith.divf %180, %181 : vector<2x128xf32>
    %183 = math.tanh %177 : vector<2x128xf32>
    %184 = vector.extract_strided_slice %182 {offsets = [0, 0], sizes = [2, 32], strides = [1, 1]} : vector<2x128xf32> to vector<2x32xf32>
    %185 = vector.extract_strided_slice %182 {offsets = [0, 32], sizes = [2, 32], strides = [1, 1]} : vector<2x128xf32> to vector<2x32xf32>
    %186 = vector.extract_strided_slice %183 {offsets = [0, 64], sizes = [2, 32], strides = [1, 1]} : vector<2x128xf32> to vector<2x32xf32>
    %187 = vector.extract_strided_slice %182 {offsets = [0, 96], sizes = [2, 32], strides = [1, 1]} : vector<2x128xf32> to vector<2x32xf32>
    %188 = arith.mulf %185, %151 : vector<2x32xf32>
    %189 = arith.mulf %184, %186 : vector<2x32xf32>
    %190 = arith.addf %188, %189 : vector<2x32xf32>
    %191 = math.tanh %190 : vector<2x32xf32>
    %192 = arith.mulf %187, %191 : vector<2x32xf32>
    %cst_64 = arith.constant dense<0.000000e+00> : vector<2x128xf32>
    %193 = tpu.matmul %172, %1, %cst_64 {dimension_numbers = #tpu.dot_dimension_numbers<[1], [0], [0], [1], [0, 0, 1, 1], [], []>} : vector<2x32xf32>, vector<32x128xf32>, vector<2x128xf32> -> vector<2x128xf32>
    %194 = vector.extract_strided_slice %36 {offsets = [4, 0, 0], sizes = [1, 2, 128], strides = [1, 1, 1]} : vector<8x2x128xf32> to vector<1x2x128xf32>
    %195 = vector.shape_cast %194 : vector<1x2x128xf32> to vector<2x128xf32>
    %196 = arith.addf %193, %195 : vector<2x128xf32>
    %197 = arith.negf %196 : vector<2x128xf32>
    %198 = math.exp %197 : vector<2x128xf32>
    %cst_65 = arith.constant 1.000000e+00 : f32
    %199 = vector.broadcast %cst_65 : f32 to vector<2x128xf32>
    %200 = arith.addf %199, %198 : vector<2x128xf32>
    %201 = arith.divf %199, %200 : vector<2x128xf32>
    %202 = math.tanh %196 : vector<2x128xf32>
    %203 = vector.extract_strided_slice %201 {offsets = [0, 0], sizes = [2, 32], strides = [1, 1]} : vector<2x128xf32> to vector<2x32xf32>
    %204 = vector.extract_strided_slice %201 {offsets = [0, 32], sizes = [2, 32], strides = [1, 1]} : vector<2x128xf32> to vector<2x32xf32>
    %205 = vector.extract_strided_slice %202 {offsets = [0, 64], sizes = [2, 32], strides = [1, 1]} : vector<2x128xf32> to vector<2x32xf32>
    %206 = vector.extract_strided_slice %201 {offsets = [0, 96], sizes = [2, 32], strides = [1, 1]} : vector<2x128xf32> to vector<2x32xf32>
    %207 = arith.mulf %204, %170 : vector<2x32xf32>
    %208 = arith.mulf %203, %205 : vector<2x32xf32>
    %209 = arith.addf %207, %208 : vector<2x32xf32>
    %210 = math.tanh %209 : vector<2x32xf32>
    %211 = arith.mulf %206, %210 : vector<2x32xf32>
    %cst_66 = arith.constant dense<0.000000e+00> : vector<2x128xf32>
    %212 = tpu.matmul %211, %9, %cst_66 {dimension_numbers = #tpu.dot_dimension_numbers<[1], [0], [0], [1], [0, 0, 1, 1], [], []>} : vector<2x32xf32>, vector<32x128xf32>, vector<2x128xf32> -> vector<2x128xf32>
    %cst_67 = arith.constant dense<0.000000e+00> : vector<2x128xf32>
    %213 = tpu.matmul %192, %3, %cst_67 {dimension_numbers = #tpu.dot_dimension_numbers<[1], [0], [0], [1], [0, 0, 1, 1], [], []>} : vector<2x32xf32>, vector<32x128xf32>, vector<2x128xf32> -> vector<2x128xf32>
    %214 = vector.broadcast %7 : vector<1x128xf32> to vector<2x128xf32>
    %215 = arith.addf %213, %214 : vector<2x128xf32>
    %216 = arith.addf %212, %215 : vector<2x128xf32>
    %217 = arith.negf %216 : vector<2x128xf32>
    %218 = math.exp %217 : vector<2x128xf32>
    %cst_68 = arith.constant 1.000000e+00 : f32
    %219 = vector.broadcast %cst_68 : f32 to vector<2x128xf32>
    %220 = arith.addf %219, %218 : vector<2x128xf32>
    %221 = arith.divf %219, %220 : vector<2x128xf32>
    %222 = math.tanh %216 : vector<2x128xf32>
    %223 = vector.extract_strided_slice %221 {offsets = [0, 0], sizes = [2, 32], strides = [1, 1]} : vector<2x128xf32> to vector<2x32xf32>
    %224 = vector.extract_strided_slice %221 {offsets = [0, 32], sizes = [2, 32], strides = [1, 1]} : vector<2x128xf32> to vector<2x32xf32>
    %225 = vector.extract_strided_slice %222 {offsets = [0, 64], sizes = [2, 32], strides = [1, 1]} : vector<2x128xf32> to vector<2x32xf32>
    %226 = vector.extract_strided_slice %221 {offsets = [0, 96], sizes = [2, 32], strides = [1, 1]} : vector<2x128xf32> to vector<2x32xf32>
    %227 = arith.mulf %224, %190 : vector<2x32xf32>
    %228 = arith.mulf %223, %225 : vector<2x32xf32>
    %229 = arith.addf %227, %228 : vector<2x32xf32>
    %230 = math.tanh %229 : vector<2x32xf32>
    %231 = arith.mulf %226, %230 : vector<2x32xf32>
    %cst_69 = arith.constant dense<0.000000e+00> : vector<2x128xf32>
    %232 = tpu.matmul %211, %1, %cst_69 {dimension_numbers = #tpu.dot_dimension_numbers<[1], [0], [0], [1], [0, 0, 1, 1], [], []>} : vector<2x32xf32>, vector<32x128xf32>, vector<2x128xf32> -> vector<2x128xf32>
    %233 = vector.extract_strided_slice %36 {offsets = [5, 0, 0], sizes = [1, 2, 128], strides = [1, 1, 1]} : vector<8x2x128xf32> to vector<1x2x128xf32>
    %234 = vector.shape_cast %233 : vector<1x2x128xf32> to vector<2x128xf32>
    %235 = arith.addf %232, %234 : vector<2x128xf32>
    %236 = arith.negf %235 : vector<2x128xf32>
    %237 = math.exp %236 : vector<2x128xf32>
    %cst_70 = arith.constant 1.000000e+00 : f32
    %238 = vector.broadcast %cst_70 : f32 to vector<2x128xf32>
    %239 = arith.addf %238, %237 : vector<2x128xf32>
    %240 = arith.divf %238, %239 : vector<2x128xf32>
    %241 = math.tanh %235 : vector<2x128xf32>
    %242 = vector.extract_strided_slice %240 {offsets = [0, 0], sizes = [2, 32], strides = [1, 1]} : vector<2x128xf32> to vector<2x32xf32>
    %243 = vector.extract_strided_slice %240 {offsets = [0, 32], sizes = [2, 32], strides = [1, 1]} : vector<2x128xf32> to vector<2x32xf32>
    %244 = vector.extract_strided_slice %241 {offsets = [0, 64], sizes = [2, 32], strides = [1, 1]} : vector<2x128xf32> to vector<2x32xf32>
    %245 = vector.extract_strided_slice %240 {offsets = [0, 96], sizes = [2, 32], strides = [1, 1]} : vector<2x128xf32> to vector<2x32xf32>
    %246 = arith.mulf %243, %209 : vector<2x32xf32>
    %247 = arith.mulf %242, %244 : vector<2x32xf32>
    %248 = arith.addf %246, %247 : vector<2x32xf32>
    %249 = math.tanh %248 : vector<2x32xf32>
    %250 = arith.mulf %245, %249 : vector<2x32xf32>
    %cst_71 = arith.constant dense<0.000000e+00> : vector<2x128xf32>
    %251 = tpu.matmul %250, %9, %cst_71 {dimension_numbers = #tpu.dot_dimension_numbers<[1], [0], [0], [1], [0, 0, 1, 1], [], []>} : vector<2x32xf32>, vector<32x128xf32>, vector<2x128xf32> -> vector<2x128xf32>
    %cst_72 = arith.constant dense<0.000000e+00> : vector<2x128xf32>
    %252 = tpu.matmul %231, %3, %cst_72 {dimension_numbers = #tpu.dot_dimension_numbers<[1], [0], [0], [1], [0, 0, 1, 1], [], []>} : vector<2x32xf32>, vector<32x128xf32>, vector<2x128xf32> -> vector<2x128xf32>
    %253 = vector.broadcast %7 : vector<1x128xf32> to vector<2x128xf32>
    %254 = arith.addf %252, %253 : vector<2x128xf32>
    %255 = arith.addf %251, %254 : vector<2x128xf32>
    %256 = arith.negf %255 : vector<2x128xf32>
    %257 = math.exp %256 : vector<2x128xf32>
    %cst_73 = arith.constant 1.000000e+00 : f32
    %258 = vector.broadcast %cst_73 : f32 to vector<2x128xf32>
    %259 = arith.addf %258, %257 : vector<2x128xf32>
    %260 = arith.divf %258, %259 : vector<2x128xf32>
    %261 = math.tanh %255 : vector<2x128xf32>
    %262 = vector.extract_strided_slice %260 {offsets = [0, 0], sizes = [2, 32], strides = [1, 1]} : vector<2x128xf32> to vector<2x32xf32>
    %263 = vector.extract_strided_slice %260 {offsets = [0, 32], sizes = [2, 32], strides = [1, 1]} : vector<2x128xf32> to vector<2x32xf32>
    %264 = vector.extract_strided_slice %261 {offsets = [0, 64], sizes = [2, 32], strides = [1, 1]} : vector<2x128xf32> to vector<2x32xf32>
    %265 = vector.extract_strided_slice %260 {offsets = [0, 96], sizes = [2, 32], strides = [1, 1]} : vector<2x128xf32> to vector<2x32xf32>
    %266 = arith.mulf %263, %229 : vector<2x32xf32>
    %267 = arith.mulf %262, %264 : vector<2x32xf32>
    %268 = arith.addf %266, %267 : vector<2x32xf32>
    %269 = math.tanh %268 : vector<2x32xf32>
    %270 = arith.mulf %265, %269 : vector<2x32xf32>
    %cst_74 = arith.constant dense<0.000000e+00> : vector<2x128xf32>
    %271 = tpu.matmul %250, %1, %cst_74 {dimension_numbers = #tpu.dot_dimension_numbers<[1], [0], [0], [1], [0, 0, 1, 1], [], []>} : vector<2x32xf32>, vector<32x128xf32>, vector<2x128xf32> -> vector<2x128xf32>
    %272 = vector.extract_strided_slice %36 {offsets = [6, 0, 0], sizes = [1, 2, 128], strides = [1, 1, 1]} : vector<8x2x128xf32> to vector<1x2x128xf32>
    %273 = vector.shape_cast %272 : vector<1x2x128xf32> to vector<2x128xf32>
    %274 = arith.addf %271, %273 : vector<2x128xf32>
    %275 = arith.negf %274 : vector<2x128xf32>
    %276 = math.exp %275 : vector<2x128xf32>
    %cst_75 = arith.constant 1.000000e+00 : f32
    %277 = vector.broadcast %cst_75 : f32 to vector<2x128xf32>
    %278 = arith.addf %277, %276 : vector<2x128xf32>
    %279 = arith.divf %277, %278 : vector<2x128xf32>
    %280 = math.tanh %274 : vector<2x128xf32>
    %281 = vector.extract_strided_slice %279 {offsets = [0, 0], sizes = [2, 32], strides = [1, 1]} : vector<2x128xf32> to vector<2x32xf32>
    %282 = vector.extract_strided_slice %279 {offsets = [0, 32], sizes = [2, 32], strides = [1, 1]} : vector<2x128xf32> to vector<2x32xf32>
    %283 = vector.extract_strided_slice %280 {offsets = [0, 64], sizes = [2, 32], strides = [1, 1]} : vector<2x128xf32> to vector<2x32xf32>
    %284 = vector.extract_strided_slice %279 {offsets = [0, 96], sizes = [2, 32], strides = [1, 1]} : vector<2x128xf32> to vector<2x32xf32>
    %285 = arith.mulf %282, %248 : vector<2x32xf32>
    %286 = arith.mulf %281, %283 : vector<2x32xf32>
    %287 = arith.addf %285, %286 : vector<2x32xf32>
    %288 = math.tanh %287 : vector<2x32xf32>
    %289 = arith.mulf %284, %288 : vector<2x32xf32>
    %cst_76 = arith.constant dense<0.000000e+00> : vector<2x128xf32>
    %290 = tpu.matmul %289, %9, %cst_76 {dimension_numbers = #tpu.dot_dimension_numbers<[1], [0], [0], [1], [0, 0, 1, 1], [], []>} : vector<2x32xf32>, vector<32x128xf32>, vector<2x128xf32> -> vector<2x128xf32>
    %cst_77 = arith.constant dense<0.000000e+00> : vector<2x128xf32>
    %291 = tpu.matmul %270, %3, %cst_77 {dimension_numbers = #tpu.dot_dimension_numbers<[1], [0], [0], [1], [0, 0, 1, 1], [], []>} : vector<2x32xf32>, vector<32x128xf32>, vector<2x128xf32> -> vector<2x128xf32>
    %292 = vector.broadcast %7 : vector<1x128xf32> to vector<2x128xf32>
    %293 = arith.addf %291, %292 : vector<2x128xf32>
    %294 = arith.addf %290, %293 : vector<2x128xf32>
    %295 = arith.negf %294 : vector<2x128xf32>
    %296 = math.exp %295 : vector<2x128xf32>
    %cst_78 = arith.constant 1.000000e+00 : f32
    %297 = vector.broadcast %cst_78 : f32 to vector<2x128xf32>
    %298 = arith.addf %297, %296 : vector<2x128xf32>
    %299 = arith.divf %297, %298 : vector<2x128xf32>
    %300 = math.tanh %294 : vector<2x128xf32>
    %301 = vector.extract_strided_slice %299 {offsets = [0, 0], sizes = [2, 32], strides = [1, 1]} : vector<2x128xf32> to vector<2x32xf32>
    %302 = vector.extract_strided_slice %299 {offsets = [0, 32], sizes = [2, 32], strides = [1, 1]} : vector<2x128xf32> to vector<2x32xf32>
    %303 = vector.extract_strided_slice %300 {offsets = [0, 64], sizes = [2, 32], strides = [1, 1]} : vector<2x128xf32> to vector<2x32xf32>
    %304 = vector.extract_strided_slice %299 {offsets = [0, 96], sizes = [2, 32], strides = [1, 1]} : vector<2x128xf32> to vector<2x32xf32>
    %305 = arith.mulf %302, %268 : vector<2x32xf32>
    %306 = arith.mulf %301, %303 : vector<2x32xf32>
    %307 = arith.addf %305, %306 : vector<2x32xf32>
    %308 = math.tanh %307 : vector<2x32xf32>
    %309 = arith.mulf %304, %308 : vector<2x32xf32>
    %cst_79 = arith.constant dense<0.000000e+00> : vector<2x128xf32>
    %310 = tpu.matmul %289, %1, %cst_79 {dimension_numbers = #tpu.dot_dimension_numbers<[1], [0], [0], [1], [0, 0, 1, 1], [], []>} : vector<2x32xf32>, vector<32x128xf32>, vector<2x128xf32> -> vector<2x128xf32>
    %311 = vector.extract_strided_slice %36 {offsets = [7, 0, 0], sizes = [1, 2, 128], strides = [1, 1, 1]} : vector<8x2x128xf32> to vector<1x2x128xf32>
    %312 = vector.shape_cast %311 : vector<1x2x128xf32> to vector<2x128xf32>
    %313 = arith.addf %310, %312 : vector<2x128xf32>
    %314 = arith.negf %313 : vector<2x128xf32>
    %315 = math.exp %314 : vector<2x128xf32>
    %cst_80 = arith.constant 1.000000e+00 : f32
    %316 = vector.broadcast %cst_80 : f32 to vector<2x128xf32>
    %317 = arith.addf %316, %315 : vector<2x128xf32>
    %318 = arith.divf %316, %317 : vector<2x128xf32>
    %319 = math.tanh %313 : vector<2x128xf32>
    %320 = vector.extract_strided_slice %318 {offsets = [0, 0], sizes = [2, 32], strides = [1, 1]} : vector<2x128xf32> to vector<2x32xf32>
    %321 = vector.extract_strided_slice %318 {offsets = [0, 32], sizes = [2, 32], strides = [1, 1]} : vector<2x128xf32> to vector<2x32xf32>
    %322 = vector.extract_strided_slice %319 {offsets = [0, 64], sizes = [2, 32], strides = [1, 1]} : vector<2x128xf32> to vector<2x32xf32>
    %323 = vector.extract_strided_slice %318 {offsets = [0, 96], sizes = [2, 32], strides = [1, 1]} : vector<2x128xf32> to vector<2x32xf32>
    %324 = arith.mulf %321, %287 : vector<2x32xf32>
    %325 = arith.mulf %320, %322 : vector<2x32xf32>
    %326 = arith.addf %324, %325 : vector<2x32xf32>
    %327 = math.tanh %326 : vector<2x32xf32>
    %328 = arith.mulf %323, %327 : vector<2x32xf32>
    %cst_81 = arith.constant dense<0.000000e+00> : vector<2x128xf32>
    %329 = tpu.matmul %328, %9, %cst_81 {dimension_numbers = #tpu.dot_dimension_numbers<[1], [0], [0], [1], [0, 0, 1, 1], [], []>} : vector<2x32xf32>, vector<32x128xf32>, vector<2x128xf32> -> vector<2x128xf32>
    %cst_82 = arith.constant dense<0.000000e+00> : vector<2x128xf32>
    %330 = tpu.matmul %309, %3, %cst_82 {dimension_numbers = #tpu.dot_dimension_numbers<[1], [0], [0], [1], [0, 0, 1, 1], [], []>} : vector<2x32xf32>, vector<32x128xf32>, vector<2x128xf32> -> vector<2x128xf32>
    %331 = vector.broadcast %7 : vector<1x128xf32> to vector<2x128xf32>
    %332 = arith.addf %330, %331 : vector<2x128xf32>
    %333 = arith.addf %329, %332 : vector<2x128xf32>
    %334 = arith.negf %333 : vector<2x128xf32>
    %335 = math.exp %334 : vector<2x128xf32>
    %cst_83 = arith.constant 1.000000e+00 : f32
    %336 = vector.broadcast %cst_83 : f32 to vector<2x128xf32>
    %337 = arith.addf %336, %335 : vector<2x128xf32>
    %338 = arith.divf %336, %337 : vector<2x128xf32>
    %339 = math.tanh %333 : vector<2x128xf32>
    %340 = vector.extract_strided_slice %338 {offsets = [0, 0], sizes = [2, 32], strides = [1, 1]} : vector<2x128xf32> to vector<2x32xf32>
    %341 = vector.extract_strided_slice %338 {offsets = [0, 32], sizes = [2, 32], strides = [1, 1]} : vector<2x128xf32> to vector<2x32xf32>
    %342 = vector.extract_strided_slice %339 {offsets = [0, 64], sizes = [2, 32], strides = [1, 1]} : vector<2x128xf32> to vector<2x32xf32>
    %343 = vector.extract_strided_slice %338 {offsets = [0, 96], sizes = [2, 32], strides = [1, 1]} : vector<2x128xf32> to vector<2x32xf32>
    %344 = arith.mulf %341, %307 : vector<2x32xf32>
    %345 = arith.mulf %340, %342 : vector<2x32xf32>
    %346 = arith.addf %344, %345 : vector<2x32xf32>
    %347 = math.tanh %346 : vector<2x32xf32>
    %348 = arith.mulf %343, %347 : vector<2x32xf32>
    %cst_84 = arith.constant dense<0.000000e+00> : vector<2x128xf32>
    %349 = tpu.matmul %328, %11, %cst_84 {dimension_numbers = #tpu.dot_dimension_numbers<[1], [0], [0], [1], [0, 0, 1, 1], [], []>} : vector<2x32xf32>, vector<32x128xf32>, vector<2x128xf32> -> vector<2x128xf32>
    %350 = vector.broadcast %21 : vector<1x128xf32> to vector<2x128xf32>
    %351 = arith.addf %349, %350 : vector<2x128xf32>
    %352 = arith.negf %351 : vector<2x128xf32>
    %353 = math.exp %352 : vector<2x128xf32>
    %cst_85 = arith.constant 1.000000e+00 : f32
    %354 = vector.broadcast %cst_85 : f32 to vector<2x128xf32>
    %355 = arith.addf %354, %353 : vector<2x128xf32>
    %356 = arith.divf %354, %355 : vector<2x128xf32>
    %357 = math.tanh %351 : vector<2x128xf32>
    %358 = vector.extract_strided_slice %356 {offsets = [0, 0], sizes = [2, 32], strides = [1, 1]} : vector<2x128xf32> to vector<2x32xf32>
    %359 = vector.extract_strided_slice %356 {offsets = [0, 32], sizes = [2, 32], strides = [1, 1]} : vector<2x128xf32> to vector<2x32xf32>
    %360 = vector.extract_strided_slice %357 {offsets = [0, 64], sizes = [2, 32], strides = [1, 1]} : vector<2x128xf32> to vector<2x32xf32>
    %361 = vector.extract_strided_slice %356 {offsets = [0, 96], sizes = [2, 32], strides = [1, 1]} : vector<2x128xf32> to vector<2x32xf32>
    %362 = arith.mulf %359, %326 : vector<2x32xf32>
    %363 = arith.mulf %358, %360 : vector<2x32xf32>
    %364 = arith.addf %362, %363 : vector<2x32xf32>
    %365 = math.tanh %364 : vector<2x32xf32>
    %366 = arith.mulf %361, %365 : vector<2x32xf32>
    %cst_86 = arith.constant dense<0.000000e+00> : vector<2x128xf32>
    %367 = tpu.matmul %366, %19, %cst_86 {dimension_numbers = #tpu.dot_dimension_numbers<[1], [0], [0], [1], [0, 0, 1, 1], [], []>} : vector<2x32xf32>, vector<32x128xf32>, vector<2x128xf32> -> vector<2x128xf32>
    %cst_87 = arith.constant dense<0.000000e+00> : vector<2x128xf32>
    %368 = tpu.matmul %348, %13, %cst_87 {dimension_numbers = #tpu.dot_dimension_numbers<[1], [0], [0], [1], [0, 0, 1, 1], [], []>} : vector<2x32xf32>, vector<32x128xf32>, vector<2x128xf32> -> vector<2x128xf32>
    %369 = vector.broadcast %17 : vector<1x128xf32> to vector<2x128xf32>
    %370 = arith.addf %368, %369 : vector<2x128xf32>
    %371 = arith.addf %367, %370 : vector<2x128xf32>
    %372 = arith.negf %371 : vector<2x128xf32>
    %373 = math.exp %372 : vector<2x128xf32>
    %cst_88 = arith.constant 1.000000e+00 : f32
    %374 = vector.broadcast %cst_88 : f32 to vector<2x128xf32>
    %375 = arith.addf %374, %373 : vector<2x128xf32>
    %376 = arith.divf %374, %375 : vector<2x128xf32>
    %377 = math.tanh %371 : vector<2x128xf32>
    %378 = vector.extract_strided_slice %376 {offsets = [0, 0], sizes = [2, 32], strides = [1, 1]} : vector<2x128xf32> to vector<2x32xf32>
    %379 = vector.extract_strided_slice %376 {offsets = [0, 32], sizes = [2, 32], strides = [1, 1]} : vector<2x128xf32> to vector<2x32xf32>
    %380 = vector.extract_strided_slice %377 {offsets = [0, 64], sizes = [2, 32], strides = [1, 1]} : vector<2x128xf32> to vector<2x32xf32>
    %381 = vector.extract_strided_slice %376 {offsets = [0, 96], sizes = [2, 32], strides = [1, 1]} : vector<2x128xf32> to vector<2x32xf32>
    %382 = arith.mulf %379, %346 : vector<2x32xf32>
    %383 = arith.mulf %378, %380 : vector<2x32xf32>
    %384 = arith.addf %382, %383 : vector<2x32xf32>
    %385 = math.tanh %384 : vector<2x32xf32>
    %386 = arith.mulf %381, %385 : vector<2x32xf32>
    %cst_89 = arith.constant dense<0.000000e+00> : vector<2x128xf32>
    %387 = tpu.matmul %386, %20, %cst_89 {dimension_numbers = #tpu.dot_dimension_numbers<[1], [0], [0], [1], [0, 0, 1, 1], [], []>} : vector<2x32xf32>, vector<32x128xf32>, vector<2x128xf32> -> vector<2x128xf32>
    %cst_90 = arith.constant dense<0.000000e+00> : vector<2x128xf32>
    %388 = tpu.matmul %366, %11, %cst_90 {dimension_numbers = #tpu.dot_dimension_numbers<[1], [0], [0], [1], [0, 0, 1, 1], [], []>} : vector<2x32xf32>, vector<32x128xf32>, vector<2x128xf32> -> vector<2x128xf32>
    %389 = vector.broadcast %15 : vector<1x128xf32> to vector<2x128xf32>
    %390 = arith.addf %388, %389 : vector<2x128xf32>
    %391 = arith.addf %387, %390 : vector<2x128xf32>
    %392 = arith.negf %391 : vector<2x128xf32>
    %393 = math.exp %392 : vector<2x128xf32>
    %cst_91 = arith.constant 1.000000e+00 : f32
    %394 = vector.broadcast %cst_91 : f32 to vector<2x128xf32>
    %395 = arith.addf %394, %393 : vector<2x128xf32>
    %396 = arith.divf %394, %395 : vector<2x128xf32>
    %397 = math.tanh %391 : vector<2x128xf32>
    %398 = vector.extract_strided_slice %396 {offsets = [0, 0], sizes = [2, 32], strides = [1, 1]} : vector<2x128xf32> to vector<2x32xf32>
    %399 = vector.extract_strided_slice %396 {offsets = [0, 32], sizes = [2, 32], strides = [1, 1]} : vector<2x128xf32> to vector<2x32xf32>
    %400 = vector.extract_strided_slice %397 {offsets = [0, 64], sizes = [2, 32], strides = [1, 1]} : vector<2x128xf32> to vector<2x32xf32>
    %401 = vector.extract_strided_slice %396 {offsets = [0, 96], sizes = [2, 32], strides = [1, 1]} : vector<2x128xf32> to vector<2x32xf32>
    %402 = arith.mulf %399, %364 : vector<2x32xf32>
    %403 = arith.mulf %398, %400 : vector<2x32xf32>
    %404 = arith.addf %402, %403 : vector<2x32xf32>
    %405 = math.tanh %404 : vector<2x32xf32>
    %406 = arith.mulf %401, %405 : vector<2x32xf32>
    %cst_92 = arith.constant dense<0.000000e+00> : vector<2x128xf32>
    %407 = tpu.matmul %406, %19, %cst_92 {dimension_numbers = #tpu.dot_dimension_numbers<[1], [0], [0], [1], [0, 0, 1, 1], [], []>} : vector<2x32xf32>, vector<32x128xf32>, vector<2x128xf32> -> vector<2x128xf32>
    %cst_93 = arith.constant dense<0.000000e+00> : vector<2x128xf32>
    %408 = tpu.matmul %386, %13, %cst_93 {dimension_numbers = #tpu.dot_dimension_numbers<[1], [0], [0], [1], [0, 0, 1, 1], [], []>} : vector<2x32xf32>, vector<32x128xf32>, vector<2x128xf32> -> vector<2x128xf32>
    %409 = vector.broadcast %17 : vector<1x128xf32> to vector<2x128xf32>
    %410 = arith.addf %408, %409 : vector<2x128xf32>
    %411 = arith.addf %407, %410 : vector<2x128xf32>
    %412 = arith.negf %411 : vector<2x128xf32>
    %413 = math.exp %412 : vector<2x128xf32>
    %cst_94 = arith.constant 1.000000e+00 : f32
    %414 = vector.broadcast %cst_94 : f32 to vector<2x128xf32>
    %415 = arith.addf %414, %413 : vector<2x128xf32>
    %416 = arith.divf %414, %415 : vector<2x128xf32>
    %417 = math.tanh %411 : vector<2x128xf32>
    %418 = vector.extract_strided_slice %416 {offsets = [0, 0], sizes = [2, 32], strides = [1, 1]} : vector<2x128xf32> to vector<2x32xf32>
    %419 = vector.extract_strided_slice %416 {offsets = [0, 32], sizes = [2, 32], strides = [1, 1]} : vector<2x128xf32> to vector<2x32xf32>
    %420 = vector.extract_strided_slice %417 {offsets = [0, 64], sizes = [2, 32], strides = [1, 1]} : vector<2x128xf32> to vector<2x32xf32>
    %421 = vector.extract_strided_slice %416 {offsets = [0, 96], sizes = [2, 32], strides = [1, 1]} : vector<2x128xf32> to vector<2x32xf32>
    %422 = arith.mulf %419, %384 : vector<2x32xf32>
    %423 = arith.mulf %418, %420 : vector<2x32xf32>
    %424 = arith.addf %422, %423 : vector<2x32xf32>
    %425 = math.tanh %424 : vector<2x32xf32>
    %426 = arith.mulf %421, %425 : vector<2x32xf32>
    %cst_95 = arith.constant dense<0.000000e+00> : vector<2x128xf32>
    %427 = tpu.matmul %426, %20, %cst_95 {dimension_numbers = #tpu.dot_dimension_numbers<[1], [0], [0], [1], [0, 0, 1, 1], [], []>} : vector<2x32xf32>, vector<32x128xf32>, vector<2x128xf32> -> vector<2x128xf32>
    %cst_96 = arith.constant dense<0.000000e+00> : vector<2x128xf32>
    %428 = tpu.matmul %406, %11, %cst_96 {dimension_numbers = #tpu.dot_dimension_numbers<[1], [0], [0], [1], [0, 0, 1, 1], [], []>} : vector<2x32xf32>, vector<32x128xf32>, vector<2x128xf32> -> vector<2x128xf32>
    %429 = vector.broadcast %15 : vector<1x128xf32> to vector<2x128xf32>
    %430 = arith.addf %428, %429 : vector<2x128xf32>
    %431 = arith.addf %427, %430 : vector<2x128xf32>
    %432 = arith.negf %431 : vector<2x128xf32>
    %433 = math.exp %432 : vector<2x128xf32>
    %cst_97 = arith.constant 1.000000e+00 : f32
    %434 = vector.broadcast %cst_97 : f32 to vector<2x128xf32>
    %435 = arith.addf %434, %433 : vector<2x128xf32>
    %436 = arith.divf %434, %435 : vector<2x128xf32>
    %437 = math.tanh %431 : vector<2x128xf32>
    %438 = vector.extract_strided_slice %436 {offsets = [0, 0], sizes = [2, 32], strides = [1, 1]} : vector<2x128xf32> to vector<2x32xf32>
    %439 = vector.extract_strided_slice %436 {offsets = [0, 32], sizes = [2, 32], strides = [1, 1]} : vector<2x128xf32> to vector<2x32xf32>
    %440 = vector.extract_strided_slice %437 {offsets = [0, 64], sizes = [2, 32], strides = [1, 1]} : vector<2x128xf32> to vector<2x32xf32>
    %441 = vector.extract_strided_slice %436 {offsets = [0, 96], sizes = [2, 32], strides = [1, 1]} : vector<2x128xf32> to vector<2x32xf32>
    %442 = arith.mulf %439, %404 : vector<2x32xf32>
    %443 = arith.mulf %438, %440 : vector<2x32xf32>
    %444 = arith.addf %442, %443 : vector<2x32xf32>
    %445 = math.tanh %444 : vector<2x32xf32>
    %446 = arith.mulf %441, %445 : vector<2x32xf32>
    %cst_98 = arith.constant dense<0.000000e+00> : vector<2x128xf32>
    %447 = tpu.matmul %446, %19, %cst_98 {dimension_numbers = #tpu.dot_dimension_numbers<[1], [0], [0], [1], [0, 0, 1, 1], [], []>} : vector<2x32xf32>, vector<32x128xf32>, vector<2x128xf32> -> vector<2x128xf32>
    %cst_99 = arith.constant dense<0.000000e+00> : vector<2x128xf32>
    %448 = tpu.matmul %426, %13, %cst_99 {dimension_numbers = #tpu.dot_dimension_numbers<[1], [0], [0], [1], [0, 0, 1, 1], [], []>} : vector<2x32xf32>, vector<32x128xf32>, vector<2x128xf32> -> vector<2x128xf32>
    %449 = vector.broadcast %17 : vector<1x128xf32> to vector<2x128xf32>
    %450 = arith.addf %448, %449 : vector<2x128xf32>
    %451 = arith.addf %447, %450 : vector<2x128xf32>
    %452 = arith.negf %451 : vector<2x128xf32>
    %453 = math.exp %452 : vector<2x128xf32>
    %cst_100 = arith.constant 1.000000e+00 : f32
    %454 = vector.broadcast %cst_100 : f32 to vector<2x128xf32>
    %455 = arith.addf %454, %453 : vector<2x128xf32>
    %456 = arith.divf %454, %455 : vector<2x128xf32>
    %457 = math.tanh %451 : vector<2x128xf32>
    %458 = vector.extract_strided_slice %456 {offsets = [0, 0], sizes = [2, 32], strides = [1, 1]} : vector<2x128xf32> to vector<2x32xf32>
    %459 = vector.extract_strided_slice %456 {offsets = [0, 32], sizes = [2, 32], strides = [1, 1]} : vector<2x128xf32> to vector<2x32xf32>
    %460 = vector.extract_strided_slice %457 {offsets = [0, 64], sizes = [2, 32], strides = [1, 1]} : vector<2x128xf32> to vector<2x32xf32>
    %461 = vector.extract_strided_slice %456 {offsets = [0, 96], sizes = [2, 32], strides = [1, 1]} : vector<2x128xf32> to vector<2x32xf32>
    %462 = arith.mulf %459, %424 : vector<2x32xf32>
    %463 = arith.mulf %458, %460 : vector<2x32xf32>
    %464 = arith.addf %462, %463 : vector<2x32xf32>
    %465 = math.tanh %464 : vector<2x32xf32>
    %466 = arith.mulf %461, %465 : vector<2x32xf32>
    %cst_101 = arith.constant dense<0.000000e+00> : vector<2x128xf32>
    %467 = tpu.matmul %466, %20, %cst_101 {dimension_numbers = #tpu.dot_dimension_numbers<[1], [0], [0], [1], [0, 0, 1, 1], [], []>} : vector<2x32xf32>, vector<32x128xf32>, vector<2x128xf32> -> vector<2x128xf32>
    %cst_102 = arith.constant dense<0.000000e+00> : vector<2x128xf32>
    %468 = tpu.matmul %446, %11, %cst_102 {dimension_numbers = #tpu.dot_dimension_numbers<[1], [0], [0], [1], [0, 0, 1, 1], [], []>} : vector<2x32xf32>, vector<32x128xf32>, vector<2x128xf32> -> vector<2x128xf32>
    %469 = vector.broadcast %15 : vector<1x128xf32> to vector<2x128xf32>
    %470 = arith.addf %468, %469 : vector<2x128xf32>
    %471 = arith.addf %467, %470 : vector<2x128xf32>
    %472 = arith.negf %471 : vector<2x128xf32>
    %473 = math.exp %472 : vector<2x128xf32>
    %cst_103 = arith.constant 1.000000e+00 : f32
    %474 = vector.broadcast %cst_103 : f32 to vector<2x128xf32>
    %475 = arith.addf %474, %473 : vector<2x128xf32>
    %476 = arith.divf %474, %475 : vector<2x128xf32>
    %477 = math.tanh %471 : vector<2x128xf32>
    %478 = vector.extract_strided_slice %476 {offsets = [0, 0], sizes = [2, 32], strides = [1, 1]} : vector<2x128xf32> to vector<2x32xf32>
    %479 = vector.extract_strided_slice %476 {offsets = [0, 32], sizes = [2, 32], strides = [1, 1]} : vector<2x128xf32> to vector<2x32xf32>
    %480 = vector.extract_strided_slice %477 {offsets = [0, 64], sizes = [2, 32], strides = [1, 1]} : vector<2x128xf32> to vector<2x32xf32>
    %481 = vector.extract_strided_slice %476 {offsets = [0, 96], sizes = [2, 32], strides = [1, 1]} : vector<2x128xf32> to vector<2x32xf32>
    %482 = arith.mulf %479, %444 : vector<2x32xf32>
    %483 = arith.mulf %478, %480 : vector<2x32xf32>
    %484 = arith.addf %482, %483 : vector<2x32xf32>
    %485 = math.tanh %484 : vector<2x32xf32>
    %486 = arith.mulf %481, %485 : vector<2x32xf32>
    %cst_104 = arith.constant dense<0.000000e+00> : vector<2x128xf32>
    %487 = tpu.matmul %486, %19, %cst_104 {dimension_numbers = #tpu.dot_dimension_numbers<[1], [0], [0], [1], [0, 0, 1, 1], [], []>} : vector<2x32xf32>, vector<32x128xf32>, vector<2x128xf32> -> vector<2x128xf32>
    %cst_105 = arith.constant dense<0.000000e+00> : vector<2x128xf32>
    %488 = tpu.matmul %466, %13, %cst_105 {dimension_numbers = #tpu.dot_dimension_numbers<[1], [0], [0], [1], [0, 0, 1, 1], [], []>} : vector<2x32xf32>, vector<32x128xf32>, vector<2x128xf32> -> vector<2x128xf32>
    %489 = vector.broadcast %17 : vector<1x128xf32> to vector<2x128xf32>
    %490 = arith.addf %488, %489 : vector<2x128xf32>
    %491 = arith.addf %487, %490 : vector<2x128xf32>
    %492 = arith.negf %491 : vector<2x128xf32>
    %493 = math.exp %492 : vector<2x128xf32>
    %cst_106 = arith.constant 1.000000e+00 : f32
    %494 = vector.broadcast %cst_106 : f32 to vector<2x128xf32>
    %495 = arith.addf %494, %493 : vector<2x128xf32>
    %496 = arith.divf %494, %495 : vector<2x128xf32>
    %497 = math.tanh %491 : vector<2x128xf32>
    %498 = vector.extract_strided_slice %496 {offsets = [0, 0], sizes = [2, 32], strides = [1, 1]} : vector<2x128xf32> to vector<2x32xf32>
    %499 = vector.extract_strided_slice %496 {offsets = [0, 32], sizes = [2, 32], strides = [1, 1]} : vector<2x128xf32> to vector<2x32xf32>
    %500 = vector.extract_strided_slice %497 {offsets = [0, 64], sizes = [2, 32], strides = [1, 1]} : vector<2x128xf32> to vector<2x32xf32>
    %501 = vector.extract_strided_slice %496 {offsets = [0, 96], sizes = [2, 32], strides = [1, 1]} : vector<2x128xf32> to vector<2x32xf32>
    %502 = arith.mulf %499, %464 : vector<2x32xf32>
    %503 = arith.mulf %498, %500 : vector<2x32xf32>
    %504 = arith.addf %502, %503 : vector<2x32xf32>
    %505 = math.tanh %504 : vector<2x32xf32>
    %506 = arith.mulf %501, %505 : vector<2x32xf32>
    %cst_107 = arith.constant dense<0.000000e+00> : vector<2x128xf32>
    %507 = tpu.matmul %506, %20, %cst_107 {dimension_numbers = #tpu.dot_dimension_numbers<[1], [0], [0], [1], [0, 0, 1, 1], [], []>} : vector<2x32xf32>, vector<32x128xf32>, vector<2x128xf32> -> vector<2x128xf32>
    %cst_108 = arith.constant dense<0.000000e+00> : vector<2x128xf32>
    %508 = tpu.matmul %486, %11, %cst_108 {dimension_numbers = #tpu.dot_dimension_numbers<[1], [0], [0], [1], [0, 0, 1, 1], [], []>} : vector<2x32xf32>, vector<32x128xf32>, vector<2x128xf32> -> vector<2x128xf32>
    %509 = vector.broadcast %15 : vector<1x128xf32> to vector<2x128xf32>
    %510 = arith.addf %508, %509 : vector<2x128xf32>
    %511 = arith.addf %507, %510 : vector<2x128xf32>
    %512 = arith.negf %511 : vector<2x128xf32>
    %513 = math.exp %512 : vector<2x128xf32>
    %cst_109 = arith.constant 1.000000e+00 : f32
    %514 = vector.broadcast %cst_109 : f32 to vector<2x128xf32>
    %515 = arith.addf %514, %513 : vector<2x128xf32>
    %516 = arith.divf %514, %515 : vector<2x128xf32>
    %517 = math.tanh %511 : vector<2x128xf32>
    %518 = vector.extract_strided_slice %516 {offsets = [0, 0], sizes = [2, 32], strides = [1, 1]} : vector<2x128xf32> to vector<2x32xf32>
    %519 = vector.extract_strided_slice %516 {offsets = [0, 32], sizes = [2, 32], strides = [1, 1]} : vector<2x128xf32> to vector<2x32xf32>
    %520 = vector.extract_strided_slice %517 {offsets = [0, 64], sizes = [2, 32], strides = [1, 1]} : vector<2x128xf32> to vector<2x32xf32>
    %521 = vector.extract_strided_slice %516 {offsets = [0, 96], sizes = [2, 32], strides = [1, 1]} : vector<2x128xf32> to vector<2x32xf32>
    %522 = arith.mulf %519, %484 : vector<2x32xf32>
    %523 = arith.mulf %518, %520 : vector<2x32xf32>
    %524 = arith.addf %522, %523 : vector<2x32xf32>
    %525 = math.tanh %524 : vector<2x32xf32>
    %526 = arith.mulf %521, %525 : vector<2x32xf32>
    %cst_110 = arith.constant dense<0.000000e+00> : vector<2x128xf32>
    %527 = tpu.matmul %526, %19, %cst_110 {dimension_numbers = #tpu.dot_dimension_numbers<[1], [0], [0], [1], [0, 0, 1, 1], [], []>} : vector<2x32xf32>, vector<32x128xf32>, vector<2x128xf32> -> vector<2x128xf32>
    %cst_111 = arith.constant dense<0.000000e+00> : vector<2x128xf32>
    %528 = tpu.matmul %506, %13, %cst_111 {dimension_numbers = #tpu.dot_dimension_numbers<[1], [0], [0], [1], [0, 0, 1, 1], [], []>} : vector<2x32xf32>, vector<32x128xf32>, vector<2x128xf32> -> vector<2x128xf32>
    %529 = vector.broadcast %17 : vector<1x128xf32> to vector<2x128xf32>
    %530 = arith.addf %528, %529 : vector<2x128xf32>
    %531 = arith.addf %527, %530 : vector<2x128xf32>
    %532 = arith.negf %531 : vector<2x128xf32>
    %533 = math.exp %532 : vector<2x128xf32>
    %cst_112 = arith.constant 1.000000e+00 : f32
    %534 = vector.broadcast %cst_112 : f32 to vector<2x128xf32>
    %535 = arith.addf %534, %533 : vector<2x128xf32>
    %536 = arith.divf %534, %535 : vector<2x128xf32>
    %537 = math.tanh %531 : vector<2x128xf32>
    %538 = vector.extract_strided_slice %536 {offsets = [0, 0], sizes = [2, 32], strides = [1, 1]} : vector<2x128xf32> to vector<2x32xf32>
    %539 = vector.extract_strided_slice %536 {offsets = [0, 32], sizes = [2, 32], strides = [1, 1]} : vector<2x128xf32> to vector<2x32xf32>
    %540 = vector.extract_strided_slice %537 {offsets = [0, 64], sizes = [2, 32], strides = [1, 1]} : vector<2x128xf32> to vector<2x32xf32>
    %541 = vector.extract_strided_slice %536 {offsets = [0, 96], sizes = [2, 32], strides = [1, 1]} : vector<2x128xf32> to vector<2x32xf32>
    %542 = arith.mulf %539, %504 : vector<2x32xf32>
    %543 = arith.mulf %538, %540 : vector<2x32xf32>
    %544 = arith.addf %542, %543 : vector<2x32xf32>
    %545 = math.tanh %544 : vector<2x32xf32>
    %546 = arith.mulf %541, %545 : vector<2x32xf32>
    %cst_113 = arith.constant dense<0.000000e+00> : vector<2x128xf32>
    %547 = tpu.matmul %546, %20, %cst_113 {dimension_numbers = #tpu.dot_dimension_numbers<[1], [0], [0], [1], [0, 0, 1, 1], [], []>} : vector<2x32xf32>, vector<32x128xf32>, vector<2x128xf32> -> vector<2x128xf32>
    %cst_114 = arith.constant dense<0.000000e+00> : vector<2x128xf32>
    %548 = tpu.matmul %526, %11, %cst_114 {dimension_numbers = #tpu.dot_dimension_numbers<[1], [0], [0], [1], [0, 0, 1, 1], [], []>} : vector<2x32xf32>, vector<32x128xf32>, vector<2x128xf32> -> vector<2x128xf32>
    %549 = vector.broadcast %15 : vector<1x128xf32> to vector<2x128xf32>
    %550 = arith.addf %548, %549 : vector<2x128xf32>
    %551 = arith.addf %547, %550 : vector<2x128xf32>
    %552 = arith.negf %551 : vector<2x128xf32>
    %553 = math.exp %552 : vector<2x128xf32>
    %cst_115 = arith.constant 1.000000e+00 : f32
    %554 = vector.broadcast %cst_115 : f32 to vector<2x128xf32>
    %555 = arith.addf %554, %553 : vector<2x128xf32>
    %556 = arith.divf %554, %555 : vector<2x128xf32>
    %557 = math.tanh %551 : vector<2x128xf32>
    %558 = vector.extract_strided_slice %556 {offsets = [0, 0], sizes = [2, 32], strides = [1, 1]} : vector<2x128xf32> to vector<2x32xf32>
    %559 = vector.extract_strided_slice %556 {offsets = [0, 32], sizes = [2, 32], strides = [1, 1]} : vector<2x128xf32> to vector<2x32xf32>
    %560 = vector.extract_strided_slice %557 {offsets = [0, 64], sizes = [2, 32], strides = [1, 1]} : vector<2x128xf32> to vector<2x32xf32>
    %561 = vector.extract_strided_slice %556 {offsets = [0, 96], sizes = [2, 32], strides = [1, 1]} : vector<2x128xf32> to vector<2x32xf32>
    %562 = arith.mulf %559, %524 : vector<2x32xf32>
    %563 = arith.mulf %558, %560 : vector<2x32xf32>
    %564 = arith.addf %562, %563 : vector<2x32xf32>
    %565 = math.tanh %564 : vector<2x32xf32>
    %566 = arith.mulf %561, %565 : vector<2x32xf32>
    %cst_116 = arith.constant dense<0.000000e+00> : vector<2x128xf32>
    %567 = tpu.matmul %566, %19, %cst_116 {dimension_numbers = #tpu.dot_dimension_numbers<[1], [0], [0], [1], [0, 0, 1, 1], [], []>} : vector<2x32xf32>, vector<32x128xf32>, vector<2x128xf32> -> vector<2x128xf32>
    %cst_117 = arith.constant dense<0.000000e+00> : vector<2x128xf32>
    %568 = tpu.matmul %546, %13, %cst_117 {dimension_numbers = #tpu.dot_dimension_numbers<[1], [0], [0], [1], [0, 0, 1, 1], [], []>} : vector<2x32xf32>, vector<32x128xf32>, vector<2x128xf32> -> vector<2x128xf32>
    %569 = vector.broadcast %17 : vector<1x128xf32> to vector<2x128xf32>
    %570 = arith.addf %568, %569 : vector<2x128xf32>
    %571 = arith.addf %567, %570 : vector<2x128xf32>
    %572 = arith.negf %571 : vector<2x128xf32>
    %573 = math.exp %572 : vector<2x128xf32>
    %cst_118 = arith.constant 1.000000e+00 : f32
    %574 = vector.broadcast %cst_118 : f32 to vector<2x128xf32>
    %575 = arith.addf %574, %573 : vector<2x128xf32>
    %576 = arith.divf %574, %575 : vector<2x128xf32>
    %577 = math.tanh %571 : vector<2x128xf32>
    %578 = vector.extract_strided_slice %576 {offsets = [0, 0], sizes = [2, 32], strides = [1, 1]} : vector<2x128xf32> to vector<2x32xf32>
    %579 = vector.extract_strided_slice %576 {offsets = [0, 32], sizes = [2, 32], strides = [1, 1]} : vector<2x128xf32> to vector<2x32xf32>
    %580 = vector.extract_strided_slice %577 {offsets = [0, 64], sizes = [2, 32], strides = [1, 1]} : vector<2x128xf32> to vector<2x32xf32>
    %581 = vector.extract_strided_slice %576 {offsets = [0, 96], sizes = [2, 32], strides = [1, 1]} : vector<2x128xf32> to vector<2x32xf32>
    %582 = arith.mulf %579, %544 : vector<2x32xf32>
    %583 = arith.mulf %578, %580 : vector<2x32xf32>
    %584 = arith.addf %582, %583 : vector<2x32xf32>
    %585 = math.tanh %584 : vector<2x32xf32>
    %586 = arith.mulf %581, %585 : vector<2x32xf32>
    %cst_119 = arith.constant dense<0.000000e+00> : vector<2x128xf32>
    %587 = tpu.matmul %586, %20, %cst_119 {dimension_numbers = #tpu.dot_dimension_numbers<[1], [0], [0], [1], [0, 0, 1, 1], [], []>} : vector<2x32xf32>, vector<32x128xf32>, vector<2x128xf32> -> vector<2x128xf32>
    %cst_120 = arith.constant dense<0.000000e+00> : vector<2x128xf32>
    %588 = tpu.matmul %566, %11, %cst_120 {dimension_numbers = #tpu.dot_dimension_numbers<[1], [0], [0], [1], [0, 0, 1, 1], [], []>} : vector<2x32xf32>, vector<32x128xf32>, vector<2x128xf32> -> vector<2x128xf32>
    %589 = vector.broadcast %15 : vector<1x128xf32> to vector<2x128xf32>
    %590 = arith.addf %588, %589 : vector<2x128xf32>
    %591 = arith.addf %587, %590 : vector<2x128xf32>
    %592 = arith.negf %591 : vector<2x128xf32>
    %593 = math.exp %592 : vector<2x128xf32>
    %cst_121 = arith.constant 1.000000e+00 : f32
    %594 = vector.broadcast %cst_121 : f32 to vector<2x128xf32>
    %595 = arith.addf %594, %593 : vector<2x128xf32>
    %596 = arith.divf %594, %595 : vector<2x128xf32>
    %597 = math.tanh %591 : vector<2x128xf32>
    %598 = vector.extract_strided_slice %596 {offsets = [0, 0], sizes = [2, 32], strides = [1, 1]} : vector<2x128xf32> to vector<2x32xf32>
    %599 = vector.extract_strided_slice %596 {offsets = [0, 32], sizes = [2, 32], strides = [1, 1]} : vector<2x128xf32> to vector<2x32xf32>
    %600 = vector.extract_strided_slice %597 {offsets = [0, 64], sizes = [2, 32], strides = [1, 1]} : vector<2x128xf32> to vector<2x32xf32>
    %601 = vector.extract_strided_slice %596 {offsets = [0, 96], sizes = [2, 32], strides = [1, 1]} : vector<2x128xf32> to vector<2x32xf32>
    %602 = arith.mulf %599, %564 : vector<2x32xf32>
    %603 = arith.mulf %598, %600 : vector<2x32xf32>
    %604 = arith.addf %602, %603 : vector<2x32xf32>
    %605 = math.tanh %604 : vector<2x32xf32>
    %606 = arith.mulf %601, %605 : vector<2x32xf32>
    %cst_122 = arith.constant dense<0.000000e+00> : vector<2x128xf32>
    %607 = tpu.matmul %606, %19, %cst_122 {dimension_numbers = #tpu.dot_dimension_numbers<[1], [0], [0], [1], [0, 0, 1, 1], [], []>} : vector<2x32xf32>, vector<32x128xf32>, vector<2x128xf32> -> vector<2x128xf32>
    %cst_123 = arith.constant dense<0.000000e+00> : vector<2x128xf32>
    %608 = tpu.matmul %586, %13, %cst_123 {dimension_numbers = #tpu.dot_dimension_numbers<[1], [0], [0], [1], [0, 0, 1, 1], [], []>} : vector<2x32xf32>, vector<32x128xf32>, vector<2x128xf32> -> vector<2x128xf32>
    %609 = vector.broadcast %17 : vector<1x128xf32> to vector<2x128xf32>
    %610 = arith.addf %608, %609 : vector<2x128xf32>
    %611 = arith.addf %607, %610 : vector<2x128xf32>
    %612 = arith.negf %611 : vector<2x128xf32>
    %613 = math.exp %612 : vector<2x128xf32>
    %cst_124 = arith.constant 1.000000e+00 : f32
    %614 = vector.broadcast %cst_124 : f32 to vector<2x128xf32>
    %615 = arith.addf %614, %613 : vector<2x128xf32>
    %616 = arith.divf %614, %615 : vector<2x128xf32>
    %617 = math.tanh %611 : vector<2x128xf32>
    %618 = vector.extract_strided_slice %616 {offsets = [0, 0], sizes = [2, 32], strides = [1, 1]} : vector<2x128xf32> to vector<2x32xf32>
    %619 = vector.extract_strided_slice %616 {offsets = [0, 32], sizes = [2, 32], strides = [1, 1]} : vector<2x128xf32> to vector<2x32xf32>
    %620 = vector.extract_strided_slice %617 {offsets = [0, 64], sizes = [2, 32], strides = [1, 1]} : vector<2x128xf32> to vector<2x32xf32>
    %621 = vector.extract_strided_slice %616 {offsets = [0, 96], sizes = [2, 32], strides = [1, 1]} : vector<2x128xf32> to vector<2x32xf32>
    %622 = arith.mulf %619, %584 : vector<2x32xf32>
    %623 = arith.mulf %618, %620 : vector<2x32xf32>
    %624 = arith.addf %622, %623 : vector<2x32xf32>
    %625 = math.tanh %624 : vector<2x32xf32>
    %626 = arith.mulf %621, %625 : vector<2x32xf32>
    %cst_125 = arith.constant dense<0.000000e+00> : vector<2x128xf32>
    %627 = tpu.matmul %626, %20, %cst_125 {dimension_numbers = #tpu.dot_dimension_numbers<[1], [0], [0], [1], [0, 0, 1, 1], [], []>} : vector<2x32xf32>, vector<32x128xf32>, vector<2x128xf32> -> vector<2x128xf32>
    %cst_126 = arith.constant dense<0.000000e+00> : vector<2x128xf32>
    %628 = tpu.matmul %606, %11, %cst_126 {dimension_numbers = #tpu.dot_dimension_numbers<[1], [0], [0], [1], [0, 0, 1, 1], [], []>} : vector<2x32xf32>, vector<32x128xf32>, vector<2x128xf32> -> vector<2x128xf32>
    %629 = vector.broadcast %15 : vector<1x128xf32> to vector<2x128xf32>
    %630 = arith.addf %628, %629 : vector<2x128xf32>
    %631 = arith.addf %627, %630 : vector<2x128xf32>
    %632 = arith.negf %631 : vector<2x128xf32>
    %633 = math.exp %632 : vector<2x128xf32>
    %cst_127 = arith.constant 1.000000e+00 : f32
    %634 = vector.broadcast %cst_127 : f32 to vector<2x128xf32>
    %635 = arith.addf %634, %633 : vector<2x128xf32>
    %636 = arith.divf %634, %635 : vector<2x128xf32>
    %637 = math.tanh %631 : vector<2x128xf32>
    %638 = vector.extract_strided_slice %636 {offsets = [0, 0], sizes = [2, 32], strides = [1, 1]} : vector<2x128xf32> to vector<2x32xf32>
    %639 = vector.extract_strided_slice %636 {offsets = [0, 32], sizes = [2, 32], strides = [1, 1]} : vector<2x128xf32> to vector<2x32xf32>
    %640 = vector.extract_strided_slice %637 {offsets = [0, 64], sizes = [2, 32], strides = [1, 1]} : vector<2x128xf32> to vector<2x32xf32>
    %641 = vector.extract_strided_slice %636 {offsets = [0, 96], sizes = [2, 32], strides = [1, 1]} : vector<2x128xf32> to vector<2x32xf32>
    %642 = arith.mulf %639, %604 : vector<2x32xf32>
    %643 = arith.mulf %638, %640 : vector<2x32xf32>
    %644 = arith.addf %642, %643 : vector<2x32xf32>
    %645 = math.tanh %644 : vector<2x32xf32>
    %646 = arith.mulf %641, %645 : vector<2x32xf32>
    %cst_128 = arith.constant dense<0.000000e+00> : vector<2x128xf32>
    %647 = tpu.matmul %646, %19, %cst_128 {dimension_numbers = #tpu.dot_dimension_numbers<[1], [0], [0], [1], [0, 0, 1, 1], [], []>} : vector<2x32xf32>, vector<32x128xf32>, vector<2x128xf32> -> vector<2x128xf32>
    %cst_129 = arith.constant dense<0.000000e+00> : vector<2x128xf32>
    %648 = tpu.matmul %626, %13, %cst_129 {dimension_numbers = #tpu.dot_dimension_numbers<[1], [0], [0], [1], [0, 0, 1, 1], [], []>} : vector<2x32xf32>, vector<32x128xf32>, vector<2x128xf32> -> vector<2x128xf32>
    %649 = vector.broadcast %17 : vector<1x128xf32> to vector<2x128xf32>
    %650 = arith.addf %648, %649 : vector<2x128xf32>
    %651 = arith.addf %647, %650 : vector<2x128xf32>
    %652 = arith.negf %651 : vector<2x128xf32>
    %653 = math.exp %652 : vector<2x128xf32>
    %cst_130 = arith.constant 1.000000e+00 : f32
    %654 = vector.broadcast %cst_130 : f32 to vector<2x128xf32>
    %655 = arith.addf %654, %653 : vector<2x128xf32>
    %656 = arith.divf %654, %655 : vector<2x128xf32>
    %657 = math.tanh %651 : vector<2x128xf32>
    %658 = vector.extract_strided_slice %656 {offsets = [0, 0], sizes = [2, 32], strides = [1, 1]} : vector<2x128xf32> to vector<2x32xf32>
    %659 = vector.extract_strided_slice %656 {offsets = [0, 32], sizes = [2, 32], strides = [1, 1]} : vector<2x128xf32> to vector<2x32xf32>
    %660 = vector.extract_strided_slice %657 {offsets = [0, 64], sizes = [2, 32], strides = [1, 1]} : vector<2x128xf32> to vector<2x32xf32>
    %661 = vector.extract_strided_slice %656 {offsets = [0, 96], sizes = [2, 32], strides = [1, 1]} : vector<2x128xf32> to vector<2x32xf32>
    %662 = arith.mulf %659, %624 : vector<2x32xf32>
    %663 = arith.mulf %658, %660 : vector<2x32xf32>
    %664 = arith.addf %662, %663 : vector<2x32xf32>
    %665 = math.tanh %664 : vector<2x32xf32>
    %666 = arith.mulf %661, %665 : vector<2x32xf32>
    %667 = vector.shape_cast %386 : vector<2x32xf32> to vector<1x2x32xf32>
    %668 = vector.shape_cast %426 : vector<2x32xf32> to vector<1x2x32xf32>
    %669 = vector.shape_cast %466 : vector<2x32xf32> to vector<1x2x32xf32>
    %670 = vector.shape_cast %506 : vector<2x32xf32> to vector<1x2x32xf32>
    %671 = vector.shape_cast %546 : vector<2x32xf32> to vector<1x2x32xf32>
    %672 = vector.shape_cast %586 : vector<2x32xf32> to vector<1x2x32xf32>
    %673 = vector.shape_cast %626 : vector<2x32xf32> to vector<1x2x32xf32>
    %674 = vector.shape_cast %666 : vector<2x32xf32> to vector<1x2x32xf32>
    %675 = tpu.concatenate %667, %668, %669, %670, %671, %672, %673, %674 in 0 : vector<1x2x32xf32>, vector<1x2x32xf32>, vector<1x2x32xf32>, vector<1x2x32xf32>, vector<1x2x32xf32>, vector<1x2x32xf32>, vector<1x2x32xf32>, vector<1x2x32xf32> -> vector<8x2x32xf32>
    %676 = vector.shape_cast %22 : vector<1x32xf32> to vector<1x1x32xf32>
    %677 = vector.broadcast %676 : vector<1x1x32xf32> to vector<8x2x32xf32>
    %678 = arith.mulf %675, %677 : vector<8x2x32xf32>
    %cst_131 = arith.constant dense<0.000000e+00> : vector<8x2xf32>
    %679 = vector.multi_reduction <add>, %678, %cst_131 [2] : vector<8x2x32xf32> to vector<8x2xf32>
    %680 = vector.broadcast %23 : vector<1x1xf32> to vector<8x2xf32>
    %681 = arith.addf %679, %680 : vector<8x2xf32>
    %c0_132 = arith.constant 0 : index
    %c0_133 = arith.constant 0 : index
    %682 = vector.load %arg12[%c0_132, %c0_133] : memref<8x2xf32, #tpu.memory_space<vmem>>, vector<8x2xf32>
    tpu.vector_store %arg12[%c0_132, %c0_133], %681 {strides = array<i32>} : memref<8x2xf32, #tpu.memory_space<vmem>>, vector<8x2xf32>,
    return
  }
}

</mosaic_0001>

<llo_original>
// kernel: _seq2seq_device.1
$region0: #{_seq2seq_device.1}
  #allocation0 [shape = 'u32[]', space=smem, size = 0x4, offset = 0x4, fixed_abs, tag = 'smem constant byte address 0x4 - core index']
  #allocation1 [shape = 'u32[144,128]{1,0:T(1,128)}', space=vmem, size = 0x12000, scoped, tag = 'internal scratch']
  #allocation2 [shape = 'f32[1,1]{1,0:T(1,128)S(1)}', space=vmem, size = 0x200, scoped, tag = 'scoped memory for _seq2seq_device.1']
  %s0 = inlined_call_operand.vmem [shape: f32[8,2,1], index: 0, kind: input, shape index: {}]
  %s1 = inlined_call_operand.hbm [shape: f32[1,128], index: 1, kind: input, shape index: {}]
  %s2 = inlined_call_operand.vmem [shape: f32[1,32,128], index: 2, kind: input, shape index: {}]
  %s3 = inlined_call_operand.hbm [shape: f32[2,32,128], index: 3, kind: input, shape index: {}]
  %s4 = inlined_call_operand.vmem [shape: f32[2,1,128], index: 4, kind: input, shape index: {}]
  %s5 = inlined_call_operand.hbm [shape: f32[32,128], index: 5, kind: input, shape index: {}]
  %s6 = inlined_call_operand.hbm [shape: f32[1,32,128], index: 6, kind: input, shape index: {}]
  %s7 = inlined_call_operand.hbm [shape: f32[2,32,128], index: 7, kind: input, shape index: {}]
  %s8 = inlined_call_operand.vmem [shape: f32[2,1,128], index: 8, kind: input, shape index: {}]
  %s9 = inlined_call_operand.vmem [shape: f32[1,128], index: 9, kind: input, shape index: {}]
  %s10 = inlined_call_operand.vmem [shape: f32[1,32], index: 10, kind: input, shape index: {}]
  %s11 = inlined_call_operand.<no memory space> [shape: f32[1,1], index: 11, kind: input, shape index: {}]
  %s12 = inlined_call_operand.vmem [shape: f32[8,2], index: 12, kind: output, shape index: {}]
  %s13 = sld [smem:[#allocation0]]
  $region78: #{_seq2seq_device.1} parent=0
    _
  %s15 = ssub.s32 1, %s13
  %s16 = scalar_select 0, %s15, %s13
  %v17 = vstv %s11
  %18 = vst [vmem:[#allocation2] sm:$0x1] %v17
  $region1: #{_seq2seq_device.1} parent=0
    #allocation3 [shape = 'u8[512]{0}', space=vmem, size = 0x400, scoped, tag = 'input window, operand 1, single buffered']
    #allocation4 [shape = 's32[1]{0}', space=sflag, size = 0x4, scoped, tag = 'scoped memory for _seq2seq_device.1']
    #allocation5 [shape = 'u8[32768]{0}', space=vmem, size = 0x8000, scoped, tag = 'input window, operand 3, single buffered']
    #allocation6 [shape = 's32[1]{0}', space=sflag, size = 0x4, scoped, tag = 'scoped memory for _seq2seq_device.1']
    #allocation7 [shape = 'u8[16384]{0}', space=vmem, size = 0x4000, scoped, tag = 'input window, operand 5, single buffered']
    #allocation8 [shape = 'u8[16384]{0}', space=vmem, size = 0x4000, scoped, tag = 'input window, operand 6, single buffered']
    #allocation9 [shape = 's32[1]{0}', space=sflag, size = 0x4, scoped, tag = 'scoped memory for _seq2seq_device.1']
    #allocation10 [shape = 'u8[32768]{0}', space=vmem, size = 0x8000, scoped, tag = 'input window, operand 7, single buffered']
    %19 = vsyncpa [#allocation4], 0
    %20 = vsyncpa [#allocation6], 0
    %21 = vsyncpa [#allocation9], 0
    // Predicated region
    $region2: #{_seq2seq_device.1} parent=1 // pred_check
      _
    $region3: #{_seq2seq_device.1} parent=1 // pred_check_branch
      %23 = sbr.rel (0) target = $region5
    $region4: #{_seq2seq_device.1} parent=1 // pred_region
      _
    $region5: #{_seq2seq_device.1} parent=1 // pred_fallthru
      _
    // Predicated region
    $region6: #{_seq2seq_device.1} parent=1 // pred_check
      _
    $region7: #{_seq2seq_device.1} parent=1 // pred_check_branch
      %25 = sbr.rel (0) target = $region9
    $region8: #{_seq2seq_device.1} parent=1 // pred_region
      %s27 = ssub.s32 16, 16
      %28 = vsyncadd [#allocation4], %s27
      %s30 = sshll.u32 [#allocation3], 4
      %s31 = int_to_ptr.vmem [resolvable:$true] %s30
      %33 = dma.hbm_to_vmem [thread:$0]  %s1, 16, %s31, [#allocation4]
    $region9: #{_seq2seq_device.1} parent=1 // pred_fallthru
      _
    // Predicated region
    $region10: #{_seq2seq_device.1} parent=1 // pred_check
      _
    $region11: #{_seq2seq_device.1} parent=1 // pred_check_branch
      %35 = sbr.rel (0) target = $region13
    $region12: #{_seq2seq_device.1} parent=1 // pred_region
      _
    $region13: #{_seq2seq_device.1} parent=1 // pred_fallthru
      _
    // Predicated region
    $region14: #{_seq2seq_device.1} parent=1 // pred_check
      _
    $region15: #{_seq2seq_device.1} parent=1 // pred_check_branch
      %37 = sbr.rel (0) target = $region17
    $region16: #{_seq2seq_device.1} parent=1 // pred_region
      %s39 = ssub.s32 1024, 1024
      %40 = vsyncadd [#allocation6], %s39
      %s41 = sshll.u32 [#allocation5], 4
      %s42 = int_to_ptr.vmem [resolvable:$true] %s41
      %47 = dma.hbm_to_vmem [thread:$0]  %s3, 1024, %s42, [#allocation6], 128, 128, 8
    $region17: #{_seq2seq_device.1} parent=1 // pred_fallthru
      _
    // Predicated region
    $region18: #{_seq2seq_device.1} parent=1 // pred_check
      _
    $region19: #{_seq2seq_device.1} parent=1 // pred_check_branch
      %49 = sbr.rel (0) target = $region21
    $region20: #{_seq2seq_device.1} parent=1 // pred_region
      _
    $region21: #{_seq2seq_device.1} parent=1 // pred_fallthru
      _
    // Predicated region
    $region22: #{_seq2seq_device.1} parent=1 // pred_check
      _
    $region23: #{_seq2seq_device.1} parent=1 // pred_check_branch
      %51 = sbr.rel (0) target = $region25
    $region24: #{_seq2seq_device.1} parent=1 // pred_region
      %s53 = ssub.s32 512, 512
      %54 = vsyncadd [#allocation6], %s53
      %s55 = sshll.u32 [#allocation7], 4
      %s56 = int_to_ptr.vmem [resolvable:$true] %s55
      %61 = dma.hbm_to_vmem [thread:$0]  %s5, 512, %s56, [#allocation6], 128, 128, 8
    $region25: #{_seq2seq_device.1} parent=1 // pred_fallthru
      _
    // Predicated region
    $region26: #{_seq2seq_device.1} parent=1 // pred_check
      _
    $region27: #{_seq2seq_device.1} parent=1 // pred_check_branch
      %63 = sbr.rel (0) target = $region29
    $region28: #{_seq2seq_device.1} parent=1 // pred_region
      %s65 = ssub.s32 512, 512
      %66 = vsyncadd [#allocation9], %s65
      %s67 = sshll.u32 [#allocation8], 4
      %s68 = int_to_ptr.vmem [resolvable:$true] %s67
      %73 = dma.hbm_to_vmem [thread:$0]  %s6, 512, %s68, [#allocation9], 128, 128, 8
    $region29: #{_seq2seq_device.1} parent=1 // pred_fallthru
      _
    // Predicated region
    $region30: #{_seq2seq_device.1} parent=1 // pred_check
      _
    $region31: #{_seq2seq_device.1} parent=1 // pred_check_branch
      %75 = sbr.rel (0) target = $region33
    $region32: #{_seq2seq_device.1} parent=1 // pred_region
      %s77 = ssub.s32 1024, 1024
      %78 = vsyncadd [#allocation9], %s77
      %s79 = sshll.u32 [#allocation10], 4
      %s80 = int_to_ptr.vmem [resolvable:$true] %s79
      %85 = dma.hbm_to_vmem [thread:$0]  %s7, 1024, %s80, [#allocation9], 128, 128, 8
    $region33: #{_seq2seq_device.1} parent=1 // pred_fallthru
      _
    // Predicated region
    $region34: #{_seq2seq_device.1} parent=1 // pred_check
      _
    $region35: #{_seq2seq_device.1} parent=1 // pred_check_branch
      %87 = sbr.rel (0) target = $region37
    $region36: #{_seq2seq_device.1} parent=1 // pred_region
      _
    $region37: #{_seq2seq_device.1} parent=1 // pred_fallthru
      _
    // Predicated region
    $region38: #{_seq2seq_device.1} parent=1 // pred_check
      _
    $region39: #{_seq2seq_device.1} parent=1 // pred_check_branch
      %89 = sbr.rel (0) target = $region41
    $region40: #{_seq2seq_device.1} parent=1 // pred_region
      _
    $region41: #{_seq2seq_device.1} parent=1 // pred_fallthru
      _
    // Predicated region
    $region42: #{_seq2seq_device.1} parent=1 // pred_check
      _
    $region43: #{_seq2seq_device.1} parent=1 // pred_check_branch
      %91 = sbr.rel (0) target = $region45
    $region44: #{_seq2seq_device.1} parent=1 // pred_region
      _
    $region45: #{_seq2seq_device.1} parent=1 // pred_fallthru
      _
    // Predicated region
    $region46: #{_seq2seq_device.1} parent=1 // pred_check
      _
    $region47: #{_seq2seq_device.1} parent=1 // pred_check_branch
      %93 = sbr.rel (0) target = $region49
    $region48: #{_seq2seq_device.1} parent=1 // pred_region
      _
    $region49: #{_seq2seq_device.1} parent=1 // pred_fallthru
      _
    // Predicated region
    $region50: #{_seq2seq_device.1} parent=1 // pred_check
      _
    $region51: #{_seq2seq_device.1} parent=1 // pred_check_branch
      %95 = sbr.rel (0) target = $region53
    $region52: #{_seq2seq_device.1} parent=1 // pred_region
      %96 = dma.done [#allocation4], 16
    $region53: #{_seq2seq_device.1} parent=1 // pred_fallthru
      _
    // Predicated region
    $region54: #{_seq2seq_device.1} parent=1 // pred_check
      _
    $region55: #{_seq2seq_device.1} parent=1 // pred_check_branch
      %98 = sbr.rel (0) target = $region57
    $region56: #{_seq2seq_device.1} parent=1 // pred_region
      %99 = dma.done [#allocation6], 1024
    $region57: #{_seq2seq_device.1} parent=1 // pred_fallthru
      _
    // Predicated region
    $region58: #{_seq2seq_device.1} parent=1 // pred_check
      _
    $region59: #{_seq2seq_device.1} parent=1 // pred_check_branch
      %101 = sbr.rel (0) target = $region61
    $region60: #{_seq2seq_device.1} parent=1 // pred_region
      %102 = dma.done [#allocation6], 512
    $region61: #{_seq2seq_device.1} parent=1 // pred_fallthru
      _
    // Predicated region
    $region62: #{_seq2seq_device.1} parent=1 // pred_check
      _
    $region63: #{_seq2seq_device.1} parent=1 // pred_check_branch
      %104 = sbr.rel (0) target = $region65
    $region64: #{_seq2seq_device.1} parent=1 // pred_region
      %105 = dma.done [#allocation9], 512
    $region65: #{_seq2seq_device.1} parent=1 // pred_fallthru
      _
    // Predicated region
    $region66: #{_seq2seq_device.1} parent=1 // pred_check
      _
    $region67: #{_seq2seq_device.1} parent=1 // pred_check_branch
      %107 = sbr.rel (0) target = $region69
    $region68: #{_seq2seq_device.1} parent=1 // pred_region
      %108 = dma.done [#allocation9], 1024
    $region69: #{_seq2seq_device.1} parent=1 // pred_fallthru
      _
    %v109 = vld [vmem:[#allocation5] sm:$0xff]
    %v110 = vld [vmem:[#allocation5 + $0x8] sm:$0xff]
    %v111 = vld [vmem:[#allocation5 + $0x10] sm:$0xff]
    %v112 = vld [vmem:[#allocation5 + $0x18] sm:$0xff]
    %s113 = scalar_lea.vmem [#allocation5], 32
    %v114 = vld [vmem:[%s113] sm:$0xff]
    %v115 = vld [vmem:[%s113 + $0x8] sm:$0xff]
    %v116 = vld [vmem:[%s113 + $0x10] sm:$0xff]
    %v117 = vld [vmem:[%s113 + $0x18] sm:$0xff]
    %v118 = vld [vmem:[%s4] sm:$0x1]
    %s119 = scalar_lea.vmem %s4, 1
    %v120 = vld [vmem:[%s119] sm:$0x1]
    %v121 = vld [vmem:[%s2] sm:$0xff]
    %v122 = vld [vmem:[%s2 + $0x8] sm:$0xff]
    %v123 = vld [vmem:[%s2 + $0x10] sm:$0xff]
    %v124 = vld [vmem:[%s2 + $0x18] sm:$0xff]
    %v125 = vld [vmem:[#allocation10] sm:$0xff]
    %v126 = vld [vmem:[#allocation10 + $0x8] sm:$0xff]
    %v127 = vld [vmem:[#allocation10 + $0x10] sm:$0xff]
    %v128 = vld [vmem:[#allocation10 + $0x18] sm:$0xff]
    %s129 = scalar_lea.vmem [#allocation10], 32
    %v130 = vld [vmem:[%s129] sm:$0xff]
    %v131 = vld [vmem:[%s129 + $0x8] sm:$0xff]
    %v132 = vld [vmem:[%s129 + $0x10] sm:$0xff]
    %v133 = vld [vmem:[%s129 + $0x18] sm:$0xff]
    %v134 = vld [vmem:[%s8] sm:$0x1]
    %s135 = scalar_lea.vmem %s8, 1
    %v136 = vld [vmem:[%s135] sm:$0x1]
    %v137 = vld [vmem:[#allocation8] sm:$0xff]
    %v138 = vld [vmem:[#allocation8 + $0x8] sm:$0xff]
    %v139 = vld [vmem:[#allocation8 + $0x10] sm:$0xff]
    %v140 = vld [vmem:[#allocation8 + $0x18] sm:$0xff]
    %v141 = vld [vmem:[#allocation7] sm:$0xff]
    %v142 = vld [vmem:[#allocation7 + $0x8] sm:$0xff]
    %v143 = vld [vmem:[#allocation7 + $0x10] sm:$0xff]
    %v144 = vld [vmem:[#allocation7 + $0x18] sm:$0xff]
    %v145 = vld [vmem:[%s9] sm:$0x1]
    %v146 = vld [vmem:[%s10] sm:$0x1]
    %v147 = vld [vmem:[#allocation2] sm:$0x1]
    %v148 = vld [vmem:[%s0] sm:$0x3]
    %v149 = vld [vmem:[%s0 + $0x2] sm:$0x3]
    %v150 = vld [vmem:[%s0 + $0x4] sm:$0x3]
    %v151 = vld [vmem:[%s0 + $0x6] sm:$0x3]
    %v152 = vld [vmem:[%s0 + $0x8] sm:$0x3]
    %v153 = vld [vmem:[%s0 + $0xa] sm:$0x3]
    %v154 = vld [vmem:[%s0 + $0xc] sm:$0x3]
    %v155 = vld [vmem:[%s0 + $0xe] sm:$0x3]
    %v156 = vld [vmem:[#allocation3] sm:$0x1]
    %158 = vset.pattern.permute.xlu0 0
    %159 = vperm.xlu0 %158, %v148
    %v160 = vpop.permute.xlu0 %159
    %163 = vset.pattern.permute.xlu0 0
    %164 = vperm.xlu0 %163, %v149
    %v165 = vpop.permute.xlu0 %164
    %168 = vset.pattern.permute.xlu0 0
    %169 = vperm.xlu0 %168, %v150
    %v170 = vpop.permute.xlu0 %169
    %173 = vset.pattern.permute.xlu0 0
    %174 = vperm.xlu0 %173, %v151
    %v175 = vpop.permute.xlu0 %174
    %178 = vset.pattern.permute.xlu0 0
    %179 = vperm.xlu0 %178, %v152
    %v180 = vpop.permute.xlu0 %179
    %183 = vset.pattern.permute.xlu0 0
    %184 = vperm.xlu0 %183, %v153
    %v185 = vpop.permute.xlu0 %184
    %188 = vset.pattern.permute.xlu0 0
    %189 = vperm.xlu0 %188, %v154
    %v190 = vpop.permute.xlu0 %189
    %193 = vset.pattern.permute.xlu0 0
    %194 = vperm.xlu0 %193, %v155
    %v195 = vpop.permute.xlu0 %194
    %v198 = vlaneseq
    %v199 = vshrl.u32 %v198, 7
    %v200 = vsub.s32 0, %v199
    %v201 = vrot.slane %v156, %v200
    %v203 = vmul.f32 %v160, %v201
    %v204 = vmul.f32 %v165, %v201
    %v205 = vmul.f32 %v170, %v201
    %v206 = vmul.f32 %v175, %v201
    %v207 = vmul.f32 %v180, %v201
    %v208 = vmul.f32 %v185, %v201
    %v209 = vmul.f32 %v190, %v201
    %v210 = vmul.f32 %v195, %v201
    %v212 = vlaneseq
    %v213 = vshrl.u32 %v212, 7
    %v214 = vsub.s32 0, %v213
    %v215 = vrot.slane %v118, %v214
    %v217 = vadd.f32 %v203, %v215
    %v218 = vadd.f32 %v204, %v215
    %v219 = vadd.f32 %v205, %v215
    %v220 = vadd.f32 %v206, %v215
    %v221 = vadd.f32 %v207, %v215
    %v222 = vadd.f32 %v208, %v215
    %v223 = vadd.f32 %v209, %v215
    %v224 = vadd.f32 %v210, %v215
    %vm225 = vcmask 261120
    %v227 = vsel %vm225, 0.0, 0
    %229 = vmatprep.subr.mxu0 0.0
    %230 = vmatpush1.msra.mxu0 %v109
    %231 = vmatprep.subr.mxu0 0.0
    %232 = vmatpush1.msra.mxu0 %v110
    %233 = vmatprep.subr.mxu0 0.0
    %234 = vmatpush1.msra.mxu0 %v111
    %235 = vmatprep.subr.mxu0 0.0
    %236 = vmatpush1.msra.mxu0 %v112
    %237 = vmatprep.subr.mxu0 0.0
    %238 = vmatpush1.msra.mxu0 0.0
    %239 = vmatprep.subr.mxu0 0.0
    %240 = vmatpush1.msra.mxu0 0.0
    %241 = vmatprep.subr.mxu0 0.0
    %242 = vmatpush1.msra.mxu0 0.0
    %243 = vmatprep.subr.mxu0 0.0
    %244 = vmatpush1.msra.mxu0 0.0
    %245 = vmatprep.subr.mxu0 0.0
    %246 = vmatpush1.msra.mxu0 0.0
    %247 = vmatprep.subr.mxu0 0.0
    %248 = vmatpush1.msra.mxu0 0.0
    %249 = vmatprep.subr.mxu0 0.0
    %250 = vmatpush1.msra.mxu0 0.0
    %251 = vmatprep.subr.mxu0 0.0
    %252 = vmatpush1.msra.mxu0 0.0
    %253 = vmatprep.subr.mxu0 0.0
    %254 = vmatpush1.msra.mxu0 0.0
    %255 = vmatprep.subr.mxu0 0.0
    %256 = vmatpush1.msra.mxu0 0.0
    %257 = vmatprep.subr.mxu0 0.0
    %258 = vmatpush1.msra.mxu0 0.0
    %259 = vmatprep.subr.mxu0 0.0
    %260 = vmatpush1.msra.mxu0 0.0
    %261 = vmatprep.subr.mxu0 0.0
    %262 = vmatpush1.msra.mxu0 0.0
    %263 = vmatprep.subr.mxu0 0.0
    %264 = vmatpush1.msra.mxu0 0.0
    %265 = vmatprep.subr.mxu0 0.0
    %266 = vmatpush1.msra.mxu0 0.0
    %267 = vmatprep.subr.mxu0 0.0
    %268 = vmatpush1.msra.mxu0 0.0
    %269 = vmatprep.subr.mxu0 0.0
    %270 = vmatpush1.msra.mxu0 0.0
    %271 = vmatprep.subr.mxu0 0.0
    %272 = vmatpush1.msra.mxu0 0.0
    %273 = vmatprep.subr.mxu0 0.0
    %274 = vmatpush1.msra.mxu0 0.0
    %275 = vmatprep.subr.mxu0 0.0
    %276 = vmatpush1.msra.mxu0 0.0
    %277 = vmatprep.subr.mxu0 0.0
    %278 = vmatpush1.msra.mxu0 0.0
    %279 = vmatprep.subr.mxu0 0.0
    %280 = vmatpush1.msra.mxu0 0.0
    %281 = vmatprep.subr.mxu0 0.0
    %282 = vmatpush1.msra.mxu0 0.0
    %283 = vmatprep.subr.mxu0 0.0
    %284 = vmatpush1.msra.mxu0 0.0
    %285 = vmatprep.subr.mxu0 0.0
    %286 = vmatpush1.msra.mxu0 0.0
    %287 = vmatprep.subr.mxu0 0.0
    %288 = vmatpush1.msra.mxu0 0.0
    %289 = vmatprep.subr.mxu0 0.0
    %290 = vmatpush1.msra.mxu0 0.0
    %291 = vmatprep.subr.mxu0 0.0
    %292 = vmatpush1.msra.mxu0 0.0
    %293 = vmatprep.mubr.f32.mxu0 0.0
    %294 = vmatmul.mubr.f32.gmra.mrb[0].mxu0 %v227
    %v295 = vpop.f32.mrb[0].mxu0
    %v296 = vadd.f32 %v217, %v295
    %v297 = vpop.f32.mrb[0].mxu0
    %298 = vdwg.mxu0
    %v299 = vxor.u32 %v296, 2147483648
    %v300 = vmul.f32 %v299, 1.442695
    %v301 = vpow.pop %v300
    %v302 = vadd.f32 %v301, 1.0
    %v303 = vrcp.pop %v302
    %v304 = vmul.f32 1.0, %v303
    %v305 = vtanh.pop %v296
    %v306 = vmul.f32 %v304, 0.0
    %308 = vrot.lane.b32.xlu0 %v305, 64
    %v309 = vpop.permute.xlu0 %308
    %v311 = vmul.f32 %v304, %v309
    %313 = vrot.lane.b32.xlu0 %v311, 32
    %v314 = vpop.permute.xlu0 %313
    %v316 = vadd.f32 %v306, %v314
    %v317 = vtanh.pop %v316
    %319 = vrot.lane.b32.xlu0 %v317, 64
    %v320 = vpop.permute.xlu0 %319
    %v322 = vmul.f32 %v304, %v320
    %v324 = vlaneseq
    %v325 = vshrl.u32 %v324, 7
    %v326 = vsub.s32 0, %v325
    %v327 = vrot.slane %v120, %v326
    %329 = vmatprep.subr.mxu0 0.0
    %330 = vmatpush1.msra.mxu0 %v114
    %331 = vmatprep.subr.mxu0 0.0
    %332 = vmatpush1.msra.mxu0 %v115
    %333 = vmatprep.subr.mxu0 0.0
    %334 = vmatpush1.msra.mxu0 %v116
    %335 = vmatprep.subr.mxu0 0.0
    %336 = vmatpush1.msra.mxu0 %v117
    %337 = vmatprep.subr.mxu0 0.0
    %338 = vmatpush1.msra.mxu0 0.0
    %339 = vmatprep.subr.mxu0 0.0
    %340 = vmatpush1.msra.mxu0 0.0
    %341 = vmatprep.subr.mxu0 0.0
    %342 = vmatpush1.msra.mxu0 0.0
    %343 = vmatprep.subr.mxu0 0.0
    %344 = vmatpush1.msra.mxu0 0.0
    %345 = vmatprep.subr.mxu0 0.0
    %346 = vmatpush1.msra.mxu0 0.0
    %347 = vmatprep.subr.mxu0 0.0
    %348 = vmatpush1.msra.mxu0 0.0
    %349 = vmatprep.subr.mxu0 0.0
    %350 = vmatpush1.msra.mxu0 0.0
    %351 = vmatprep.subr.mxu0 0.0
    %352 = vmatpush1.msra.mxu0 0.0
    %353 = vmatprep.subr.mxu0 0.0
    %354 = vmatpush1.msra.mxu0 0.0
    %355 = vmatprep.subr.mxu0 0.0
    %356 = vmatpush1.msra.mxu0 0.0
    %357 = vmatprep.subr.mxu0 0.0
    %358 = vmatpush1.msra.mxu0 0.0
    %359 = vmatprep.subr.mxu0 0.0
    %360 = vmatpush1.msra.mxu0 0.0
    %361 = vmatprep.subr.mxu0 0.0
    %362 = vmatpush1.msra.mxu0 0.0
    %363 = vmatprep.subr.mxu0 0.0
    %364 = vmatpush1.msra.mxu0 0.0
    %365 = vmatprep.subr.mxu0 0.0
    %366 = vmatpush1.msra.mxu0 0.0
    %367 = vmatprep.subr.mxu0 0.0
    %368 = vmatpush1.msra.mxu0 0.0
    %369 = vmatprep.subr.mxu0 0.0
    %370 = vmatpush1.msra.mxu0 0.0
    %371 = vmatprep.subr.mxu0 0.0
    %372 = vmatpush1.msra.mxu0 0.0
    %373 = vmatprep.subr.mxu0 0.0
    %374 = vmatpush1.msra.mxu0 0.0
    %375 = vmatprep.subr.mxu0 0.0
    %376 = vmatpush1.msra.mxu0 0.0
    %377 = vmatprep.subr.mxu0 0.0
    %378 = vmatpush1.msra.mxu0 0.0
    %379 = vmatprep.subr.mxu0 0.0
    %380 = vmatpush1.msra.mxu0 0.0
    %381 = vmatprep.subr.mxu0 0.0
    %382 = vmatpush1.msra.mxu0 0.0
    %383 = vmatprep.subr.mxu0 0.0
    %384 = vmatpush1.msra.mxu0 0.0
    %385 = vmatprep.subr.mxu0 0.0
    %386 = vmatpush1.msra.mxu0 0.0
    %387 = vmatprep.subr.mxu0 0.0
    %388 = vmatpush1.msra.mxu0 0.0
    %389 = vmatprep.subr.mxu0 0.0
    %390 = vmatpush1.msra.mxu0 0.0
    %391 = vmatprep.subr.mxu0 0.0
    %392 = vmatpush1.msra.mxu0 0.0
    %393 = vmatprep.mubr.f32.mxu0 0.0
    %394 = vmatmul.mubr.f32.gmra.mrb[0].mxu0 %v227
    %v395 = vpop.f32.mrb[0].mxu0
    %v396 = vadd.f32 %v327, %v395
    %v397 = vpop.f32.mrb[0].mxu0
    %398 = vdwg.mxu0
    %400 = vrot.lane.b32.xlu0 %v322, 32
    %v401 = vpop.permute.xlu0 %400
    %v402 = vsel %vm225, %v401, 0
    %404 = vmatprep.subr.mxu0 0.0
    %405 = vmatpush1.msra.mxu0 %v121
    %406 = vmatprep.subr.mxu0 0.0
    %407 = vmatpush1.msra.mxu0 %v122
    %408 = vmatprep.subr.mxu0 0.0
    %409 = vmatpush1.msra.mxu0 %v123
    %410 = vmatprep.subr.mxu0 0.0
    %411 = vmatpush1.msra.mxu0 %v124
    %412 = vmatprep.subr.mxu0 0.0
    %413 = vmatpush1.msra.mxu0 0.0
    %414 = vmatprep.subr.mxu0 0.0
    %415 = vmatpush1.msra.mxu0 0.0
    %416 = vmatprep.subr.mxu0 0.0
    %417 = vmatpush1.msra.mxu0 0.0
    %418 = vmatprep.subr.mxu0 0.0
    %419 = vmatpush1.msra.mxu0 0.0
    %420 = vmatprep.subr.mxu0 0.0
    %421 = vmatpush1.msra.mxu0 0.0
    %422 = vmatprep.subr.mxu0 0.0
    %423 = vmatpush1.msra.mxu0 0.0
    %424 = vmatprep.subr.mxu0 0.0
    %425 = vmatpush1.msra.mxu0 0.0
    %426 = vmatprep.subr.mxu0 0.0
    %427 = vmatpush1.msra.mxu0 0.0
    %428 = vmatprep.subr.mxu0 0.0
    %429 = vmatpush1.msra.mxu0 0.0
    %430 = vmatprep.subr.mxu0 0.0
    %431 = vmatpush1.msra.mxu0 0.0
    %432 = vmatprep.subr.mxu0 0.0
    %433 = vmatpush1.msra.mxu0 0.0
    %434 = vmatprep.subr.mxu0 0.0
    %435 = vmatpush1.msra.mxu0 0.0
    %436 = vmatprep.subr.mxu0 0.0
    %437 = vmatpush1.msra.mxu0 0.0
    %438 = vmatprep.subr.mxu0 0.0
    %439 = vmatpush1.msra.mxu0 0.0
    %440 = vmatprep.subr.mxu0 0.0
    %441 = vmatpush1.msra.mxu0 0.0
    %442 = vmatprep.subr.mxu0 0.0
    %443 = vmatpush1.msra.mxu0 0.0
    %444 = vmatprep.subr.mxu0 0.0
    %445 = vmatpush1.msra.mxu0 0.0
    %446 = vmatprep.subr.mxu0 0.0
    %447 = vmatpush1.msra.mxu0 0.0
    %448 = vmatprep.subr.mxu0 0.0
    %449 = vmatpush1.msra.mxu0 0.0
    %450 = vmatprep.subr.mxu0 0.0
    %451 = vmatpush1.msra.mxu0 0.0
    %452 = vmatprep.subr.mxu0 0.0
    %453 = vmatpush1.msra.mxu0 0.0
    %454 = vmatprep.subr.mxu0 0.0
    %455 = vmatpush1.msra.mxu0 0.0
    %456 = vmatprep.subr.mxu0 0.0
    %457 = vmatpush1.msra.mxu0 0.0
    %458 = vmatprep.subr.mxu0 0.0
    %459 = vmatpush1.msra.mxu0 0.0
    %460 = vmatprep.subr.mxu0 0.0
    %461 = vmatpush1.msra.mxu0 0.0
    %462 = vmatprep.subr.mxu0 0.0
    %463 = vmatpush1.msra.mxu0 0.0
    %464 = vmatprep.subr.mxu0 0.0
    %465 = vmatpush1.msra.mxu0 0.0
    %466 = vmatprep.subr.mxu0 0.0
    %467 = vmatpush1.msra.mxu0 0.0
    %468 = vmatprep.mubr.f32.mxu0 0.0
    %469 = vmatmul.mubr.f32.gmra.mrb[0].mxu0 %v402
    %v470 = vpop.f32.mrb[0].mxu0
    %v471 = vadd.f32 %v396, %v470
    %v472 = vpop.f32.mrb[0].mxu0
    %473 = vdwg.mxu0
    %v474 = vxor.u32 %v471, 2147483648
    %v475 = vmul.f32 %v474, 1.442695
    %v476 = vpow.pop %v475
    %v477 = vadd.f32 %v476, 1.0
    %v478 = vrcp.pop %v477
    %v479 = vmul.f32 1.0, %v478
    %v480 = vtanh.pop %v471
    %v481 = vmul.f32 %v479, 0.0
    %483 = vrot.lane.b32.xlu0 %v480, 64
    %v484 = vpop.permute.xlu0 %483
    %v486 = vmul.f32 %v479, %v484
    %488 = vrot.lane.b32.xlu0 %v486, 32
    %v489 = vpop.permute.xlu0 %488
    %v491 = vadd.f32 %v481, %v489
    %v492 = vtanh.pop %v491
    %494 = vrot.lane.b32.xlu0 %v492, 64
    %v495 = vpop.permute.xlu0 %494
    %v497 = vmul.f32 %v479, %v495
    %498 = vmatprep.subr.mxu0 0.0
    %499 = vmatpush1.msra.mxu0 %v109
    %500 = vmatprep.subr.mxu0 0.0
    %501 = vmatpush1.msra.mxu0 %v110
    %502 = vmatprep.subr.mxu0 0.0
    %503 = vmatpush1.msra.mxu0 %v111
    %504 = vmatprep.subr.mxu0 0.0
    %505 = vmatpush1.msra.mxu0 %v112
    %506 = vmatprep.subr.mxu0 0.0
    %507 = vmatpush1.msra.mxu0 0.0
    %508 = vmatprep.subr.mxu0 0.0
    %509 = vmatpush1.msra.mxu0 0.0
    %510 = vmatprep.subr.mxu0 0.0
    %511 = vmatpush1.msra.mxu0 0.0
    %512 = vmatprep.subr.mxu0 0.0
    %513 = vmatpush1.msra.mxu0 0.0
    %514 = vmatprep.subr.mxu0 0.0
    %515 = vmatpush1.msra.mxu0 0.0
    %516 = vmatprep.subr.mxu0 0.0
    %517 = vmatpush1.msra.mxu0 0.0
    %518 = vmatprep.subr.mxu0 0.0
    %519 = vmatpush1.msra.mxu0 0.0
    %520 = vmatprep.subr.mxu0 0.0
    %521 = vmatpush1.msra.mxu0 0.0
    %522 = vmatprep.subr.mxu0 0.0
    %523 = vmatpush1.msra.mxu0 0.0
    %524 = vmatprep.subr.mxu0 0.0
    %525 = vmatpush1.msra.mxu0 0.0
    %526 = vmatprep.subr.mxu0 0.0
    %527 = vmatpush1.msra.mxu0 0.0
    %528 = vmatprep.subr.mxu0 0.0
    %529 = vmatpush1.msra.mxu0 0.0
    %530 = vmatprep.subr.mxu0 0.0
    %531 = vmatpush1.msra.mxu0 0.0
    %532 = vmatprep.subr.mxu0 0.0
    %533 = vmatpush1.msra.mxu0 0.0
    %534 = vmatprep.subr.mxu0 0.0
    %535 = vmatpush1.msra.mxu0 0.0
    %536 = vmatprep.subr.mxu0 0.0
    %537 = vmatpush1.msra.mxu0 0.0
    %538 = vmatprep.subr.mxu0 0.0
    %539 = vmatpush1.msra.mxu0 0.0
    %540 = vmatprep.subr.mxu0 0.0
    %541 = vmatpush1.msra.mxu0 0.0
    %542 = vmatprep.subr.mxu0 0.0
    %543 = vmatpush1.msra.mxu0 0.0
    %544 = vmatprep.subr.mxu0 0.0
    %545 = vmatpush1.msra.mxu0 0.0
    %546 = vmatprep.subr.mxu0 0.0
    %547 = vmatpush1.msra.mxu0 0.0
    %548 = vmatprep.subr.mxu0 0.0
    %549 = vmatpush1.msra.mxu0 0.0
    %550 = vmatprep.subr.mxu0 0.0
    %551 = vmatpush1.msra.mxu0 0.0
    %552 = vmatprep.subr.mxu0 0.0
    %553 = vmatpush1.msra.mxu0 0.0
    %554 = vmatprep.subr.mxu0 0.0
    %555 = vmatpush1.msra.mxu0 0.0
    %556 = vmatprep.subr.mxu0 0.0
    %557 = vmatpush1.msra.mxu0 0.0
    %558 = vmatprep.subr.mxu0 0.0
    %559 = vmatpush1.msra.mxu0 0.0
    %560 = vmatprep.subr.mxu0 0.0
    %561 = vmatpush1.msra.mxu0 0.0
    %562 = vmatprep.mubr.f32.mxu0 0.0
    %563 = vmatmul.mubr.f32.gmra.mrb[0].mxu0 %v402
    %v564 = vpop.f32.mrb[0].mxu0
    %v565 = vadd.f32 %v218, %v564
    %v566 = vpop.f32.mrb[0].mxu0
    %567 = vdwg.mxu0
    %v568 = vxor.u32 %v565, 2147483648
    %v569 = vmul.f32 %v568, 1.442695
    %v570 = vpow.pop %v569
    %v571 = vadd.f32 %v570, 1.0
    %v572 = vrcp.pop %v571
    %v573 = vmul.f32 1.0, %v572
    %v574 = vtanh.pop %v565
    %v575 = vmul.f32 %v573, %v316
    %577 = vrot.lane.b32.xlu0 %v574, 64
    %v578 = vpop.permute.xlu0 %577
    %v580 = vmul.f32 %v573, %v578
    %582 = vrot.lane.b32.xlu0 %v580, 32
    %v583 = vpop.permute.xlu0 %582
    %v585 = vadd.f32 %v575, %v583
    %v586 = vtanh.pop %v585
    %588 = vrot.lane.b32.xlu0 %v586, 64
    %v589 = vpop.permute.xlu0 %588
    %v591 = vmul.f32 %v573, %v589
    %593 = vrot.lane.b32.xlu0 %v497, 32
    %v594 = vpop.permute.xlu0 %593
    %v595 = vsel %vm225, %v594, 0
    %597 = vmatprep.subr.mxu0 0.0
    %598 = vmatpush1.msra.mxu0 %v114
    %599 = vmatprep.subr.mxu0 0.0
    %600 = vmatpush1.msra.mxu0 %v115
    %601 = vmatprep.subr.mxu0 0.0
    %602 = vmatpush1.msra.mxu0 %v116
    %603 = vmatprep.subr.mxu0 0.0
    %604 = vmatpush1.msra.mxu0 %v117
    %605 = vmatprep.subr.mxu0 0.0
    %606 = vmatpush1.msra.mxu0 0.0
    %607 = vmatprep.subr.mxu0 0.0
    %608 = vmatpush1.msra.mxu0 0.0
    %609 = vmatprep.subr.mxu0 0.0
    %610 = vmatpush1.msra.mxu0 0.0
    %611 = vmatprep.subr.mxu0 0.0
    %612 = vmatpush1.msra.mxu0 0.0
    %613 = vmatprep.subr.mxu0 0.0
    %614 = vmatpush1.msra.mxu0 0.0
    %615 = vmatprep.subr.mxu0 0.0
    %616 = vmatpush1.msra.mxu0 0.0
    %617 = vmatprep.subr.mxu0 0.0
    %618 = vmatpush1.msra.mxu0 0.0
    %619 = vmatprep.subr.mxu0 0.0
    %620 = vmatpush1.msra.mxu0 0.0
    %621 = vmatprep.subr.mxu0 0.0
    %622 = vmatpush1.msra.mxu0 0.0
    %623 = vmatprep.subr.mxu0 0.0
    %624 = vmatpush1.msra.mxu0 0.0
    %625 = vmatprep.subr.mxu0 0.0
    %626 = vmatpush1.msra.mxu0 0.0
    %627 = vmatprep.subr.mxu0 0.0
    %628 = vmatpush1.msra.mxu0 0.0
    %629 = vmatprep.subr.mxu0 0.0
    %630 = vmatpush1.msra.mxu0 0.0
    %631 = vmatprep.subr.mxu0 0.0
    %632 = vmatpush1.msra.mxu0 0.0
    %633 = vmatprep.subr.mxu0 0.0
    %634 = vmatpush1.msra.mxu0 0.0
    %635 = vmatprep.subr.mxu0 0.0
    %636 = vmatpush1.msra.mxu0 0.0
    %637 = vmatprep.subr.mxu0 0.0
    %638 = vmatpush1.msra.mxu0 0.0
    %639 = vmatprep.subr.mxu0 0.0
    %640 = vmatpush1.msra.mxu0 0.0
    %641 = vmatprep.subr.mxu0 0.0
    %642 = vmatpush1.msra.mxu0 0.0
    %643 = vmatprep.subr.mxu0 0.0
    %644 = vmatpush1.msra.mxu0 0.0
    %645 = vmatprep.subr.mxu0 0.0
    %646 = vmatpush1.msra.mxu0 0.0
    %647 = vmatprep.subr.mxu0 0.0
    %648 = vmatpush1.msra.mxu0 0.0
    %649 = vmatprep.subr.mxu0 0.0
    %650 = vmatpush1.msra.mxu0 0.0
    %651 = vmatprep.subr.mxu0 0.0
    %652 = vmatpush1.msra.mxu0 0.0
    %653 = vmatprep.subr.mxu0 0.0
    %654 = vmatpush1.msra.mxu0 0.0
    %655 = vmatprep.subr.mxu0 0.0
    %656 = vmatpush1.msra.mxu0 0.0
    %657 = vmatprep.subr.mxu0 0.0
    %658 = vmatpush1.msra.mxu0 0.0
    %659 = vmatprep.subr.mxu0 0.0
    %660 = vmatpush1.msra.mxu0 0.0
    %661 = vmatprep.mubr.f32.mxu0 0.0
    %662 = vmatmul.mubr.f32.gmra.mrb[0].mxu0 %v595
    %v663 = vpop.f32.mrb[0].mxu0
    %v664 = vadd.f32 %v327, %v663
    %v665 = vpop.f32.mrb[0].mxu0
    %666 = vdwg.mxu0
    %668 = vrot.lane.b32.xlu0 %v591, 32
    %v669 = vpop.permute.xlu0 %668
    %v670 = vsel %vm225, %v669, 0
    %672 = vmatprep.subr.mxu0 0.0
    %673 = vmatpush1.msra.mxu0 %v121
    %674 = vmatprep.subr.mxu0 0.0
    %675 = vmatpush1.msra.mxu0 %v122
    %676 = vmatprep.subr.mxu0 0.0
    %677 = vmatpush1.msra.mxu0 %v123
    %678 = vmatprep.subr.mxu0 0.0
    %679 = vmatpush1.msra.mxu0 %v124
    %680 = vmatprep.subr.mxu0 0.0
    %681 = vmatpush1.msra.mxu0 0.0
    %682 = vmatprep.subr.mxu0 0.0
    %683 = vmatpush1.msra.mxu0 0.0
    %684 = vmatprep.subr.mxu0 0.0
    %685 = vmatpush1.msra.mxu0 0.0
    %686 = vmatprep.subr.mxu0 0.0
    %687 = vmatpush1.msra.mxu0 0.0
    %688 = vmatprep.subr.mxu0 0.0
    %689 = vmatpush1.msra.mxu0 0.0
    %690 = vmatprep.subr.mxu0 0.0
    %691 = vmatpush1.msra.mxu0 0.0
    %692 = vmatprep.subr.mxu0 0.0
    %693 = vmatpush1.msra.mxu0 0.0
    %694 = vmatprep.subr.mxu0 0.0
    %695 = vmatpush1.msra.mxu0 0.0
    %696 = vmatprep.subr.mxu0 0.0
    %697 = vmatpush1.msra.mxu0 0.0
    %698 = vmatprep.subr.mxu0 0.0
    %699 = vmatpush1.msra.mxu0 0.0
    %700 = vmatprep.subr.mxu0 0.0
    %701 = vmatpush1.msra.mxu0 0.0
    %702 = vmatprep.subr.mxu0 0.0
    %703 = vmatpush1.msra.mxu0 0.0
    %704 = vmatprep.subr.mxu0 0.0
    %705 = vmatpush1.msra.mxu0 0.0
    %706 = vmatprep.subr.mxu0 0.0
    %707 = vmatpush1.msra.mxu0 0.0
    %708 = vmatprep.subr.mxu0 0.0
    %709 = vmatpush1.msra.mxu0 0.0
    %710 = vmatprep.subr.mxu0 0.0
    %711 = vmatpush1.msra.mxu0 0.0
    %712 = vmatprep.subr.mxu0 0.0
    %713 = vmatpush1.msra.mxu0 0.0
    %714 = vmatprep.subr.mxu0 0.0
    %715 = vmatpush1.msra.mxu0 0.0
    %716 = vmatprep.subr.mxu0 0.0
    %717 = vmatpush1.msra.mxu0 0.0
    %718 = vmatprep.subr.mxu0 0.0
    %719 = vmatpush1.msra.mxu0 0.0
    %720 = vmatprep.subr.mxu0 0.0
    %721 = vmatpush1.msra.mxu0 0.0
    %722 = vmatprep.subr.mxu0 0.0
    %723 = vmatpush1.msra.mxu0 0.0
    %724 = vmatprep.subr.mxu0 0.0
    %725 = vmatpush1.msra.mxu0 0.0
    %726 = vmatprep.subr.mxu0 0.0
    %727 = vmatpush1.msra.mxu0 0.0
    %728 = vmatprep.subr.mxu0 0.0
    %729 = vmatpush1.msra.mxu0 0.0
    %730 = vmatprep.subr.mxu0 0.0
    %731 = vmatpush1.msra.mxu0 0.0
    %732 = vmatprep.subr.mxu0 0.0
    %733 = vmatpush1.msra.mxu0 0.0
    %734 = vmatprep.subr.mxu0 0.0
    %735 = vmatpush1.msra.mxu0 0.0
    %736 = vmatprep.mubr.f32.mxu0 0.0
    %737 = vmatmul.mubr.f32.gmra.mrb[0].mxu0 %v670
    %v738 = vpop.f32.mrb[0].mxu0
    %v739 = vadd.f32 %v664, %v738
    %v740 = vpop.f32.mrb[0].mxu0
    %741 = vdwg.mxu0
    %v742 = vxor.u32 %v739, 2147483648
    %v743 = vmul.f32 %v742, 1.442695
    %v744 = vpow.pop %v743
    %v745 = vadd.f32 %v744, 1.0
    %v746 = vrcp.pop %v745
    %v747 = vmul.f32 1.0, %v746
    %v748 = vtanh.pop %v739
    %v749 = vmul.f32 %v747, %v491
    %751 = vrot.lane.b32.xlu0 %v748, 64
    %v752 = vpop.permute.xlu0 %751
    %v754 = vmul.f32 %v747, %v752
    %756 = vrot.lane.b32.xlu0 %v754, 32
    %v757 = vpop.permute.xlu0 %756
    %v759 = vadd.f32 %v749, %v757
    %v760 = vtanh.pop %v759
    %762 = vrot.lane.b32.xlu0 %v760, 64
    %v763 = vpop.permute.xlu0 %762
    %v765 = vmul.f32 %v747, %v763
    %766 = vmatprep.subr.mxu0 0.0
    %767 = vmatpush1.msra.mxu0 %v109
    %768 = vmatprep.subr.mxu0 0.0
    %769 = vmatpush1.msra.mxu0 %v110
    %770 = vmatprep.subr.mxu0 0.0
    %771 = vmatpush1.msra.mxu0 %v111
    %772 = vmatprep.subr.mxu0 0.0
    %773 = vmatpush1.msra.mxu0 %v112
    %774 = vmatprep.subr.mxu0 0.0
    %775 = vmatpush1.msra.mxu0 0.0
    %776 = vmatprep.subr.mxu0 0.0
    %777 = vmatpush1.msra.mxu0 0.0
    %778 = vmatprep.subr.mxu0 0.0
    %779 = vmatpush1.msra.mxu0 0.0
    %780 = vmatprep.subr.mxu0 0.0
    %781 = vmatpush1.msra.mxu0 0.0
    %782 = vmatprep.subr.mxu0 0.0
    %783 = vmatpush1.msra.mxu0 0.0
    %784 = vmatprep.subr.mxu0 0.0
    %785 = vmatpush1.msra.mxu0 0.0
    %786 = vmatprep.subr.mxu0 0.0
    %787 = vmatpush1.msra.mxu0 0.0
    %788 = vmatprep.subr.mxu0 0.0
    %789 = vmatpush1.msra.mxu0 0.0
    %790 = vmatprep.subr.mxu0 0.0
    %791 = vmatpush1.msra.mxu0 0.0
    %792 = vmatprep.subr.mxu0 0.0
    %793 = vmatpush1.msra.mxu0 0.0
    %794 = vmatprep.subr.mxu0 0.0
    %795 = vmatpush1.msra.mxu0 0.0
    %796 = vmatprep.subr.mxu0 0.0
    %797 = vmatpush1.msra.mxu0 0.0
    %798 = vmatprep.subr.mxu0 0.0
    %799 = vmatpush1.msra.mxu0 0.0
    %800 = vmatprep.subr.mxu0 0.0
    %801 = vmatpush1.msra.mxu0 0.0
    %802 = vmatprep.subr.mxu0 0.0
    %803 = vmatpush1.msra.mxu0 0.0
    %804 = vmatprep.subr.mxu0 0.0
    %805 = vmatpush1.msra.mxu0 0.0
    %806 = vmatprep.subr.mxu0 0.0
    %807 = vmatpush1.msra.mxu0 0.0
    %808 = vmatprep.subr.mxu0 0.0
    %809 = vmatpush1.msra.mxu0 0.0
    %810 = vmatprep.subr.mxu0 0.0
    %811 = vmatpush1.msra.mxu0 0.0
    %812 = vmatprep.subr.mxu0 0.0
    %813 = vmatpush1.msra.mxu0 0.0
    %814 = vmatprep.subr.mxu0 0.0
    %815 = vmatpush1.msra.mxu0 0.0
    %816 = vmatprep.subr.mxu0 0.0
    %817 = vmatpush1.msra.mxu0 0.0
    %818 = vmatprep.subr.mxu0 0.0
    %819 = vmatpush1.msra.mxu0 0.0
    %820 = vmatprep.subr.mxu0 0.0
    %821 = vmatpush1.msra.mxu0 0.0
    %822 = vmatprep.subr.mxu0 0.0
    %823 = vmatpush1.msra.mxu0 0.0
    %824 = vmatprep.subr.mxu0 0.0
    %825 = vmatpush1.msra.mxu0 0.0
    %826 = vmatprep.subr.mxu0 0.0
    %827 = vmatpush1.msra.mxu0 0.0
    %828 = vmatprep.subr.mxu0 0.0
    %829 = vmatpush1.msra.mxu0 0.0
    %830 = vmatprep.mubr.f32.mxu0 0.0
    %831 = vmatmul.mubr.f32.gmra.mrb[0].mxu0 %v670
    %v832 = vpop.f32.mrb[0].mxu0
    %v833 = vadd.f32 %v219, %v832
    %v834 = vpop.f32.mrb[0].mxu0
    %835 = vdwg.mxu0
    %v836 = vxor.u32 %v833, 2147483648
    %v837 = vmul.f32 %v836, 1.442695
    %v838 = vpow.pop %v837
    %v839 = vadd.f32 %v838, 1.0
    %v840 = vrcp.pop %v839
    %v841 = vmul.f32 1.0, %v840
    %v842 = vtanh.pop %v833
    %v843 = vmul.f32 %v841, %v585
    %845 = vrot.lane.b32.xlu0 %v842, 64
    %v846 = vpop.permute.xlu0 %845
    %v848 = vmul.f32 %v841, %v846
    %850 = vrot.lane.b32.xlu0 %v848, 32
    %v851 = vpop.permute.xlu0 %850
    %v853 = vadd.f32 %v843, %v851
    %v854 = vtanh.pop %v853
    %856 = vrot.lane.b32.xlu0 %v854, 64
    %v857 = vpop.permute.xlu0 %856
    %v859 = vmul.f32 %v841, %v857
    %861 = vrot.lane.b32.xlu0 %v765, 32
    %v862 = vpop.permute.xlu0 %861
    %v863 = vsel %vm225, %v862, 0
    %865 = vmatprep.subr.mxu0 0.0
    %866 = vmatpush1.msra.mxu0 %v114
    %867 = vmatprep.subr.mxu0 0.0
    %868 = vmatpush1.msra.mxu0 %v115
    %869 = vmatprep.subr.mxu0 0.0
    %870 = vmatpush1.msra.mxu0 %v116
    %871 = vmatprep.subr.mxu0 0.0
    %872 = vmatpush1.msra.mxu0 %v117
    %873 = vmatprep.subr.mxu0 0.0
    %874 = vmatpush1.msra.mxu0 0.0
    %875 = vmatprep.subr.mxu0 0.0
    %876 = vmatpush1.msra.mxu0 0.0
    %877 = vmatprep.subr.mxu0 0.0
    %878 = vmatpush1.msra.mxu0 0.0
    %879 = vmatprep.subr.mxu0 0.0
    %880 = vmatpush1.msra.mxu0 0.0
    %881 = vmatprep.subr.mxu0 0.0
    %882 = vmatpush1.msra.mxu0 0.0
    %883 = vmatprep.subr.mxu0 0.0
    %884 = vmatpush1.msra.mxu0 0.0
    %885 = vmatprep.subr.mxu0 0.0
    %886 = vmatpush1.msra.mxu0 0.0
    %887 = vmatprep.subr.mxu0 0.0
    %888 = vmatpush1.msra.mxu0 0.0
    %889 = vmatprep.subr.mxu0 0.0
    %890 = vmatpush1.msra.mxu0 0.0
    %891 = vmatprep.subr.mxu0 0.0
    %892 = vmatpush1.msra.mxu0 0.0
    %893 = vmatprep.subr.mxu0 0.0
    %894 = vmatpush1.msra.mxu0 0.0
    %895 = vmatprep.subr.mxu0 0.0
    %896 = vmatpush1.msra.mxu0 0.0
    %897 = vmatprep.subr.mxu0 0.0
    %898 = vmatpush1.msra.mxu0 0.0
    %899 = vmatprep.subr.mxu0 0.0
    %900 = vmatpush1.msra.mxu0 0.0
    %901 = vmatprep.subr.mxu0 0.0
    %902 = vmatpush1.msra.mxu0 0.0
    %903 = vmatprep.subr.mxu0 0.0
    %904 = vmatpush1.msra.mxu0 0.0
    %905 = vmatprep.subr.mxu0 0.0
    %906 = vmatpush1.msra.mxu0 0.0
    %907 = vmatprep.subr.mxu0 0.0
    %908 = vmatpush1.msra.mxu0 0.0
    %909 = vmatprep.subr.mxu0 0.0
    %910 = vmatpush1.msra.mxu0 0.0
    %911 = vmatprep.subr.mxu0 0.0
    %912 = vmatpush1.msra.mxu0 0.0
    %913 = vmatprep.subr.mxu0 0.0
    %914 = vmatpush1.msra.mxu0 0.0
    %915 = vmatprep.subr.mxu0 0.0
    %916 = vmatpush1.msra.mxu0 0.0
    %917 = vmatprep.subr.mxu0 0.0
    %918 = vmatpush1.msra.mxu0 0.0
    %919 = vmatprep.subr.mxu0 0.0
    %920 = vmatpush1.msra.mxu0 0.0
    %921 = vmatprep.subr.mxu0 0.0
    %922 = vmatpush1.msra.mxu0 0.0
    %923 = vmatprep.subr.mxu0 0.0
    %924 = vmatpush1.msra.mxu0 0.0
    %925 = vmatprep.subr.mxu0 0.0
    %926 = vmatpush1.msra.mxu0 0.0
    %927 = vmatprep.subr.mxu0 0.0
    %928 = vmatpush1.msra.mxu0 0.0
    %929 = vmatprep.mubr.f32.mxu0 0.0
    %930 = vmatmul.mubr.f32.gmra.mrb[0].mxu0 %v863
    %v931 = vpop.f32.mrb[0].mxu0
    %v932 = vadd.f32 %v327, %v931
    %v933 = vpop.f32.mrb[0].mxu0
    %934 = vdwg.mxu0
    %936 = vrot.lane.b32.xlu0 %v859, 32
    %v937 = vpop.permute.xlu0 %936
    %v938 = vsel %vm225, %v937, 0
    %940 = vmatprep.subr.mxu0 0.0
    %941 = vmatpush1.msra.mxu0 %v121
    %942 = vmatprep.subr.mxu0 0.0
    %943 = vmatpush1.msra.mxu0 %v122
    %944 = vmatprep.subr.mxu0 0.0
    %945 = vmatpush1.msra.mxu0 %v123
    %946 = vmatprep.subr.mxu0 0.0
    %947 = vmatpush1.msra.mxu0 %v124
    %948 = vmatprep.subr.mxu0 0.0
    %949 = vmatpush1.msra.mxu0 0.0
    %950 = vmatprep.subr.mxu0 0.0
    %951 = vmatpush1.msra.mxu0 0.0
    %952 = vmatprep.subr.mxu0 0.0
    %953 = vmatpush1.msra.mxu0 0.0
    %954 = vmatprep.subr.mxu0 0.0
    %955 = vmatpush1.msra.mxu0 0.0
    %956 = vmatprep.subr.mxu0 0.0
    %957 = vmatpush1.msra.mxu0 0.0
    %958 = vmatprep.subr.mxu0 0.0
    %959 = vmatpush1.msra.mxu0 0.0
    %960 = vmatprep.subr.mxu0 0.0
    %961 = vmatpush1.msra.mxu0 0.0
    %962 = vmatprep.subr.mxu0 0.0
    %963 = vmatpush1.msra.mxu0 0.0
    %964 = vmatprep.subr.mxu0 0.0
    %965 = vmatpush1.msra.mxu0 0.0
    %966 = vmatprep.subr.mxu0 0.0
    %967 = vmatpush1.msra.mxu0 0.0
    %968 = vmatprep.subr.mxu0 0.0
    %969 = vmatpush1.msra.mxu0 0.0
    %970 = vmatprep.subr.mxu0 0.0
    %971 = vmatpush1.msra.mxu0 0.0
    %972 = vmatprep.subr.mxu0 0.0
    %973 = vmatpush1.msra.mxu0 0.0
    %974 = vmatprep.subr.mxu0 0.0
    %975 = vmatpush1.msra.mxu0 0.0
    %976 = vmatprep.subr.mxu0 0.0
    %977 = vmatpush1.msra.mxu0 0.0
    %978 = vmatprep.subr.mxu0 0.0
    %979 = vmatpush1.msra.mxu0 0.0
    %980 = vmatprep.subr.mxu0 0.0
    %981 = vmatpush1.msra.mxu0 0.0
    %982 = vmatprep.subr.mxu0 0.0
    %983 = vmatpush1.msra.mxu0 0.0
    %984 = vmatprep.subr.mxu0 0.0
    %985 = vmatpush1.msra.mxu0 0.0
    %986 = vmatprep.subr.mxu0 0.0
    %987 = vmatpush1.msra.mxu0 0.0
    %988 = vmatprep.subr.mxu0 0.0
    %989 = vmatpush1.msra.mxu0 0.0
    %990 = vmatprep.subr.mxu0 0.0
    %991 = vmatpush1.msra.mxu0 0.0
    %992 = vmatprep.subr.mxu0 0.0
    %993 = vmatpush1.msra.mxu0 0.0
    %994 = vmatprep.subr.mxu0 0.0
    %995 = vmatpush1.msra.mxu0 0.0
    %996 = vmatprep.subr.mxu0 0.0
    %997 = vmatpush1.msra.mxu0 0.0
    %998 = vmatprep.subr.mxu0 0.0
    %999 = vmatpush1.msra.mxu0 0.0
    %1000 = vmatprep.subr.mxu0 0.0
    %1001 = vmatpush1.msra.mxu0 0.0
    %1002 = vmatprep.subr.mxu0 0.0
    %1003 = vmatpush1.msra.mxu0 0.0
    %1004 = vmatprep.mubr.f32.mxu0 0.0
    %1005 = vmatmul.mubr.f32.gmra.mrb[0].mxu0 %v938
    %v1006 = vpop.f32.mrb[0].mxu0
    %v1007 = vadd.f32 %v932, %v1006
    %v1008 = vpop.f32.mrb[0].mxu0
    %1009 = vdwg.mxu0
    %v1010 = vxor.u32 %v1007, 2147483648
    %v1011 = vmul.f32 %v1010, 1.442695
    %v1012 = vpow.pop %v1011
    %v1013 = vadd.f32 %v1012, 1.0
    %v1014 = vrcp.pop %v1013
    %v1015 = vmul.f32 1.0, %v1014
    %v1016 = vtanh.pop %v1007
    %v1017 = vmul.f32 %v1015, %v759
    %1019 = vrot.lane.b32.xlu0 %v1016, 64
    %v1020 = vpop.permute.xlu0 %1019
    %v1022 = vmul.f32 %v1015, %v1020
    %1024 = vrot.lane.b32.xlu0 %v1022, 32
    %v1025 = vpop.permute.xlu0 %1024
    %v1027 = vadd.f32 %v1017, %v1025
    %v1028 = vtanh.pop %v1027
    %1030 = vrot.lane.b32.xlu0 %v1028, 64
    %v1031 = vpop.permute.xlu0 %1030
    %v1033 = vmul.f32 %v1015, %v1031
    %1034 = vmatprep.subr.mxu0 0.0
    %1035 = vmatpush1.msra.mxu0 %v109
    %1036 = vmatprep.subr.mxu0 0.0
    %1037 = vmatpush1.msra.mxu0 %v110
    %1038 = vmatprep.subr.mxu0 0.0
    %1039 = vmatpush1.msra.mxu0 %v111
    %1040 = vmatprep.subr.mxu0 0.0
    %1041 = vmatpush1.msra.mxu0 %v112
    %1042 = vmatprep.subr.mxu0 0.0
    %1043 = vmatpush1.msra.mxu0 0.0
    %1044 = vmatprep.subr.mxu0 0.0
    %1045 = vmatpush1.msra.mxu0 0.0
    %1046 = vmatprep.subr.mxu0 0.0
    %1047 = vmatpush1.msra.mxu0 0.0
    %1048 = vmatprep.subr.mxu0 0.0
    %1049 = vmatpush1.msra.mxu0 0.0
    %1050 = vmatprep.subr.mxu0 0.0
    %1051 = vmatpush1.msra.mxu0 0.0
    %1052 = vmatprep.subr.mxu0 0.0
    %1053 = vmatpush1.msra.mxu0 0.0
    %1054 = vmatprep.subr.mxu0 0.0
    %1055 = vmatpush1.msra.mxu0 0.0
    %1056 = vmatprep.subr.mxu0 0.0
    %1057 = vmatpush1.msra.mxu0 0.0
    %1058 = vmatprep.subr.mxu0 0.0
    %1059 = vmatpush1.msra.mxu0 0.0
    %1060 = vmatprep.subr.mxu0 0.0
    %1061 = vmatpush1.msra.mxu0 0.0
    %1062 = vmatprep.subr.mxu0 0.0
    %1063 = vmatpush1.msra.mxu0 0.0
    %1064 = vmatprep.subr.mxu0 0.0
    %1065 = vmatpush1.msra.mxu0 0.0
    %1066 = vmatprep.subr.mxu0 0.0
    %1067 = vmatpush1.msra.mxu0 0.0
    %1068 = vmatprep.subr.mxu0 0.0
    %1069 = vmatpush1.msra.mxu0 0.0
    %1070 = vmatprep.subr.mxu0 0.0
    %1071 = vmatpush1.msra.mxu0 0.0
    %1072 = vmatprep.subr.mxu0 0.0
    %1073 = vmatpush1.msra.mxu0 0.0
    %1074 = vmatprep.subr.mxu0 0.0
    %1075 = vmatpush1.msra.mxu0 0.0
    %1076 = vmatprep.subr.mxu0 0.0
    %1077 = vmatpush1.msra.mxu0 0.0
    %1078 = vmatprep.subr.mxu0 0.0
    %1079 = vmatpush1.msra.mxu0 0.0
    %1080 = vmatprep.subr.mxu0 0.0
    %1081 = vmatpush1.msra.mxu0 0.0
    %1082 = vmatprep.subr.mxu0 0.0
    %1083 = vmatpush1.msra.mxu0 0.0
    %1084 = vmatprep.subr.mxu0 0.0
    %1085 = vmatpush1.msra.mxu0 0.0
    %1086 = vmatprep.subr.mxu0 0.0
    %1087 = vmatpush1.msra.mxu0 0.0
    %1088 = vmatprep.subr.mxu0 0.0
    %1089 = vmatpush1.msra.mxu0 0.0
    %1090 = vmatprep.subr.mxu0 0.0
    %1091 = vmatpush1.msra.mxu0 0.0
    %1092 = vmatprep.subr.mxu0 0.0
    %1093 = vmatpush1.msra.mxu0 0.0
    %1094 = vmatprep.subr.mxu0 0.0
    %1095 = vmatpush1.msra.mxu0 0.0
    %1096 = vmatprep.subr.mxu0 0.0
    %1097 = vmatpush1.msra.mxu0 0.0
    %1098 = vmatprep.mubr.f32.mxu0 0.0
    %1099 = vmatmul.mubr.f32.gmra.mrb[0].mxu0 %v938
    %v1100 = vpop.f32.mrb[0].mxu0
    %v1101 = vadd.f32 %v220, %v1100
    %v1102 = vpop.f32.mrb[0].mxu0
    %1103 = vdwg.mxu0
    %v1104 = vxor.u32 %v1101, 2147483648
    %v1105 = vmul.f32 %v1104, 1.442695
    %v1106 = vpow.pop %v1105
    %v1107 = vadd.f32 %v1106, 1.0
    %v1108 = vrcp.pop %v1107
    %v1109 = vmul.f32 1.0, %v1108
    %v1110 = vtanh.pop %v1101
    %v1111 = vmul.f32 %v1109, %v853
    %1113 = vrot.lane.b32.xlu0 %v1110, 64
    %v1114 = vpop.permute.xlu0 %1113
    %v1116 = vmul.f32 %v1109, %v1114
    %1118 = vrot.lane.b32.xlu0 %v1116, 32
    %v1119 = vpop.permute.xlu0 %1118
    %v1121 = vadd.f32 %v1111, %v1119
    %v1122 = vtanh.pop %v1121
    %1124 = vrot.lane.b32.xlu0 %v1122, 64
    %v1125 = vpop.permute.xlu0 %1124
    %v1127 = vmul.f32 %v1109, %v1125
    %1129 = vrot.lane.b32.xlu0 %v1033, 32
    %v1130 = vpop.permute.xlu0 %1129
    %v1131 = vsel %vm225, %v1130, 0
    %1133 = vmatprep.subr.mxu0 0.0
    %1134 = vmatpush1.msra.mxu0 %v114
    %1135 = vmatprep.subr.mxu0 0.0
    %1136 = vmatpush1.msra.mxu0 %v115
    %1137 = vmatprep.subr.mxu0 0.0
    %1138 = vmatpush1.msra.mxu0 %v116
    %1139 = vmatprep.subr.mxu0 0.0
    %1140 = vmatpush1.msra.mxu0 %v117
    %1141 = vmatprep.subr.mxu0 0.0
    %1142 = vmatpush1.msra.mxu0 0.0
    %1143 = vmatprep.subr.mxu0 0.0
    %1144 = vmatpush1.msra.mxu0 0.0
    %1145 = vmatprep.subr.mxu0 0.0
    %1146 = vmatpush1.msra.mxu0 0.0
    %1147 = vmatprep.subr.mxu0 0.0
    %1148 = vmatpush1.msra.mxu0 0.0
    %1149 = vmatprep.subr.mxu0 0.0
    %1150 = vmatpush1.msra.mxu0 0.0
    %1151 = vmatprep.subr.mxu0 0.0
    %1152 = vmatpush1.msra.mxu0 0.0
    %1153 = vmatprep.subr.mxu0 0.0
    %1154 = vmatpush1.msra.mxu0 0.0
    %1155 = vmatprep.subr.mxu0 0.0
    %1156 = vmatpush1.msra.mxu0 0.0
    %1157 = vmatprep.subr.mxu0 0.0
    %1158 = vmatpush1.msra.mxu0 0.0
    %1159 = vmatprep.subr.mxu0 0.0
    %1160 = vmatpush1.msra.mxu0 0.0
    %1161 = vmatprep.subr.mxu0 0.0
    %1162 = vmatpush1.msra.mxu0 0.0
    %1163 = vmatprep.subr.mxu0 0.0
    %1164 = vmatpush1.msra.mxu0 0.0
    %1165 = vmatprep.subr.mxu0 0.0
    %1166 = vmatpush1.msra.mxu0 0.0
    %1167 = vmatprep.subr.mxu0 0.0
    %1168 = vmatpush1.msra.mxu0 0.0
    %1169 = vmatprep.subr.mxu0 0.0
    %1170 = vmatpush1.msra.mxu0 0.0
    %1171 = vmatprep.subr.mxu0 0.0
    %1172 = vmatpush1.msra.mxu0 0.0
    %1173 = vmatprep.subr.mxu0 0.0
    %1174 = vmatpush1.msra.mxu0 0.0
    %1175 = vmatprep.subr.mxu0 0.0
    %1176 = vmatpush1.msra.mxu0 0.0
    %1177 = vmatprep.subr.mxu0 0.0
    %1178 = vmatpush1.msra.mxu0 0.0
    %1179 = vmatprep.subr.mxu0 0.0
    %1180 = vmatpush1.msra.mxu0 0.0
    %1181 = vmatprep.subr.mxu0 0.0
    %1182 = vmatpush1.msra.mxu0 0.0
    %1183 = vmatprep.subr.mxu0 0.0
    %1184 = vmatpush1.msra.mxu0 0.0
    %1185 = vmatprep.subr.mxu0 0.0
    %1186 = vmatpush1.msra.mxu0 0.0
    %1187 = vmatprep.subr.mxu0 0.0
    %1188 = vmatpush1.msra.mxu0 0.0
    %1189 = vmatprep.subr.mxu0 0.0
    %1190 = vmatpush1.msra.mxu0 0.0
    %1191 = vmatprep.subr.mxu0 0.0
    %1192 = vmatpush1.msra.mxu0 0.0
    %1193 = vmatprep.subr.mxu0 0.0
    %1194 = vmatpush1.msra.mxu0 0.0
    %1195 = vmatprep.subr.mxu0 0.0
    %1196 = vmatpush1.msra.mxu0 0.0
    %1197 = vmatprep.mubr.f32.mxu0 0.0
    %1198 = vmatmul.mubr.f32.gmra.mrb[0].mxu0 %v1131
    %v1199 = vpop.f32.mrb[0].mxu0
    %v1200 = vadd.f32 %v327, %v1199
    %v1201 = vpop.f32.mrb[0].mxu0
    %1202 = vdwg.mxu0
    %1204 = vrot.lane.b32.xlu0 %v1127, 32
    %v1205 = vpop.permute.xlu0 %1204
    %v1206 = vsel %vm225, %v1205, 0
    %1208 = vmatprep.subr.mxu0 0.0
    %1209 = vmatpush1.msra.mxu0 %v121
    %1210 = vmatprep.subr.mxu0 0.0
    %1211 = vmatpush1.msra.mxu0 %v122
    %1212 = vmatprep.subr.mxu0 0.0
    %1213 = vmatpush1.msra.mxu0 %v123
    %1214 = vmatprep.subr.mxu0 0.0
    %1215 = vmatpush1.msra.mxu0 %v124
    %1216 = vmatprep.subr.mxu0 0.0
    %1217 = vmatpush1.msra.mxu0 0.0
    %1218 = vmatprep.subr.mxu0 0.0
    %1219 = vmatpush1.msra.mxu0 0.0
    %1220 = vmatprep.subr.mxu0 0.0
    %1221 = vmatpush1.msra.mxu0 0.0
    %1222 = vmatprep.subr.mxu0 0.0
    %1223 = vmatpush1.msra.mxu0 0.0
    %1224 = vmatprep.subr.mxu0 0.0
    %1225 = vmatpush1.msra.mxu0 0.0
    %1226 = vmatprep.subr.mxu0 0.0
    %1227 = vmatpush1.msra.mxu0 0.0
    %1228 = vmatprep.subr.mxu0 0.0
    %1229 = vmatpush1.msra.mxu0 0.0
    %1230 = vmatprep.subr.mxu0 0.0
    %1231 = vmatpush1.msra.mxu0 0.0
    %1232 = vmatprep.subr.mxu0 0.0
    %1233 = vmatpush1.msra.mxu0 0.0
    %1234 = vmatprep.subr.mxu0 0.0
    %1235 = vmatpush1.msra.mxu0 0.0
    %1236 = vmatprep.subr.mxu0 0.0
    %1237 = vmatpush1.msra.mxu0 0.0
    %1238 = vmatprep.subr.mxu0 0.0
    %1239 = vmatpush1.msra.mxu0 0.0
    %1240 = vmatprep.subr.mxu0 0.0
    %1241 = vmatpush1.msra.mxu0 0.0
    %1242 = vmatprep.subr.mxu0 0.0
    %1243 = vmatpush1.msra.mxu0 0.0
    %1244 = vmatprep.subr.mxu0 0.0
    %1245 = vmatpush1.msra.mxu0 0.0
    %1246 = vmatprep.subr.mxu0 0.0
    %1247 = vmatpush1.msra.mxu0 0.0
    %1248 = vmatprep.subr.mxu0 0.0
    %1249 = vmatpush1.msra.mxu0 0.0
    %1250 = vmatprep.subr.mxu0 0.0
    %1251 = vmatpush1.msra.mxu0 0.0
    %1252 = vmatprep.subr.mxu0 0.0
    %1253 = vmatpush1.msra.mxu0 0.0
    %1254 = vmatprep.subr.mxu0 0.0
    %1255 = vmatpush1.msra.mxu0 0.0
    %1256 = vmatprep.subr.mxu0 0.0
    %1257 = vmatpush1.msra.mxu0 0.0
    %1258 = vmatprep.subr.mxu0 0.0
    %1259 = vmatpush1.msra.mxu0 0.0
    %1260 = vmatprep.subr.mxu0 0.0
    %1261 = vmatpush1.msra.mxu0 0.0
    %1262 = vmatprep.subr.mxu0 0.0
    %1263 = vmatpush1.msra.mxu0 0.0
    %1264 = vmatprep.subr.mxu0 0.0
    %1265 = vmatpush1.msra.mxu0 0.0
    %1266 = vmatprep.subr.mxu0 0.0
    %1267 = vmatpush1.msra.mxu0 0.0
    %1268 = vmatprep.subr.mxu0 0.0
    %1269 = vmatpush1.msra.mxu0 0.0
    %1270 = vmatprep.subr.mxu0 0.0
    %1271 = vmatpush1.msra.mxu0 0.0
    %1272 = vmatprep.mubr.f32.mxu0 0.0
    %1273 = vmatmul.mubr.f32.gmra.mrb[0].mxu0 %v1206
    %v1274 = vpop.f32.mrb[0].mxu0
    %v1275 = vadd.f32 %v1200, %v1274
    %v1276 = vpop.f32.mrb[0].mxu0
    %1277 = vdwg.mxu0
    %v1278 = vxor.u32 %v1275, 2147483648
    %v1279 = vmul.f32 %v1278, 1.442695
    %v1280 = vpow.pop %v1279
    %v1281 = vadd.f32 %v1280, 1.0
    %v1282 = vrcp.pop %v1281
    %v1283 = vmul.f32 1.0, %v1282
    %v1284 = vtanh.pop %v1275
    %v1285 = vmul.f32 %v1283, %v1027
    %1287 = vrot.lane.b32.xlu0 %v1284, 64
    %v1288 = vpop.permute.xlu0 %1287
    %v1290 = vmul.f32 %v1283, %v1288
    %1292 = vrot.lane.b32.xlu0 %v1290, 32
    %v1293 = vpop.permute.xlu0 %1292
    %v1295 = vadd.f32 %v1285, %v1293
    %v1296 = vtanh.pop %v1295
    %1298 = vrot.lane.b32.xlu0 %v1296, 64
    %v1299 = vpop.permute.xlu0 %1298
    %v1301 = vmul.f32 %v1283, %v1299
    %1302 = vmatprep.subr.mxu0 0.0
    %1303 = vmatpush1.msra.mxu0 %v109
    %1304 = vmatprep.subr.mxu0 0.0
    %1305 = vmatpush1.msra.mxu0 %v110
    %1306 = vmatprep.subr.mxu0 0.0
    %1307 = vmatpush1.msra.mxu0 %v111
    %1308 = vmatprep.subr.mxu0 0.0
    %1309 = vmatpush1.msra.mxu0 %v112
    %1310 = vmatprep.subr.mxu0 0.0
    %1311 = vmatpush1.msra.mxu0 0.0
    %1312 = vmatprep.subr.mxu0 0.0
    %1313 = vmatpush1.msra.mxu0 0.0
    %1314 = vmatprep.subr.mxu0 0.0
    %1315 = vmatpush1.msra.mxu0 0.0
    %1316 = vmatprep.subr.mxu0 0.0
    %1317 = vmatpush1.msra.mxu0 0.0
    %1318 = vmatprep.subr.mxu0 0.0
    %1319 = vmatpush1.msra.mxu0 0.0
    %1320 = vmatprep.subr.mxu0 0.0
    %1321 = vmatpush1.msra.mxu0 0.0
    %1322 = vmatprep.subr.mxu0 0.0
    %1323 = vmatpush1.msra.mxu0 0.0
    %1324 = vmatprep.subr.mxu0 0.0
    %1325 = vmatpush1.msra.mxu0 0.0
    %1326 = vmatprep.subr.mxu0 0.0
    %1327 = vmatpush1.msra.mxu0 0.0
    %1328 = vmatprep.subr.mxu0 0.0
    %1329 = vmatpush1.msra.mxu0 0.0
    %1330 = vmatprep.subr.mxu0 0.0
    %1331 = vmatpush1.msra.mxu0 0.0
    %1332 = vmatprep.subr.mxu0 0.0
    %1333 = vmatpush1.msra.mxu0 0.0
    %1334 = vmatprep.subr.mxu0 0.0
    %1335 = vmatpush1.msra.mxu0 0.0
    %1336 = vmatprep.subr.mxu0 0.0
    %1337 = vmatpush1.msra.mxu0 0.0
    %1338 = vmatprep.subr.mxu0 0.0
    %1339 = vmatpush1.msra.mxu0 0.0
    %1340 = vmatprep.subr.mxu0 0.0
    %1341 = vmatpush1.msra.mxu0 0.0
    %1342 = vmatprep.subr.mxu0 0.0
    %1343 = vmatpush1.msra.mxu0 0.0
    %1344 = vmatprep.subr.mxu0 0.0
    %1345 = vmatpush1.msra.mxu0 0.0
    %1346 = vmatprep.subr.mxu0 0.0
    %1347 = vmatpush1.msra.mxu0 0.0
    %1348 = vmatprep.subr.mxu0 0.0
    %1349 = vmatpush1.msra.mxu0 0.0
    %1350 = vmatprep.subr.mxu0 0.0
    %1351 = vmatpush1.msra.mxu0 0.0
    %1352 = vmatprep.subr.mxu0 0.0
    %1353 = vmatpush1.msra.mxu0 0.0
    %1354 = vmatprep.subr.mxu0 0.0
    %1355 = vmatpush1.msra.mxu0 0.0
    %1356 = vmatprep.subr.mxu0 0.0
    %1357 = vmatpush1.msra.mxu0 0.0
    %1358 = vmatprep.subr.mxu0 0.0
    %1359 = vmatpush1.msra.mxu0 0.0
    %1360 = vmatprep.subr.mxu0 0.0
    %1361 = vmatpush1.msra.mxu0 0.0
    %1362 = vmatprep.subr.mxu0 0.0
    %1363 = vmatpush1.msra.mxu0 0.0
    %1364 = vmatprep.subr.mxu0 0.0
    %1365 = vmatpush1.msra.mxu0 0.0
    %1366 = vmatprep.mubr.f32.mxu0 0.0
    %1367 = vmatmul.mubr.f32.gmra.mrb[0].mxu0 %v1206
    %v1368 = vpop.f32.mrb[0].mxu0
    %v1369 = vadd.f32 %v221, %v1368
    %v1370 = vpop.f32.mrb[0].mxu0
    %1371 = vdwg.mxu0
    %v1372 = vxor.u32 %v1369, 2147483648
    %v1373 = vmul.f32 %v1372, 1.442695
    %v1374 = vpow.pop %v1373
    %v1375 = vadd.f32 %v1374, 1.0
    %v1376 = vrcp.pop %v1375
    %v1377 = vmul.f32 1.0, %v1376
    %v1378 = vtanh.pop %v1369
    %v1379 = vmul.f32 %v1377, %v1121
    %1381 = vrot.lane.b32.xlu0 %v1378, 64
    %v1382 = vpop.permute.xlu0 %1381
    %v1384 = vmul.f32 %v1377, %v1382
    %1386 = vrot.lane.b32.xlu0 %v1384, 32
    %v1387 = vpop.permute.xlu0 %1386
    %v1389 = vadd.f32 %v1379, %v1387
    %v1390 = vtanh.pop %v1389
    %1392 = vrot.lane.b32.xlu0 %v1390, 64
    %v1393 = vpop.permute.xlu0 %1392
    %v1395 = vmul.f32 %v1377, %v1393
    %1397 = vrot.lane.b32.xlu0 %v1301, 32
    %v1398 = vpop.permute.xlu0 %1397
    %v1399 = vsel %vm225, %v1398, 0
    %1401 = vmatprep.subr.mxu0 0.0
    %1402 = vmatpush1.msra.mxu0 %v114
    %1403 = vmatprep.subr.mxu0 0.0
    %1404 = vmatpush1.msra.mxu0 %v115
    %1405 = vmatprep.subr.mxu0 0.0
    %1406 = vmatpush1.msra.mxu0 %v116
    %1407 = vmatprep.subr.mxu0 0.0
    %1408 = vmatpush1.msra.mxu0 %v117
    %1409 = vmatprep.subr.mxu0 0.0
    %1410 = vmatpush1.msra.mxu0 0.0
    %1411 = vmatprep.subr.mxu0 0.0
    %1412 = vmatpush1.msra.mxu0 0.0
    %1413 = vmatprep.subr.mxu0 0.0
    %1414 = vmatpush1.msra.mxu0 0.0
    %1415 = vmatprep.subr.mxu0 0.0
    %1416 = vmatpush1.msra.mxu0 0.0
    %1417 = vmatprep.subr.mxu0 0.0
    %1418 = vmatpush1.msra.mxu0 0.0
    %1419 = vmatprep.subr.mxu0 0.0
    %1420 = vmatpush1.msra.mxu0 0.0
    %1421 = vmatprep.subr.mxu0 0.0
    %1422 = vmatpush1.msra.mxu0 0.0
    %1423 = vmatprep.subr.mxu0 0.0
    %1424 = vmatpush1.msra.mxu0 0.0
    %1425 = vmatprep.subr.mxu0 0.0
    %1426 = vmatpush1.msra.mxu0 0.0
    %1427 = vmatprep.subr.mxu0 0.0
    %1428 = vmatpush1.msra.mxu0 0.0
    %1429 = vmatprep.subr.mxu0 0.0
    %1430 = vmatpush1.msra.mxu0 0.0
    %1431 = vmatprep.subr.mxu0 0.0
    %1432 = vmatpush1.msra.mxu0 0.0
    %1433 = vmatprep.subr.mxu0 0.0
    %1434 = vmatpush1.msra.mxu0 0.0
    %1435 = vmatprep.subr.mxu0 0.0
    %1436 = vmatpush1.msra.mxu0 0.0
    %1437 = vmatprep.subr.mxu0 0.0
    %1438 = vmatpush1.msra.mxu0 0.0
    %1439 = vmatprep.subr.mxu0 0.0
    %1440 = vmatpush1.msra.mxu0 0.0
    %1441 = vmatprep.subr.mxu0 0.0
    %1442 = vmatpush1.msra.mxu0 0.0
    %1443 = vmatprep.subr.mxu0 0.0
    %1444 = vmatpush1.msra.mxu0 0.0
    %1445 = vmatprep.subr.mxu0 0.0
    %1446 = vmatpush1.msra.mxu0 0.0
    %1447 = vmatprep.subr.mxu0 0.0
    %1448 = vmatpush1.msra.mxu0 0.0
    %1449 = vmatprep.subr.mxu0 0.0
    %1450 = vmatpush1.msra.mxu0 0.0
    %1451 = vmatprep.subr.mxu0 0.0
    %1452 = vmatpush1.msra.mxu0 0.0
    %1453 = vmatprep.subr.mxu0 0.0
    %1454 = vmatpush1.msra.mxu0 0.0
    %1455 = vmatprep.subr.mxu0 0.0
    %1456 = vmatpush1.msra.mxu0 0.0
    %1457 = vmatprep.subr.mxu0 0.0
    %1458 = vmatpush1.msra.mxu0 0.0
    %1459 = vmatprep.subr.mxu0 0.0
    %1460 = vmatpush1.msra.mxu0 0.0
    %1461 = vmatprep.subr.mxu0 0.0
    %1462 = vmatpush1.msra.mxu0 0.0
    %1463 = vmatprep.subr.mxu0 0.0
    %1464 = vmatpush1.msra.mxu0 0.0
    %1465 = vmatprep.mubr.f32.mxu0 0.0
    %1466 = vmatmul.mubr.f32.gmra.mrb[0].mxu0 %v1399
    %v1467 = vpop.f32.mrb[0].mxu0
    %v1468 = vadd.f32 %v327, %v1467
    %v1469 = vpop.f32.mrb[0].mxu0
    %1470 = vdwg.mxu0
    %1472 = vrot.lane.b32.xlu0 %v1395, 32
    %v1473 = vpop.permute.xlu0 %1472
    %v1474 = vsel %vm225, %v1473, 0
    %1476 = vmatprep.subr.mxu0 0.0
    %1477 = vmatpush1.msra.mxu0 %v121
    %1478 = vmatprep.subr.mxu0 0.0
    %1479 = vmatpush1.msra.mxu0 %v122
    %1480 = vmatprep.subr.mxu0 0.0
    %1481 = vmatpush1.msra.mxu0 %v123
    %1482 = vmatprep.subr.mxu0 0.0
    %1483 = vmatpush1.msra.mxu0 %v124
    %1484 = vmatprep.subr.mxu0 0.0
    %1485 = vmatpush1.msra.mxu0 0.0
    %1486 = vmatprep.subr.mxu0 0.0
    %1487 = vmatpush1.msra.mxu0 0.0
    %1488 = vmatprep.subr.mxu0 0.0
    %1489 = vmatpush1.msra.mxu0 0.0
    %1490 = vmatprep.subr.mxu0 0.0
    %1491 = vmatpush1.msra.mxu0 0.0
    %1492 = vmatprep.subr.mxu0 0.0
    %1493 = vmatpush1.msra.mxu0 0.0
    %1494 = vmatprep.subr.mxu0 0.0
    %1495 = vmatpush1.msra.mxu0 0.0
    %1496 = vmatprep.subr.mxu0 0.0
    %1497 = vmatpush1.msra.mxu0 0.0
    %1498 = vmatprep.subr.mxu0 0.0
    %1499 = vmatpush1.msra.mxu0 0.0
    %1500 = vmatprep.subr.mxu0 0.0
    %1501 = vmatpush1.msra.mxu0 0.0
    %1502 = vmatprep.subr.mxu0 0.0
    %1503 = vmatpush1.msra.mxu0 0.0
    %1504 = vmatprep.subr.mxu0 0.0
    %1505 = vmatpush1.msra.mxu0 0.0
    %1506 = vmatprep.subr.mxu0 0.0
    %1507 = vmatpush1.msra.mxu0 0.0
    %1508 = vmatprep.subr.mxu0 0.0
    %1509 = vmatpush1.msra.mxu0 0.0
    %1510 = vmatprep.subr.mxu0 0.0
    %1511 = vmatpush1.msra.mxu0 0.0
    %1512 = vmatprep.subr.mxu0 0.0
    %1513 = vmatpush1.msra.mxu0 0.0
    %1514 = vmatprep.subr.mxu0 0.0
    %1515 = vmatpush1.msra.mxu0 0.0
    %1516 = vmatprep.subr.mxu0 0.0
    %1517 = vmatpush1.msra.mxu0 0.0
    %1518 = vmatprep.subr.mxu0 0.0
    %1519 = vmatpush1.msra.mxu0 0.0
    %1520 = vmatprep.subr.mxu0 0.0
    %1521 = vmatpush1.msra.mxu0 0.0
    %1522 = vmatprep.subr.mxu0 0.0
    %1523 = vmatpush1.msra.mxu0 0.0
    %1524 = vmatprep.subr.mxu0 0.0
    %1525 = vmatpush1.msra.mxu0 0.0
    %1526 = vmatprep.subr.mxu0 0.0
    %1527 = vmatpush1.msra.mxu0 0.0
    %1528 = vmatprep.subr.mxu0 0.0
    %1529 = vmatpush1.msra.mxu0 0.0
    %1530 = vmatprep.subr.mxu0 0.0
    %1531 = vmatpush1.msra.mxu0 0.0
    %1532 = vmatprep.subr.mxu0 0.0
    %1533 = vmatpush1.msra.mxu0 0.0
    %1534 = vmatprep.subr.mxu0 0.0
    %1535 = vmatpush1.msra.mxu0 0.0
    %1536 = vmatprep.subr.mxu0 0.0
    %1537 = vmatpush1.msra.mxu0 0.0
    %1538 = vmatprep.subr.mxu0 0.0
    %1539 = vmatpush1.msra.mxu0 0.0
    %1540 = vmatprep.mubr.f32.mxu0 0.0
    %1541 = vmatmul.mubr.f32.gmra.mrb[0].mxu0 %v1474
    %v1542 = vpop.f32.mrb[0].mxu0
    %v1543 = vadd.f32 %v1468, %v1542
    %v1544 = vpop.f32.mrb[0].mxu0
    %1545 = vdwg.mxu0
    %v1546 = vxor.u32 %v1543, 2147483648
    %v1547 = vmul.f32 %v1546, 1.442695
    %v1548 = vpow.pop %v1547
    %v1549 = vadd.f32 %v1548, 1.0
    %v1550 = vrcp.pop %v1549
    %v1551 = vmul.f32 1.0, %v1550
    %v1552 = vtanh.pop %v1543
    %v1553 = vmul.f32 %v1551, %v1295
    %1555 = vrot.lane.b32.xlu0 %v1552, 64
    %v1556 = vpop.permute.xlu0 %1555
    %v1558 = vmul.f32 %v1551, %v1556
    %1560 = vrot.lane.b32.xlu0 %v1558, 32
    %v1561 = vpop.permute.xlu0 %1560
    %v1563 = vadd.f32 %v1553, %v1561
    %v1564 = vtanh.pop %v1563
    %1566 = vrot.lane.b32.xlu0 %v1564, 64
    %v1567 = vpop.permute.xlu0 %1566
    %v1569 = vmul.f32 %v1551, %v1567
    %1570 = vmatprep.subr.mxu0 0.0
    %1571 = vmatpush1.msra.mxu0 %v109
    %1572 = vmatprep.subr.mxu0 0.0
    %1573 = vmatpush1.msra.mxu0 %v110
    %1574 = vmatprep.subr.mxu0 0.0
    %1575 = vmatpush1.msra.mxu0 %v111
    %1576 = vmatprep.subr.mxu0 0.0
    %1577 = vmatpush1.msra.mxu0 %v112
    %1578 = vmatprep.subr.mxu0 0.0
    %1579 = vmatpush1.msra.mxu0 0.0
    %1580 = vmatprep.subr.mxu0 0.0
    %1581 = vmatpush1.msra.mxu0 0.0
    %1582 = vmatprep.subr.mxu0 0.0
    %1583 = vmatpush1.msra.mxu0 0.0
    %1584 = vmatprep.subr.mxu0 0.0
    %1585 = vmatpush1.msra.mxu0 0.0
    %1586 = vmatprep.subr.mxu0 0.0
    %1587 = vmatpush1.msra.mxu0 0.0
    %1588 = vmatprep.subr.mxu0 0.0
    %1589 = vmatpush1.msra.mxu0 0.0
    %1590 = vmatprep.subr.mxu0 0.0
    %1591 = vmatpush1.msra.mxu0 0.0
    %1592 = vmatprep.subr.mxu0 0.0
    %1593 = vmatpush1.msra.mxu0 0.0
    %1594 = vmatprep.subr.mxu0 0.0
    %1595 = vmatpush1.msra.mxu0 0.0
    %1596 = vmatprep.subr.mxu0 0.0
    %1597 = vmatpush1.msra.mxu0 0.0
    %1598 = vmatprep.subr.mxu0 0.0
    %1599 = vmatpush1.msra.mxu0 0.0
    %1600 = vmatprep.subr.mxu0 0.0
    %1601 = vmatpush1.msra.mxu0 0.0
    %1602 = vmatprep.subr.mxu0 0.0
    %1603 = vmatpush1.msra.mxu0 0.0
    %1604 = vmatprep.subr.mxu0 0.0
    %1605 = vmatpush1.msra.mxu0 0.0
    %1606 = vmatprep.subr.mxu0 0.0
    %1607 = vmatpush1.msra.mxu0 0.0
    %1608 = vmatprep.subr.mxu0 0.0
    %1609 = vmatpush1.msra.mxu0 0.0
    %1610 = vmatprep.subr.mxu0 0.0
    %1611 = vmatpush1.msra.mxu0 0.0
    %1612 = vmatprep.subr.mxu0 0.0
    %1613 = vmatpush1.msra.mxu0 0.0
    %1614 = vmatprep.subr.mxu0 0.0
    %1615 = vmatpush1.msra.mxu0 0.0
    %1616 = vmatprep.subr.mxu0 0.0
    %1617 = vmatpush1.msra.mxu0 0.0
    %1618 = vmatprep.subr.mxu0 0.0
    %1619 = vmatpush1.msra.mxu0 0.0
    %1620 = vmatprep.subr.mxu0 0.0
    %1621 = vmatpush1.msra.mxu0 0.0
    %1622 = vmatprep.subr.mxu0 0.0
    %1623 = vmatpush1.msra.mxu0 0.0
    %1624 = vmatprep.subr.mxu0 0.0
    %1625 = vmatpush1.msra.mxu0 0.0
    %1626 = vmatprep.subr.mxu0 0.0
    %1627 = vmatpush1.msra.mxu0 0.0
    %1628 = vmatprep.subr.mxu0 0.0
    %1629 = vmatpush1.msra.mxu0 0.0
    %1630 = vmatprep.subr.mxu0 0.0
    %1631 = vmatpush1.msra.mxu0 0.0
    %1632 = vmatprep.subr.mxu0 0.0
    %1633 = vmatpush1.msra.mxu0 0.0
    %1634 = vmatprep.mubr.f32.mxu0 0.0
    %1635 = vmatmul.mubr.f32.gmra.mrb[0].mxu0 %v1474
    %v1636 = vpop.f32.mrb[0].mxu0
    %v1637 = vadd.f32 %v222, %v1636
    %v1638 = vpop.f32.mrb[0].mxu0
    %1639 = vdwg.mxu0
    %v1640 = vxor.u32 %v1637, 2147483648
    %v1641 = vmul.f32 %v1640, 1.442695
    %v1642 = vpow.pop %v1641
    %v1643 = vadd.f32 %v1642, 1.0
    %v1644 = vrcp.pop %v1643
    %v1645 = vmul.f32 1.0, %v1644
    %v1646 = vtanh.pop %v1637
    %v1647 = vmul.f32 %v1645, %v1389
    %1649 = vrot.lane.b32.xlu0 %v1646, 64
    %v1650 = vpop.permute.xlu0 %1649
    %v1652 = vmul.f32 %v1645, %v1650
    %1654 = vrot.lane.b32.xlu0 %v1652, 32
    %v1655 = vpop.permute.xlu0 %1654
    %v1657 = vadd.f32 %v1647, %v1655
    %v1658 = vtanh.pop %v1657
    %1660 = vrot.lane.b32.xlu0 %v1658, 64
    %v1661 = vpop.permute.xlu0 %1660
    %v1663 = vmul.f32 %v1645, %v1661
    %1665 = vrot.lane.b32.xlu0 %v1569, 32
    %v1666 = vpop.permute.xlu0 %1665
    %v1667 = vsel %vm225, %v1666, 0
    %1669 = vmatprep.subr.mxu0 0.0
    %1670 = vmatpush1.msra.mxu0 %v114
    %1671 = vmatprep.subr.mxu0 0.0
    %1672 = vmatpush1.msra.mxu0 %v115
    %1673 = vmatprep.subr.mxu0 0.0
    %1674 = vmatpush1.msra.mxu0 %v116
    %1675 = vmatprep.subr.mxu0 0.0
    %1676 = vmatpush1.msra.mxu0 %v117
    %1677 = vmatprep.subr.mxu0 0.0
    %1678 = vmatpush1.msra.mxu0 0.0
    %1679 = vmatprep.subr.mxu0 0.0
    %1680 = vmatpush1.msra.mxu0 0.0
    %1681 = vmatprep.subr.mxu0 0.0
    %1682 = vmatpush1.msra.mxu0 0.0
    %1683 = vmatprep.subr.mxu0 0.0
    %1684 = vmatpush1.msra.mxu0 0.0
    %1685 = vmatprep.subr.mxu0 0.0
    %1686 = vmatpush1.msra.mxu0 0.0
    %1687 = vmatprep.subr.mxu0 0.0
    %1688 = vmatpush1.msra.mxu0 0.0
    %1689 = vmatprep.subr.mxu0 0.0
    %1690 = vmatpush1.msra.mxu0 0.0
    %1691 = vmatprep.subr.mxu0 0.0
    %1692 = vmatpush1.msra.mxu0 0.0
    %1693 = vmatprep.subr.mxu0 0.0
    %1694 = vmatpush1.msra.mxu0 0.0
    %1695 = vmatprep.subr.mxu0 0.0
    %1696 = vmatpush1.msra.mxu0 0.0
    %1697 = vmatprep.subr.mxu0 0.0
    %1698 = vmatpush1.msra.mxu0 0.0
    %1699 = vmatprep.subr.mxu0 0.0
    %1700 = vmatpush1.msra.mxu0 0.0
    %1701 = vmatprep.subr.mxu0 0.0
    %1702 = vmatpush1.msra.mxu0 0.0
    %1703 = vmatprep.subr.mxu0 0.0
    %1704 = vmatpush1.msra.mxu0 0.0
    %1705 = vmatprep.subr.mxu0 0.0
    %1706 = vmatpush1.msra.mxu0 0.0
    %1707 = vmatprep.subr.mxu0 0.0
    %1708 = vmatpush1.msra.mxu0 0.0
    %1709 = vmatprep.subr.mxu0 0.0
    %1710 = vmatpush1.msra.mxu0 0.0
    %1711 = vmatprep.subr.mxu0 0.0
    %1712 = vmatpush1.msra.mxu0 0.0
    %1713 = vmatprep.subr.mxu0 0.0
    %1714 = vmatpush1.msra.mxu0 0.0
    %1715 = vmatprep.subr.mxu0 0.0
    %1716 = vmatpush1.msra.mxu0 0.0
    %1717 = vmatprep.subr.mxu0 0.0
    %1718 = vmatpush1.msra.mxu0 0.0
    %1719 = vmatprep.subr.mxu0 0.0
    %1720 = vmatpush1.msra.mxu0 0.0
    %1721 = vmatprep.subr.mxu0 0.0
    %1722 = vmatpush1.msra.mxu0 0.0
    %1723 = vmatprep.subr.mxu0 0.0
    %1724 = vmatpush1.msra.mxu0 0.0
    %1725 = vmatprep.subr.mxu0 0.0
    %1726 = vmatpush1.msra.mxu0 0.0
    %1727 = vmatprep.subr.mxu0 0.0
    %1728 = vmatpush1.msra.mxu0 0.0
    %1729 = vmatprep.subr.mxu0 0.0
    %1730 = vmatpush1.msra.mxu0 0.0
    %1731 = vmatprep.subr.mxu0 0.0
    %1732 = vmatpush1.msra.mxu0 0.0
    %1733 = vmatprep.mubr.f32.mxu0 0.0
    %1734 = vmatmul.mubr.f32.gmra.mrb[0].mxu0 %v1667
    %v1735 = vpop.f32.mrb[0].mxu0
    %v1736 = vadd.f32 %v327, %v1735
    %v1737 = vpop.f32.mrb[0].mxu0
    %1738 = vdwg.mxu0
    %1740 = vrot.lane.b32.xlu0 %v1663, 32
    %v1741 = vpop.permute.xlu0 %1740
    %v1742 = vsel %vm225, %v1741, 0
    %1744 = vmatprep.subr.mxu0 0.0
    %1745 = vmatpush1.msra.mxu0 %v121
    %1746 = vmatprep.subr.mxu0 0.0
    %1747 = vmatpush1.msra.mxu0 %v122
    %1748 = vmatprep.subr.mxu0 0.0
    %1749 = vmatpush1.msra.mxu0 %v123
    %1750 = vmatprep.subr.mxu0 0.0
    %1751 = vmatpush1.msra.mxu0 %v124
    %1752 = vmatprep.subr.mxu0 0.0
    %1753 = vmatpush1.msra.mxu0 0.0
    %1754 = vmatprep.subr.mxu0 0.0
    %1755 = vmatpush1.msra.mxu0 0.0
    %1756 = vmatprep.subr.mxu0 0.0
    %1757 = vmatpush1.msra.mxu0 0.0
    %1758 = vmatprep.subr.mxu0 0.0
    %1759 = vmatpush1.msra.mxu0 0.0
    %1760 = vmatprep.subr.mxu0 0.0
    %1761 = vmatpush1.msra.mxu0 0.0
    %1762 = vmatprep.subr.mxu0 0.0
    %1763 = vmatpush1.msra.mxu0 0.0
    %1764 = vmatprep.subr.mxu0 0.0
    %1765 = vmatpush1.msra.mxu0 0.0
    %1766 = vmatprep.subr.mxu0 0.0
    %1767 = vmatpush1.msra.mxu0 0.0
    %1768 = vmatprep.subr.mxu0 0.0
    %1769 = vmatpush1.msra.mxu0 0.0
    %1770 = vmatprep.subr.mxu0 0.0
    %1771 = vmatpush1.msra.mxu0 0.0
    %1772 = vmatprep.subr.mxu0 0.0
    %1773 = vmatpush1.msra.mxu0 0.0
    %1774 = vmatprep.subr.mxu0 0.0
    %1775 = vmatpush1.msra.mxu0 0.0
    %1776 = vmatprep.subr.mxu0 0.0
    %1777 = vmatpush1.msra.mxu0 0.0
    %1778 = vmatprep.subr.mxu0 0.0
    %1779 = vmatpush1.msra.mxu0 0.0
    %1780 = vmatprep.subr.mxu0 0.0
    %1781 = vmatpush1.msra.mxu0 0.0
    %1782 = vmatprep.subr.mxu0 0.0
    %1783 = vmatpush1.msra.mxu0 0.0
    %1784 = vmatprep.subr.mxu0 0.0
    %1785 = vmatpush1.msra.mxu0 0.0
    %1786 = vmatprep.subr.mxu0 0.0
    %1787 = vmatpush1.msra.mxu0 0.0
    %1788 = vmatprep.subr.mxu0 0.0
    %1789 = vmatpush1.msra.mxu0 0.0
    %1790 = vmatprep.subr.mxu0 0.0
    %1791 = vmatpush1.msra.mxu0 0.0
    %1792 = vmatprep.subr.mxu0 0.0
    %1793 = vmatpush1.msra.mxu0 0.0
    %1794 = vmatprep.subr.mxu0 0.0
    %1795 = vmatpush1.msra.mxu0 0.0
    %1796 = vmatprep.subr.mxu0 0.0
    %1797 = vmatpush1.msra.mxu0 0.0
    %1798 = vmatprep.subr.mxu0 0.0
    %1799 = vmatpush1.msra.mxu0 0.0
    %1800 = vmatprep.subr.mxu0 0.0
    %1801 = vmatpush1.msra.mxu0 0.0
    %1802 = vmatprep.subr.mxu0 0.0
    %1803 = vmatpush1.msra.mxu0 0.0
    %1804 = vmatprep.subr.mxu0 0.0
    %1805 = vmatpush1.msra.mxu0 0.0
    %1806 = vmatprep.subr.mxu0 0.0
    %1807 = vmatpush1.msra.mxu0 0.0
    %1808 = vmatprep.mubr.f32.mxu0 0.0
    %1809 = vmatmul.mubr.f32.gmra.mrb[0].mxu0 %v1742
    %v1810 = vpop.f32.mrb[0].mxu0
    %v1811 = vadd.f32 %v1736, %v1810
    %v1812 = vpop.f32.mrb[0].mxu0
    %1813 = vdwg.mxu0
    %v1814 = vxor.u32 %v1811, 2147483648
    %v1815 = vmul.f32 %v1814, 1.442695
    %v1816 = vpow.pop %v1815
    %v1817 = vadd.f32 %v1816, 1.0
    %v1818 = vrcp.pop %v1817
    %v1819 = vmul.f32 1.0, %v1818
    %v1820 = vtanh.pop %v1811
    %v1821 = vmul.f32 %v1819, %v1563
    %1823 = vrot.lane.b32.xlu0 %v1820, 64
    %v1824 = vpop.permute.xlu0 %1823
    %v1826 = vmul.f32 %v1819, %v1824
    %1828 = vrot.lane.b32.xlu0 %v1826, 32
    %v1829 = vpop.permute.xlu0 %1828
    %v1831 = vadd.f32 %v1821, %v1829
    %v1832 = vtanh.pop %v1831
    %1834 = vrot.lane.b32.xlu0 %v1832, 64
    %v1835 = vpop.permute.xlu0 %1834
    %v1837 = vmul.f32 %v1819, %v1835
    %1838 = vmatprep.subr.mxu0 0.0
    %1839 = vmatpush1.msra.mxu0 %v109
    %1840 = vmatprep.subr.mxu0 0.0
    %1841 = vmatpush1.msra.mxu0 %v110
    %1842 = vmatprep.subr.mxu0 0.0
    %1843 = vmatpush1.msra.mxu0 %v111
    %1844 = vmatprep.subr.mxu0 0.0
    %1845 = vmatpush1.msra.mxu0 %v112
    %1846 = vmatprep.subr.mxu0 0.0
    %1847 = vmatpush1.msra.mxu0 0.0
    %1848 = vmatprep.subr.mxu0 0.0
    %1849 = vmatpush1.msra.mxu0 0.0
    %1850 = vmatprep.subr.mxu0 0.0
    %1851 = vmatpush1.msra.mxu0 0.0
    %1852 = vmatprep.subr.mxu0 0.0
    %1853 = vmatpush1.msra.mxu0 0.0
    %1854 = vmatprep.subr.mxu0 0.0
    %1855 = vmatpush1.msra.mxu0 0.0
    %1856 = vmatprep.subr.mxu0 0.0
    %1857 = vmatpush1.msra.mxu0 0.0
    %1858 = vmatprep.subr.mxu0 0.0
    %1859 = vmatpush1.msra.mxu0 0.0
    %1860 = vmatprep.subr.mxu0 0.0
    %1861 = vmatpush1.msra.mxu0 0.0
    %1862 = vmatprep.subr.mxu0 0.0
    %1863 = vmatpush1.msra.mxu0 0.0
    %1864 = vmatprep.subr.mxu0 0.0
    %1865 = vmatpush1.msra.mxu0 0.0
    %1866 = vmatprep.subr.mxu0 0.0
    %1867 = vmatpush1.msra.mxu0 0.0
    %1868 = vmatprep.subr.mxu0 0.0
    %1869 = vmatpush1.msra.mxu0 0.0
    %1870 = vmatprep.subr.mxu0 0.0
    %1871 = vmatpush1.msra.mxu0 0.0
    %1872 = vmatprep.subr.mxu0 0.0
    %1873 = vmatpush1.msra.mxu0 0.0
    %1874 = vmatprep.subr.mxu0 0.0
    %1875 = vmatpush1.msra.mxu0 0.0
    %1876 = vmatprep.subr.mxu0 0.0
    %1877 = vmatpush1.msra.mxu0 0.0
    %1878 = vmatprep.subr.mxu0 0.0
    %1879 = vmatpush1.msra.mxu0 0.0
    %1880 = vmatprep.subr.mxu0 0.0
    %1881 = vmatpush1.msra.mxu0 0.0
    %1882 = vmatprep.subr.mxu0 0.0
    %1883 = vmatpush1.msra.mxu0 0.0
    %1884 = vmatprep.subr.mxu0 0.0
    %1885 = vmatpush1.msra.mxu0 0.0
    %1886 = vmatprep.subr.mxu0 0.0
    %1887 = vmatpush1.msra.mxu0 0.0
    %1888 = vmatprep.subr.mxu0 0.0
    %1889 = vmatpush1.msra.mxu0 0.0
    %1890 = vmatprep.subr.mxu0 0.0
    %1891 = vmatpush1.msra.mxu0 0.0
    %1892 = vmatprep.subr.mxu0 0.0
    %1893 = vmatpush1.msra.mxu0 0.0
    %1894 = vmatprep.subr.mxu0 0.0
    %1895 = vmatpush1.msra.mxu0 0.0
    %1896 = vmatprep.subr.mxu0 0.0
    %1897 = vmatpush1.msra.mxu0 0.0
    %1898 = vmatprep.subr.mxu0 0.0
    %1899 = vmatpush1.msra.mxu0 0.0
    %1900 = vmatprep.subr.mxu0 0.0
    %1901 = vmatpush1.msra.mxu0 0.0
    %1902 = vmatprep.mubr.f32.mxu0 0.0
    %1903 = vmatmul.mubr.f32.gmra.mrb[0].mxu0 %v1742
    %v1904 = vpop.f32.mrb[0].mxu0
    %v1905 = vadd.f32 %v223, %v1904
    %v1906 = vpop.f32.mrb[0].mxu0
    %1907 = vdwg.mxu0
    %v1908 = vxor.u32 %v1905, 2147483648
    %v1909 = vmul.f32 %v1908, 1.442695
    %v1910 = vpow.pop %v1909
    %v1911 = vadd.f32 %v1910, 1.0
    %v1912 = vrcp.pop %v1911
    %v1913 = vmul.f32 1.0, %v1912
    %v1914 = vtanh.pop %v1905
    %v1915 = vmul.f32 %v1913, %v1657
    %1917 = vrot.lane.b32.xlu0 %v1914, 64
    %v1918 = vpop.permute.xlu0 %1917
    %v1920 = vmul.f32 %v1913, %v1918
    %1922 = vrot.lane.b32.xlu0 %v1920, 32
    %v1923 = vpop.permute.xlu0 %1922
    %v1925 = vadd.f32 %v1915, %v1923
    %v1926 = vtanh.pop %v1925
    %1928 = vrot.lane.b32.xlu0 %v1926, 64
    %v1929 = vpop.permute.xlu0 %1928
    %v1931 = vmul.f32 %v1913, %v1929
    %1933 = vrot.lane.b32.xlu0 %v1837, 32
    %v1934 = vpop.permute.xlu0 %1933
    %v1935 = vsel %vm225, %v1934, 0
    %1937 = vmatprep.subr.mxu0 0.0
    %1938 = vmatpush1.msra.mxu0 %v114
    %1939 = vmatprep.subr.mxu0 0.0
    %1940 = vmatpush1.msra.mxu0 %v115
    %1941 = vmatprep.subr.mxu0 0.0
    %1942 = vmatpush1.msra.mxu0 %v116
    %1943 = vmatprep.subr.mxu0 0.0
    %1944 = vmatpush1.msra.mxu0 %v117
    %1945 = vmatprep.subr.mxu0 0.0
    %1946 = vmatpush1.msra.mxu0 0.0
    %1947 = vmatprep.subr.mxu0 0.0
    %1948 = vmatpush1.msra.mxu0 0.0
    %1949 = vmatprep.subr.mxu0 0.0
    %1950 = vmatpush1.msra.mxu0 0.0
    %1951 = vmatprep.subr.mxu0 0.0
    %1952 = vmatpush1.msra.mxu0 0.0
    %1953 = vmatprep.subr.mxu0 0.0
    %1954 = vmatpush1.msra.mxu0 0.0
    %1955 = vmatprep.subr.mxu0 0.0
    %1956 = vmatpush1.msra.mxu0 0.0
    %1957 = vmatprep.subr.mxu0 0.0
    %1958 = vmatpush1.msra.mxu0 0.0
    %1959 = vmatprep.subr.mxu0 0.0
    %1960 = vmatpush1.msra.mxu0 0.0
    %1961 = vmatprep.subr.mxu0 0.0
    %1962 = vmatpush1.msra.mxu0 0.0
    %1963 = vmatprep.subr.mxu0 0.0
    %1964 = vmatpush1.msra.mxu0 0.0
    %1965 = vmatprep.subr.mxu0 0.0
    %1966 = vmatpush1.msra.mxu0 0.0
    %1967 = vmatprep.subr.mxu0 0.0
    %1968 = vmatpush1.msra.mxu0 0.0
    %1969 = vmatprep.subr.mxu0 0.0
    %1970 = vmatpush1.msra.mxu0 0.0
    %1971 = vmatprep.subr.mxu0 0.0
    %1972 = vmatpush1.msra.mxu0 0.0
    %1973 = vmatprep.subr.mxu0 0.0
    %1974 = vmatpush1.msra.mxu0 0.0
    %1975 = vmatprep.subr.mxu0 0.0
    %1976 = vmatpush1.msra.mxu0 0.0
    %1977 = vmatprep.subr.mxu0 0.0
    %1978 = vmatpush1.msra.mxu0 0.0
    %1979 = vmatprep.subr.mxu0 0.0
    %1980 = vmatpush1.msra.mxu0 0.0
    %1981 = vmatprep.subr.mxu0 0.0
    %1982 = vmatpush1.msra.mxu0 0.0
    %1983 = vmatprep.subr.mxu0 0.0
    %1984 = vmatpush1.msra.mxu0 0.0
    %1985 = vmatprep.subr.mxu0 0.0
    %1986 = vmatpush1.msra.mxu0 0.0
    %1987 = vmatprep.subr.mxu0 0.0
    %1988 = vmatpush1.msra.mxu0 0.0
    %1989 = vmatprep.subr.mxu0 0.0
    %1990 = vmatpush1.msra.mxu0 0.0
    %1991 = vmatprep.subr.mxu0 0.0
    %1992 = vmatpush1.msra.mxu0 0.0
    %1993 = vmatprep.subr.mxu0 0.0
    %1994 = vmatpush1.msra.mxu0 0.0
    %1995 = vmatprep.subr.mxu0 0.0
    %1996 = vmatpush1.msra.mxu0 0.0
    %1997 = vmatprep.subr.mxu0 0.0
    %1998 = vmatpush1.msra.mxu0 0.0
    %1999 = vmatprep.subr.mxu0 0.0
    %2000 = vmatpush1.msra.mxu0 0.0
    %2001 = vmatprep.mubr.f32.mxu0 0.0
    %2002 = vmatmul.mubr.f32.gmra.mrb[0].mxu0 %v1935
    %v2003 = vpop.f32.mrb[0].mxu0
    %v2004 = vadd.f32 %v327, %v2003
    %v2005 = vpop.f32.mrb[0].mxu0
    %2006 = vdwg.mxu0
    %2008 = vrot.lane.b32.xlu0 %v1931, 32
    %v2009 = vpop.permute.xlu0 %2008
    %v2010 = vsel %vm225, %v2009, 0
    %2012 = vmatprep.subr.mxu0 0.0
    %2013 = vmatpush1.msra.mxu0 %v121
    %2014 = vmatprep.subr.mxu0 0.0
    %2015 = vmatpush1.msra.mxu0 %v122
    %2016 = vmatprep.subr.mxu0 0.0
    %2017 = vmatpush1.msra.mxu0 %v123
    %2018 = vmatprep.subr.mxu0 0.0
    %2019 = vmatpush1.msra.mxu0 %v124
    %2020 = vmatprep.subr.mxu0 0.0
    %2021 = vmatpush1.msra.mxu0 0.0
    %2022 = vmatprep.subr.mxu0 0.0
    %2023 = vmatpush1.msra.mxu0 0.0
    %2024 = vmatprep.subr.mxu0 0.0
    %2025 = vmatpush1.msra.mxu0 0.0
    %2026 = vmatprep.subr.mxu0 0.0
    %2027 = vmatpush1.msra.mxu0 0.0
    %2028 = vmatprep.subr.mxu0 0.0
    %2029 = vmatpush1.msra.mxu0 0.0
    %2030 = vmatprep.subr.mxu0 0.0
    %2031 = vmatpush1.msra.mxu0 0.0
    %2032 = vmatprep.subr.mxu0 0.0
    %2033 = vmatpush1.msra.mxu0 0.0
    %2034 = vmatprep.subr.mxu0 0.0
    %2035 = vmatpush1.msra.mxu0 0.0
    %2036 = vmatprep.subr.mxu0 0.0
    %2037 = vmatpush1.msra.mxu0 0.0
    %2038 = vmatprep.subr.mxu0 0.0
    %2039 = vmatpush1.msra.mxu0 0.0
    %2040 = vmatprep.subr.mxu0 0.0
    %2041 = vmatpush1.msra.mxu0 0.0
    %2042 = vmatprep.subr.mxu0 0.0
    %2043 = vmatpush1.msra.mxu0 0.0
    %2044 = vmatprep.subr.mxu0 0.0
    %2045 = vmatpush1.msra.mxu0 0.0
    %2046 = vmatprep.subr.mxu0 0.0
    %2047 = vmatpush1.msra.mxu0 0.0
    %2048 = vmatprep.subr.mxu0 0.0
    %2049 = vmatpush1.msra.mxu0 0.0
    %2050 = vmatprep.subr.mxu0 0.0
    %2051 = vmatpush1.msra.mxu0 0.0
    %2052 = vmatprep.subr.mxu0 0.0
    %2053 = vmatpush1.msra.mxu0 0.0
    %2054 = vmatprep.subr.mxu0 0.0
    %2055 = vmatpush1.msra.mxu0 0.0
    %2056 = vmatprep.subr.mxu0 0.0
    %2057 = vmatpush1.msra.mxu0 0.0
    %2058 = vmatprep.subr.mxu0 0.0
    %2059 = vmatpush1.msra.mxu0 0.0
    %2060 = vmatprep.subr.mxu0 0.0
    %2061 = vmatpush1.msra.mxu0 0.0
    %2062 = vmatprep.subr.mxu0 0.0
    %2063 = vmatpush1.msra.mxu0 0.0
    %2064 = vmatprep.subr.mxu0 0.0
    %2065 = vmatpush1.msra.mxu0 0.0
    %2066 = vmatprep.subr.mxu0 0.0
    %2067 = vmatpush1.msra.mxu0 0.0
    %2068 = vmatprep.subr.mxu0 0.0
    %2069 = vmatpush1.msra.mxu0 0.0
    %2070 = vmatprep.subr.mxu0 0.0
    %2071 = vmatpush1.msra.mxu0 0.0
    %2072 = vmatprep.subr.mxu0 0.0
    %2073 = vmatpush1.msra.mxu0 0.0
    %2074 = vmatprep.subr.mxu0 0.0
    %2075 = vmatpush1.msra.mxu0 0.0
    %2076 = vmatprep.mubr.f32.mxu0 0.0
    %2077 = vmatmul.mubr.f32.gmra.mrb[0].mxu0 %v2010
    %v2078 = vpop.f32.mrb[0].mxu0
    %v2079 = vadd.f32 %v2004, %v2078
    %v2080 = vpop.f32.mrb[0].mxu0
    %2081 = vdwg.mxu0
    %v2082 = vxor.u32 %v2079, 2147483648
    %v2083 = vmul.f32 %v2082, 1.442695
    %v2084 = vpow.pop %v2083
    %v2085 = vadd.f32 %v2084, 1.0
    %v2086 = vrcp.pop %v2085
    %v2087 = vmul.f32 1.0, %v2086
    %v2088 = vtanh.pop %v2079
    %v2089 = vmul.f32 %v2087, %v1831
    %2091 = vrot.lane.b32.xlu0 %v2088, 64
    %v2092 = vpop.permute.xlu0 %2091
    %v2094 = vmul.f32 %v2087, %v2092
    %2096 = vrot.lane.b32.xlu0 %v2094, 32
    %v2097 = vpop.permute.xlu0 %2096
    %v2099 = vadd.f32 %v2089, %v2097
    %v2100 = vtanh.pop %v2099
    %2102 = vrot.lane.b32.xlu0 %v2100, 64
    %v2103 = vpop.permute.xlu0 %2102
    %v2105 = vmul.f32 %v2087, %v2103
    %2106 = vmatprep.subr.mxu0 0.0
    %2107 = vmatpush1.msra.mxu0 %v109
    %2108 = vmatprep.subr.mxu0 0.0
    %2109 = vmatpush1.msra.mxu0 %v110
    %2110 = vmatprep.subr.mxu0 0.0
    %2111 = vmatpush1.msra.mxu0 %v111
    %2112 = vmatprep.subr.mxu0 0.0
    %2113 = vmatpush1.msra.mxu0 %v112
    %2114 = vmatprep.subr.mxu0 0.0
    %2115 = vmatpush1.msra.mxu0 0.0
    %2116 = vmatprep.subr.mxu0 0.0
    %2117 = vmatpush1.msra.mxu0 0.0
    %2118 = vmatprep.subr.mxu0 0.0
    %2119 = vmatpush1.msra.mxu0 0.0
    %2120 = vmatprep.subr.mxu0 0.0
    %2121 = vmatpush1.msra.mxu0 0.0
    %2122 = vmatprep.subr.mxu0 0.0
    %2123 = vmatpush1.msra.mxu0 0.0
    %2124 = vmatprep.subr.mxu0 0.0
    %2125 = vmatpush1.msra.mxu0 0.0
    %2126 = vmatprep.subr.mxu0 0.0
    %2127 = vmatpush1.msra.mxu0 0.0
    %2128 = vmatprep.subr.mxu0 0.0
    %2129 = vmatpush1.msra.mxu0 0.0
    %2130 = vmatprep.subr.mxu0 0.0
    %2131 = vmatpush1.msra.mxu0 0.0
    %2132 = vmatprep.subr.mxu0 0.0
    %2133 = vmatpush1.msra.mxu0 0.0
    %2134 = vmatprep.subr.mxu0 0.0
    %2135 = vmatpush1.msra.mxu0 0.0
    %2136 = vmatprep.subr.mxu0 0.0
    %2137 = vmatpush1.msra.mxu0 0.0
    %2138 = vmatprep.subr.mxu0 0.0
    %2139 = vmatpush1.msra.mxu0 0.0
    %2140 = vmatprep.subr.mxu0 0.0
    %2141 = vmatpush1.msra.mxu0 0.0
    %2142 = vmatprep.subr.mxu0 0.0
    %2143 = vmatpush1.msra.mxu0 0.0
    %2144 = vmatprep.subr.mxu0 0.0
    %2145 = vmatpush1.msra.mxu0 0.0
    %2146 = vmatprep.subr.mxu0 0.0
    %2147 = vmatpush1.msra.mxu0 0.0
    %2148 = vmatprep.subr.mxu0 0.0
    %2149 = vmatpush1.msra.mxu0 0.0
    %2150 = vmatprep.subr.mxu0 0.0
    %2151 = vmatpush1.msra.mxu0 0.0
    %2152 = vmatprep.subr.mxu0 0.0
    %2153 = vmatpush1.msra.mxu0 0.0
    %2154 = vmatprep.subr.mxu0 0.0
    %2155 = vmatpush1.msra.mxu0 0.0
    %2156 = vmatprep.subr.mxu0 0.0
    %2157 = vmatpush1.msra.mxu0 0.0
    %2158 = vmatprep.subr.mxu0 0.0
    %2159 = vmatpush1.msra.mxu0 0.0
    %2160 = vmatprep.subr.mxu0 0.0
    %2161 = vmatpush1.msra.mxu0 0.0
    %2162 = vmatprep.subr.mxu0 0.0
    %2163 = vmatpush1.msra.mxu0 0.0
    %2164 = vmatprep.subr.mxu0 0.0
    %2165 = vmatpush1.msra.mxu0 0.0
    %2166 = vmatprep.subr.mxu0 0.0
    %2167 = vmatpush1.msra.mxu0 0.0
    %2168 = vmatprep.subr.mxu0 0.0
    %2169 = vmatpush1.msra.mxu0 0.0
    %2170 = vmatprep.mubr.f32.mxu0 0.0
    %2171 = vmatmul.mubr.f32.gmra.mrb[0].mxu0 %v2010
    %v2172 = vpop.f32.mrb[0].mxu0
    %v2173 = vadd.f32 %v224, %v2172
    %v2174 = vpop.f32.mrb[0].mxu0
    %2175 = vdwg.mxu0
    %v2176 = vxor.u32 %v2173, 2147483648
    %v2177 = vmul.f32 %v2176, 1.442695
    %v2178 = vpow.pop %v2177
    %v2179 = vadd.f32 %v2178, 1.0
    %v2180 = vrcp.pop %v2179
    %v2181 = vmul.f32 1.0, %v2180
    %v2182 = vtanh.pop %v2173
    %v2183 = vmul.f32 %v2181, %v1925
    %2185 = vrot.lane.b32.xlu0 %v2182, 64
    %v2186 = vpop.permute.xlu0 %2185
    %v2188 = vmul.f32 %v2181, %v2186
    %2190 = vrot.lane.b32.xlu0 %v2188, 32
    %v2191 = vpop.permute.xlu0 %2190
    %v2193 = vadd.f32 %v2183, %v2191
    %v2194 = vtanh.pop %v2193
    %2196 = vrot.lane.b32.xlu0 %v2194, 64
    %v2197 = vpop.permute.xlu0 %2196
    %v2199 = vmul.f32 %v2181, %v2197
    %2201 = vrot.lane.b32.xlu0 %v2105, 32
    %v2202 = vpop.permute.xlu0 %2201
    %v2203 = vsel %vm225, %v2202, 0
    %2205 = vmatprep.subr.mxu0 0.0
    %2206 = vmatpush1.msra.mxu0 %v114
    %2207 = vmatprep.subr.mxu0 0.0
    %2208 = vmatpush1.msra.mxu0 %v115
    %2209 = vmatprep.subr.mxu0 0.0
    %2210 = vmatpush1.msra.mxu0 %v116
    %2211 = vmatprep.subr.mxu0 0.0
    %2212 = vmatpush1.msra.mxu0 %v117
    %2213 = vmatprep.subr.mxu0 0.0
    %2214 = vmatpush1.msra.mxu0 0.0
    %2215 = vmatprep.subr.mxu0 0.0
    %2216 = vmatpush1.msra.mxu0 0.0
    %2217 = vmatprep.subr.mxu0 0.0
    %2218 = vmatpush1.msra.mxu0 0.0
    %2219 = vmatprep.subr.mxu0 0.0
    %2220 = vmatpush1.msra.mxu0 0.0
    %2221 = vmatprep.subr.mxu0 0.0
    %2222 = vmatpush1.msra.mxu0 0.0
    %2223 = vmatprep.subr.mxu0 0.0
    %2224 = vmatpush1.msra.mxu0 0.0
    %2225 = vmatprep.subr.mxu0 0.0
    %2226 = vmatpush1.msra.mxu0 0.0
    %2227 = vmatprep.subr.mxu0 0.0
    %2228 = vmatpush1.msra.mxu0 0.0
    %2229 = vmatprep.subr.mxu0 0.0
    %2230 = vmatpush1.msra.mxu0 0.0
    %2231 = vmatprep.subr.mxu0 0.0
    %2232 = vmatpush1.msra.mxu0 0.0
    %2233 = vmatprep.subr.mxu0 0.0
    %2234 = vmatpush1.msra.mxu0 0.0
    %2235 = vmatprep.subr.mxu0 0.0
    %2236 = vmatpush1.msra.mxu0 0.0
    %2237 = vmatprep.subr.mxu0 0.0
    %2238 = vmatpush1.msra.mxu0 0.0
    %2239 = vmatprep.subr.mxu0 0.0
    %2240 = vmatpush1.msra.mxu0 0.0
    %2241 = vmatprep.subr.mxu0 0.0
    %2242 = vmatpush1.msra.mxu0 0.0
    %2243 = vmatprep.subr.mxu0 0.0
    %2244 = vmatpush1.msra.mxu0 0.0
    %2245 = vmatprep.subr.mxu0 0.0
    %2246 = vmatpush1.msra.mxu0 0.0
    %2247 = vmatprep.subr.mxu0 0.0
    %2248 = vmatpush1.msra.mxu0 0.0
    %2249 = vmatprep.subr.mxu0 0.0
    %2250 = vmatpush1.msra.mxu0 0.0
    %2251 = vmatprep.subr.mxu0 0.0
    %2252 = vmatpush1.msra.mxu0 0.0
    %2253 = vmatprep.subr.mxu0 0.0
    %2254 = vmatpush1.msra.mxu0 0.0
    %2255 = vmatprep.subr.mxu0 0.0
    %2256 = vmatpush1.msra.mxu0 0.0
    %2257 = vmatprep.subr.mxu0 0.0
    %2258 = vmatpush1.msra.mxu0 0.0
    %2259 = vmatprep.subr.mxu0 0.0
    %2260 = vmatpush1.msra.mxu0 0.0
    %2261 = vmatprep.subr.mxu0 0.0
    %2262 = vmatpush1.msra.mxu0 0.0
    %2263 = vmatprep.subr.mxu0 0.0
    %2264 = vmatpush1.msra.mxu0 0.0
    %2265 = vmatprep.subr.mxu0 0.0
    %2266 = vmatpush1.msra.mxu0 0.0
    %2267 = vmatprep.subr.mxu0 0.0
    %2268 = vmatpush1.msra.mxu0 0.0
    %2269 = vmatprep.mubr.f32.mxu0 0.0
    %2270 = vmatmul.mubr.f32.gmra.mrb[0].mxu0 %v2203
    %v2271 = vpop.f32.mrb[0].mxu0
    %v2272 = vadd.f32 %v327, %v2271
    %v2273 = vpop.f32.mrb[0].mxu0
    %2274 = vdwg.mxu0
    %2276 = vrot.lane.b32.xlu0 %v2199, 32
    %v2277 = vpop.permute.xlu0 %2276
    %v2278 = vsel %vm225, %v2277, 0
    %2280 = vmatprep.subr.mxu0 0.0
    %2281 = vmatpush1.msra.mxu0 %v121
    %2282 = vmatprep.subr.mxu0 0.0
    %2283 = vmatpush1.msra.mxu0 %v122
    %2284 = vmatprep.subr.mxu0 0.0
    %2285 = vmatpush1.msra.mxu0 %v123
    %2286 = vmatprep.subr.mxu0 0.0
    %2287 = vmatpush1.msra.mxu0 %v124
    %2288 = vmatprep.subr.mxu0 0.0
    %2289 = vmatpush1.msra.mxu0 0.0
    %2290 = vmatprep.subr.mxu0 0.0
    %2291 = vmatpush1.msra.mxu0 0.0
    %2292 = vmatprep.subr.mxu0 0.0
    %2293 = vmatpush1.msra.mxu0 0.0
    %2294 = vmatprep.subr.mxu0 0.0
    %2295 = vmatpush1.msra.mxu0 0.0
    %2296 = vmatprep.subr.mxu0 0.0
    %2297 = vmatpush1.msra.mxu0 0.0
    %2298 = vmatprep.subr.mxu0 0.0
    %2299 = vmatpush1.msra.mxu0 0.0
    %2300 = vmatprep.subr.mxu0 0.0
    %2301 = vmatpush1.msra.mxu0 0.0
    %2302 = vmatprep.subr.mxu0 0.0
    %2303 = vmatpush1.msra.mxu0 0.0
    %2304 = vmatprep.subr.mxu0 0.0
    %2305 = vmatpush1.msra.mxu0 0.0
    %2306 = vmatprep.subr.mxu0 0.0
    %2307 = vmatpush1.msra.mxu0 0.0
    %2308 = vmatprep.subr.mxu0 0.0
    %2309 = vmatpush1.msra.mxu0 0.0
    %2310 = vmatprep.subr.mxu0 0.0
    %2311 = vmatpush1.msra.mxu0 0.0
    %2312 = vmatprep.subr.mxu0 0.0
    %2313 = vmatpush1.msra.mxu0 0.0
    %2314 = vmatprep.subr.mxu0 0.0
    %2315 = vmatpush1.msra.mxu0 0.0
    %2316 = vmatprep.subr.mxu0 0.0
    %2317 = vmatpush1.msra.mxu0 0.0
    %2318 = vmatprep.subr.mxu0 0.0
    %2319 = vmatpush1.msra.mxu0 0.0
    %2320 = vmatprep.subr.mxu0 0.0
    %2321 = vmatpush1.msra.mxu0 0.0
    %2322 = vmatprep.subr.mxu0 0.0
    %2323 = vmatpush1.msra.mxu0 0.0
    %2324 = vmatprep.subr.mxu0 0.0
    %2325 = vmatpush1.msra.mxu0 0.0
    %2326 = vmatprep.subr.mxu0 0.0
    %2327 = vmatpush1.msra.mxu0 0.0
    %2328 = vmatprep.subr.mxu0 0.0
    %2329 = vmatpush1.msra.mxu0 0.0
    %2330 = vmatprep.subr.mxu0 0.0
    %2331 = vmatpush1.msra.mxu0 0.0
    %2332 = vmatprep.subr.mxu0 0.0
    %2333 = vmatpush1.msra.mxu0 0.0
    %2334 = vmatprep.subr.mxu0 0.0
    %2335 = vmatpush1.msra.mxu0 0.0
    %2336 = vmatprep.subr.mxu0 0.0
    %2337 = vmatpush1.msra.mxu0 0.0
    %2338 = vmatprep.subr.mxu0 0.0
    %2339 = vmatpush1.msra.mxu0 0.0
    %2340 = vmatprep.subr.mxu0 0.0
    %2341 = vmatpush1.msra.mxu0 0.0
    %2342 = vmatprep.subr.mxu0 0.0
    %2343 = vmatpush1.msra.mxu0 0.0
    %2344 = vmatprep.mubr.f32.mxu0 0.0
    %2345 = vmatmul.mubr.f32.gmra.mrb[0].mxu0 %v2278
    %v2346 = vpop.f32.mrb[0].mxu0
    %v2347 = vadd.f32 %v2272, %v2346
    %v2348 = vpop.f32.mrb[0].mxu0
    %2349 = vdwg.mxu0
    %v2350 = vxor.u32 %v2347, 2147483648
    %v2351 = vmul.f32 %v2350, 1.442695
    %v2352 = vpow.pop %v2351
    %v2353 = vadd.f32 %v2352, 1.0
    %v2354 = vrcp.pop %v2353
    %v2355 = vmul.f32 1.0, %v2354
    %v2356 = vtanh.pop %v2347
    %v2357 = vmul.f32 %v2355, %v2099
    %2359 = vrot.lane.b32.xlu0 %v2356, 64
    %v2360 = vpop.permute.xlu0 %2359
    %v2362 = vmul.f32 %v2355, %v2360
    %2364 = vrot.lane.b32.xlu0 %v2362, 32
    %v2365 = vpop.permute.xlu0 %2364
    %v2367 = vadd.f32 %v2357, %v2365
    %v2368 = vtanh.pop %v2367
    %2370 = vrot.lane.b32.xlu0 %v2368, 64
    %v2371 = vpop.permute.xlu0 %2370
    %v2373 = vmul.f32 %v2355, %v2371
    %v2375 = vlaneseq
    %v2376 = vshrl.u32 %v2375, 7
    %v2377 = vsub.s32 0, %v2376
    %v2378 = vrot.slane %v145, %v2377
    %2380 = vmatprep.subr.mxu0 0.0
    %2381 = vmatpush1.msra.mxu0 %v125
    %2382 = vmatprep.subr.mxu0 0.0
    %2383 = vmatpush1.msra.mxu0 %v126
    %2384 = vmatprep.subr.mxu0 0.0
    %2385 = vmatpush1.msra.mxu0 %v127
    %2386 = vmatprep.subr.mxu0 0.0
    %2387 = vmatpush1.msra.mxu0 %v128
    %2388 = vmatprep.subr.mxu0 0.0
    %2389 = vmatpush1.msra.mxu0 0.0
    %2390 = vmatprep.subr.mxu0 0.0
    %2391 = vmatpush1.msra.mxu0 0.0
    %2392 = vmatprep.subr.mxu0 0.0
    %2393 = vmatpush1.msra.mxu0 0.0
    %2394 = vmatprep.subr.mxu0 0.0
    %2395 = vmatpush1.msra.mxu0 0.0
    %2396 = vmatprep.subr.mxu0 0.0
    %2397 = vmatpush1.msra.mxu0 0.0
    %2398 = vmatprep.subr.mxu0 0.0
    %2399 = vmatpush1.msra.mxu0 0.0
    %2400 = vmatprep.subr.mxu0 0.0
    %2401 = vmatpush1.msra.mxu0 0.0
    %2402 = vmatprep.subr.mxu0 0.0
    %2403 = vmatpush1.msra.mxu0 0.0
    %2404 = vmatprep.subr.mxu0 0.0
    %2405 = vmatpush1.msra.mxu0 0.0
    %2406 = vmatprep.subr.mxu0 0.0
    %2407 = vmatpush1.msra.mxu0 0.0
    %2408 = vmatprep.subr.mxu0 0.0
    %2409 = vmatpush1.msra.mxu0 0.0
    %2410 = vmatprep.subr.mxu0 0.0
    %2411 = vmatpush1.msra.mxu0 0.0
    %2412 = vmatprep.subr.mxu0 0.0
    %2413 = vmatpush1.msra.mxu0 0.0
    %2414 = vmatprep.subr.mxu0 0.0
    %2415 = vmatpush1.msra.mxu0 0.0
    %2416 = vmatprep.subr.mxu0 0.0
    %2417 = vmatpush1.msra.mxu0 0.0
    %2418 = vmatprep.subr.mxu0 0.0
    %2419 = vmatpush1.msra.mxu0 0.0
    %2420 = vmatprep.subr.mxu0 0.0
    %2421 = vmatpush1.msra.mxu0 0.0
    %2422 = vmatprep.subr.mxu0 0.0
    %2423 = vmatpush1.msra.mxu0 0.0
    %2424 = vmatprep.subr.mxu0 0.0
    %2425 = vmatpush1.msra.mxu0 0.0
    %2426 = vmatprep.subr.mxu0 0.0
    %2427 = vmatpush1.msra.mxu0 0.0
    %2428 = vmatprep.subr.mxu0 0.0
    %2429 = vmatpush1.msra.mxu0 0.0
    %2430 = vmatprep.subr.mxu0 0.0
    %2431 = vmatpush1.msra.mxu0 0.0
    %2432 = vmatprep.subr.mxu0 0.0
    %2433 = vmatpush1.msra.mxu0 0.0
    %2434 = vmatprep.subr.mxu0 0.0
    %2435 = vmatpush1.msra.mxu0 0.0
    %2436 = vmatprep.subr.mxu0 0.0
    %2437 = vmatpush1.msra.mxu0 0.0
    %2438 = vmatprep.subr.mxu0 0.0
    %2439 = vmatpush1.msra.mxu0 0.0
    %2440 = vmatprep.subr.mxu0 0.0
    %2441 = vmatpush1.msra.mxu0 0.0
    %2442 = vmatprep.subr.mxu0 0.0
    %2443 = vmatpush1.msra.mxu0 0.0
    %2444 = vmatprep.mubr.f32.mxu0 0.0
    %2445 = vmatmul.mubr.f32.gmra.mrb[0].mxu0 %v2278
    %v2446 = vpop.f32.mrb[0].mxu0
    %v2447 = vadd.f32 %v2378, %v2446
    %v2448 = vpop.f32.mrb[0].mxu0
    %2449 = vdwg.mxu0
    %v2450 = vxor.u32 %v2447, 2147483648
    %v2451 = vmul.f32 %v2450, 1.442695
    %v2452 = vpow.pop %v2451
    %v2453 = vadd.f32 %v2452, 1.0
    %v2454 = vrcp.pop %v2453
    %v2455 = vmul.f32 1.0, %v2454
    %v2456 = vtanh.pop %v2447
    %v2457 = vmul.f32 %v2455, %v2193
    %2459 = vrot.lane.b32.xlu0 %v2456, 64
    %v2460 = vpop.permute.xlu0 %2459
    %v2462 = vmul.f32 %v2455, %v2460
    %2464 = vrot.lane.b32.xlu0 %v2462, 32
    %v2465 = vpop.permute.xlu0 %2464
    %v2467 = vadd.f32 %v2457, %v2465
    %v2468 = vtanh.pop %v2467
    %2470 = vrot.lane.b32.xlu0 %v2468, 64
    %v2471 = vpop.permute.xlu0 %2470
    %v2473 = vmul.f32 %v2455, %v2471
    %v2475 = vlaneseq
    %v2476 = vshrl.u32 %v2475, 7
    %v2477 = vsub.s32 0, %v2476
    %v2478 = vrot.slane %v136, %v2477
    %2481 = vrot.lane.b32.xlu0 %v2373, 32
    %v2482 = vpop.permute.xlu0 %2481
    %v2483 = vsel %vm225, %v2482, 0
    %2485 = vmatprep.subr.mxu0 0.0
    %2486 = vmatpush1.msra.mxu0 %v130
    %2487 = vmatprep.subr.mxu0 0.0
    %2488 = vmatpush1.msra.mxu0 %v131
    %2489 = vmatprep.subr.mxu0 0.0
    %2490 = vmatpush1.msra.mxu0 %v132
    %2491 = vmatprep.subr.mxu0 0.0
    %2492 = vmatpush1.msra.mxu0 %v133
    %2493 = vmatprep.subr.mxu0 0.0
    %2494 = vmatpush1.msra.mxu0 0.0
    %2495 = vmatprep.subr.mxu0 0.0
    %2496 = vmatpush1.msra.mxu0 0.0
    %2497 = vmatprep.subr.mxu0 0.0
    %2498 = vmatpush1.msra.mxu0 0.0
    %2499 = vmatprep.subr.mxu0 0.0
    %2500 = vmatpush1.msra.mxu0 0.0
    %2501 = vmatprep.subr.mxu0 0.0
    %2502 = vmatpush1.msra.mxu0 0.0
    %2503 = vmatprep.subr.mxu0 0.0
    %2504 = vmatpush1.msra.mxu0 0.0
    %2505 = vmatprep.subr.mxu0 0.0
    %2506 = vmatpush1.msra.mxu0 0.0
    %2507 = vmatprep.subr.mxu0 0.0
    %2508 = vmatpush1.msra.mxu0 0.0
    %2509 = vmatprep.subr.mxu0 0.0
    %2510 = vmatpush1.msra.mxu0 0.0
    %2511 = vmatprep.subr.mxu0 0.0
    %2512 = vmatpush1.msra.mxu0 0.0
    %2513 = vmatprep.subr.mxu0 0.0
    %2514 = vmatpush1.msra.mxu0 0.0
    %2515 = vmatprep.subr.mxu0 0.0
    %2516 = vmatpush1.msra.mxu0 0.0
    %2517 = vmatprep.subr.mxu0 0.0
    %2518 = vmatpush1.msra.mxu0 0.0
    %2519 = vmatprep.subr.mxu0 0.0
    %2520 = vmatpush1.msra.mxu0 0.0
    %2521 = vmatprep.subr.mxu0 0.0
    %2522 = vmatpush1.msra.mxu0 0.0
    %2523 = vmatprep.subr.mxu0 0.0
    %2524 = vmatpush1.msra.mxu0 0.0
    %2525 = vmatprep.subr.mxu0 0.0
    %2526 = vmatpush1.msra.mxu0 0.0
    %2527 = vmatprep.subr.mxu0 0.0
    %2528 = vmatpush1.msra.mxu0 0.0
    %2529 = vmatprep.subr.mxu0 0.0
    %2530 = vmatpush1.msra.mxu0 0.0
    %2531 = vmatprep.subr.mxu0 0.0
    %2532 = vmatpush1.msra.mxu0 0.0
    %2533 = vmatprep.subr.mxu0 0.0
    %2534 = vmatpush1.msra.mxu0 0.0
    %2535 = vmatprep.subr.mxu0 0.0
    %2536 = vmatpush1.msra.mxu0 0.0
    %2537 = vmatprep.subr.mxu0 0.0
    %2538 = vmatpush1.msra.mxu0 0.0
    %2539 = vmatprep.subr.mxu0 0.0
    %2540 = vmatpush1.msra.mxu0 0.0
    %2541 = vmatprep.subr.mxu0 0.0
    %2542 = vmatpush1.msra.mxu0 0.0
    %2543 = vmatprep.subr.mxu0 0.0
    %2544 = vmatpush1.msra.mxu0 0.0
    %2545 = vmatprep.subr.mxu0 0.0
    %2546 = vmatpush1.msra.mxu0 0.0
    %2547 = vmatprep.subr.mxu0 0.0
    %2548 = vmatpush1.msra.mxu0 0.0
    %2549 = vmatprep.mubr.f32.mxu0 0.0
    %2550 = vmatmul.mubr.f32.gmra.mrb[0].mxu0 %v2483
    %v2551 = vpop.f32.mrb[0].mxu0
    %v2552 = vadd.f32 %v2478, %v2551
    %v2553 = vpop.f32.mrb[0].mxu0
    %2554 = vdwg.mxu0
    %2556 = vrot.lane.b32.xlu0 %v2473, 32
    %v2557 = vpop.permute.xlu0 %2556
    %v2558 = vsel %vm225, %v2557, 0
    %2560 = vmatprep.subr.mxu0 0.0
    %2561 = vmatpush1.msra.mxu0 %v137
    %2562 = vmatprep.subr.mxu0 0.0
    %2563 = vmatpush1.msra.mxu0 %v138
    %2564 = vmatprep.subr.mxu0 0.0
    %2565 = vmatpush1.msra.mxu0 %v139
    %2566 = vmatprep.subr.mxu0 0.0
    %2567 = vmatpush1.msra.mxu0 %v140
    %2568 = vmatprep.subr.mxu0 0.0
    %2569 = vmatpush1.msra.mxu0 0.0
    %2570 = vmatprep.subr.mxu0 0.0
    %2571 = vmatpush1.msra.mxu0 0.0
    %2572 = vmatprep.subr.mxu0 0.0
    %2573 = vmatpush1.msra.mxu0 0.0
    %2574 = vmatprep.subr.mxu0 0.0
    %2575 = vmatpush1.msra.mxu0 0.0
    %2576 = vmatprep.subr.mxu0 0.0
    %2577 = vmatpush1.msra.mxu0 0.0
    %2578 = vmatprep.subr.mxu0 0.0
    %2579 = vmatpush1.msra.mxu0 0.0
    %2580 = vmatprep.subr.mxu0 0.0
    %2581 = vmatpush1.msra.mxu0 0.0
    %2582 = vmatprep.subr.mxu0 0.0
    %2583 = vmatpush1.msra.mxu0 0.0
    %2584 = vmatprep.subr.mxu0 0.0
    %2585 = vmatpush1.msra.mxu0 0.0
    %2586 = vmatprep.subr.mxu0 0.0
    %2587 = vmatpush1.msra.mxu0 0.0
    %2588 = vmatprep.subr.mxu0 0.0
    %2589 = vmatpush1.msra.mxu0 0.0
    %2590 = vmatprep.subr.mxu0 0.0
    %2591 = vmatpush1.msra.mxu0 0.0
    %2592 = vmatprep.subr.mxu0 0.0
    %2593 = vmatpush1.msra.mxu0 0.0
    %2594 = vmatprep.subr.mxu0 0.0
    %2595 = vmatpush1.msra.mxu0 0.0
    %2596 = vmatprep.subr.mxu0 0.0
    %2597 = vmatpush1.msra.mxu0 0.0
    %2598 = vmatprep.subr.mxu0 0.0
    %2599 = vmatpush1.msra.mxu0 0.0
    %2600 = vmatprep.subr.mxu0 0.0
    %2601 = vmatpush1.msra.mxu0 0.0
    %2602 = vmatprep.subr.mxu0 0.0
    %2603 = vmatpush1.msra.mxu0 0.0
    %2604 = vmatprep.subr.mxu0 0.0
    %2605 = vmatpush1.msra.mxu0 0.0
    %2606 = vmatprep.subr.mxu0 0.0
    %2607 = vmatpush1.msra.mxu0 0.0
    %2608 = vmatprep.subr.mxu0 0.0
    %2609 = vmatpush1.msra.mxu0 0.0
    %2610 = vmatprep.subr.mxu0 0.0
    %2611 = vmatpush1.msra.mxu0 0.0
    %2612 = vmatprep.subr.mxu0 0.0
    %2613 = vmatpush1.msra.mxu0 0.0
    %2614 = vmatprep.subr.mxu0 0.0
    %2615 = vmatpush1.msra.mxu0 0.0
    %2616 = vmatprep.subr.mxu0 0.0
    %2617 = vmatpush1.msra.mxu0 0.0
    %2618 = vmatprep.subr.mxu0 0.0
    %2619 = vmatpush1.msra.mxu0 0.0
    %2620 = vmatprep.subr.mxu0 0.0
    %2621 = vmatpush1.msra.mxu0 0.0
    %2622 = vmatprep.subr.mxu0 0.0
    %2623 = vmatpush1.msra.mxu0 0.0
    %2624 = vmatprep.mubr.f32.mxu0 0.0
    %2625 = vmatmul.mubr.f32.gmra.mrb[0].mxu0 %v2558
    %v2626 = vpop.f32.mrb[0].mxu0
    %v2627 = vadd.f32 %v2552, %v2626
    %v2628 = vpop.f32.mrb[0].mxu0
    %2629 = vdwg.mxu0
    %v2630 = vxor.u32 %v2627, 2147483648
    %v2631 = vmul.f32 %v2630, 1.442695
    %v2632 = vpow.pop %v2631
    %v2633 = vadd.f32 %v2632, 1.0
    %v2634 = vrcp.pop %v2633
    %v2635 = vmul.f32 1.0, %v2634
    %v2636 = vtanh.pop %v2627
    %v2637 = vmul.f32 %v2635, %v2367
    %2639 = vrot.lane.b32.xlu0 %v2636, 64
    %v2640 = vpop.permute.xlu0 %2639
    %v2642 = vmul.f32 %v2635, %v2640
    %2644 = vrot.lane.b32.xlu0 %v2642, 32
    %v2645 = vpop.permute.xlu0 %2644
    %v2647 = vadd.f32 %v2637, %v2645
    %v2648 = vtanh.pop %v2647
    %2650 = vrot.lane.b32.xlu0 %v2648, 64
    %v2651 = vpop.permute.xlu0 %2650
    %v2653 = vmul.f32 %v2635, %v2651
    %v2655 = vlaneseq
    %v2656 = vshrl.u32 %v2655, 7
    %v2657 = vsub.s32 0, %v2656
    %v2658 = vrot.slane %v134, %v2657
    %2660 = vmatprep.subr.mxu0 0.0
    %2661 = vmatpush1.msra.mxu0 %v125
    %2662 = vmatprep.subr.mxu0 0.0
    %2663 = vmatpush1.msra.mxu0 %v126
    %2664 = vmatprep.subr.mxu0 0.0
    %2665 = vmatpush1.msra.mxu0 %v127
    %2666 = vmatprep.subr.mxu0 0.0
    %2667 = vmatpush1.msra.mxu0 %v128
    %2668 = vmatprep.subr.mxu0 0.0
    %2669 = vmatpush1.msra.mxu0 0.0
    %2670 = vmatprep.subr.mxu0 0.0
    %2671 = vmatpush1.msra.mxu0 0.0
    %2672 = vmatprep.subr.mxu0 0.0
    %2673 = vmatpush1.msra.mxu0 0.0
    %2674 = vmatprep.subr.mxu0 0.0
    %2675 = vmatpush1.msra.mxu0 0.0
    %2676 = vmatprep.subr.mxu0 0.0
    %2677 = vmatpush1.msra.mxu0 0.0
    %2678 = vmatprep.subr.mxu0 0.0
    %2679 = vmatpush1.msra.mxu0 0.0
    %2680 = vmatprep.subr.mxu0 0.0
    %2681 = vmatpush1.msra.mxu0 0.0
    %2682 = vmatprep.subr.mxu0 0.0
    %2683 = vmatpush1.msra.mxu0 0.0
    %2684 = vmatprep.subr.mxu0 0.0
    %2685 = vmatpush1.msra.mxu0 0.0
    %2686 = vmatprep.subr.mxu0 0.0
    %2687 = vmatpush1.msra.mxu0 0.0
    %2688 = vmatprep.subr.mxu0 0.0
    %2689 = vmatpush1.msra.mxu0 0.0
    %2690 = vmatprep.subr.mxu0 0.0
    %2691 = vmatpush1.msra.mxu0 0.0
    %2692 = vmatprep.subr.mxu0 0.0
    %2693 = vmatpush1.msra.mxu0 0.0
    %2694 = vmatprep.subr.mxu0 0.0
    %2695 = vmatpush1.msra.mxu0 0.0
    %2696 = vmatprep.subr.mxu0 0.0
    %2697 = vmatpush1.msra.mxu0 0.0
    %2698 = vmatprep.subr.mxu0 0.0
    %2699 = vmatpush1.msra.mxu0 0.0
    %2700 = vmatprep.subr.mxu0 0.0
    %2701 = vmatpush1.msra.mxu0 0.0
    %2702 = vmatprep.subr.mxu0 0.0
    %2703 = vmatpush1.msra.mxu0 0.0
    %2704 = vmatprep.subr.mxu0 0.0
    %2705 = vmatpush1.msra.mxu0 0.0
    %2706 = vmatprep.subr.mxu0 0.0
    %2707 = vmatpush1.msra.mxu0 0.0
    %2708 = vmatprep.subr.mxu0 0.0
    %2709 = vmatpush1.msra.mxu0 0.0
    %2710 = vmatprep.subr.mxu0 0.0
    %2711 = vmatpush1.msra.mxu0 0.0
    %2712 = vmatprep.subr.mxu0 0.0
    %2713 = vmatpush1.msra.mxu0 0.0
    %2714 = vmatprep.subr.mxu0 0.0
    %2715 = vmatpush1.msra.mxu0 0.0
    %2716 = vmatprep.subr.mxu0 0.0
    %2717 = vmatpush1.msra.mxu0 0.0
    %2718 = vmatprep.subr.mxu0 0.0
    %2719 = vmatpush1.msra.mxu0 0.0
    %2720 = vmatprep.subr.mxu0 0.0
    %2721 = vmatpush1.msra.mxu0 0.0
    %2722 = vmatprep.subr.mxu0 0.0
    %2723 = vmatpush1.msra.mxu0 0.0
    %2724 = vmatprep.mubr.f32.mxu0 0.0
    %2725 = vmatmul.mubr.f32.gmra.mrb[0].mxu0 %v2558
    %v2726 = vpop.f32.mrb[0].mxu0
    %v2727 = vadd.f32 %v2658, %v2726
    %v2728 = vpop.f32.mrb[0].mxu0
    %2729 = vdwg.mxu0
    %2731 = vrot.lane.b32.xlu0 %v2653, 32
    %v2732 = vpop.permute.xlu0 %2731
    %v2733 = vsel %vm225, %v2732, 0
    %2735 = vmatprep.subr.mxu0 0.0
    %2736 = vmatpush1.msra.mxu0 %v141
    %2737 = vmatprep.subr.mxu0 0.0
    %2738 = vmatpush1.msra.mxu0 %v142
    %2739 = vmatprep.subr.mxu0 0.0
    %2740 = vmatpush1.msra.mxu0 %v143
    %2741 = vmatprep.subr.mxu0 0.0
    %2742 = vmatpush1.msra.mxu0 %v144
    %2743 = vmatprep.subr.mxu0 0.0
    %2744 = vmatpush1.msra.mxu0 0.0
    %2745 = vmatprep.subr.mxu0 0.0
    %2746 = vmatpush1.msra.mxu0 0.0
    %2747 = vmatprep.subr.mxu0 0.0
    %2748 = vmatpush1.msra.mxu0 0.0
    %2749 = vmatprep.subr.mxu0 0.0
    %2750 = vmatpush1.msra.mxu0 0.0
    %2751 = vmatprep.subr.mxu0 0.0
    %2752 = vmatpush1.msra.mxu0 0.0
    %2753 = vmatprep.subr.mxu0 0.0
    %2754 = vmatpush1.msra.mxu0 0.0
    %2755 = vmatprep.subr.mxu0 0.0
    %2756 = vmatpush1.msra.mxu0 0.0
    %2757 = vmatprep.subr.mxu0 0.0
    %2758 = vmatpush1.msra.mxu0 0.0
    %2759 = vmatprep.subr.mxu0 0.0
    %2760 = vmatpush1.msra.mxu0 0.0
    %2761 = vmatprep.subr.mxu0 0.0
    %2762 = vmatpush1.msra.mxu0 0.0
    %2763 = vmatprep.subr.mxu0 0.0
    %2764 = vmatpush1.msra.mxu0 0.0
    %2765 = vmatprep.subr.mxu0 0.0
    %2766 = vmatpush1.msra.mxu0 0.0
    %2767 = vmatprep.subr.mxu0 0.0
    %2768 = vmatpush1.msra.mxu0 0.0
    %2769 = vmatprep.subr.mxu0 0.0
    %2770 = vmatpush1.msra.mxu0 0.0
    %2771 = vmatprep.subr.mxu0 0.0
    %2772 = vmatpush1.msra.mxu0 0.0
    %2773 = vmatprep.subr.mxu0 0.0
    %2774 = vmatpush1.msra.mxu0 0.0
    %2775 = vmatprep.subr.mxu0 0.0
    %2776 = vmatpush1.msra.mxu0 0.0
    %2777 = vmatprep.subr.mxu0 0.0
    %2778 = vmatpush1.msra.mxu0 0.0
    %2779 = vmatprep.subr.mxu0 0.0
    %2780 = vmatpush1.msra.mxu0 0.0
    %2781 = vmatprep.subr.mxu0 0.0
    %2782 = vmatpush1.msra.mxu0 0.0
    %2783 = vmatprep.subr.mxu0 0.0
    %2784 = vmatpush1.msra.mxu0 0.0
    %2785 = vmatprep.subr.mxu0 0.0
    %2786 = vmatpush1.msra.mxu0 0.0
    %2787 = vmatprep.subr.mxu0 0.0
    %2788 = vmatpush1.msra.mxu0 0.0
    %2789 = vmatprep.subr.mxu0 0.0
    %2790 = vmatpush1.msra.mxu0 0.0
    %2791 = vmatprep.subr.mxu0 0.0
    %2792 = vmatpush1.msra.mxu0 0.0
    %2793 = vmatprep.subr.mxu0 0.0
    %2794 = vmatpush1.msra.mxu0 0.0
    %2795 = vmatprep.subr.mxu0 0.0
    %2796 = vmatpush1.msra.mxu0 0.0
    %2797 = vmatprep.subr.mxu0 0.0
    %2798 = vmatpush1.msra.mxu0 0.0
    %2799 = vmatprep.mubr.f32.mxu0 0.0
    %2800 = vmatmul.mubr.f32.gmra.mrb[0].mxu0 %v2733
    %v2801 = vpop.f32.mrb[0].mxu0
    %v2802 = vadd.f32 %v2727, %v2801
    %v2803 = vpop.f32.mrb[0].mxu0
    %2804 = vdwg.mxu0
    %v2805 = vxor.u32 %v2802, 2147483648
    %v2806 = vmul.f32 %v2805, 1.442695
    %v2807 = vpow.pop %v2806
    %v2808 = vadd.f32 %v2807, 1.0
    %v2809 = vrcp.pop %v2808
    %v2810 = vmul.f32 1.0, %v2809
    %v2811 = vtanh.pop %v2802
    %v2812 = vmul.f32 %v2810, %v2467
    %2814 = vrot.lane.b32.xlu0 %v2811, 64
    %v2815 = vpop.permute.xlu0 %2814
    %v2817 = vmul.f32 %v2810, %v2815
    %2819 = vrot.lane.b32.xlu0 %v2817, 32
    %v2820 = vpop.permute.xlu0 %2819
    %v2822 = vadd.f32 %v2812, %v2820
    %v2823 = vtanh.pop %v2822
    %2825 = vrot.lane.b32.xlu0 %v2823, 64
    %v2826 = vpop.permute.xlu0 %2825
    %v2828 = vmul.f32 %v2810, %v2826
    %2829 = vmatprep.subr.mxu0 0.0
    %2830 = vmatpush1.msra.mxu0 %v130
    %2831 = vmatprep.subr.mxu0 0.0
    %2832 = vmatpush1.msra.mxu0 %v131
    %2833 = vmatprep.subr.mxu0 0.0
    %2834 = vmatpush1.msra.mxu0 %v132
    %2835 = vmatprep.subr.mxu0 0.0
    %2836 = vmatpush1.msra.mxu0 %v133
    %2837 = vmatprep.subr.mxu0 0.0
    %2838 = vmatpush1.msra.mxu0 0.0
    %2839 = vmatprep.subr.mxu0 0.0
    %2840 = vmatpush1.msra.mxu0 0.0
    %2841 = vmatprep.subr.mxu0 0.0
    %2842 = vmatpush1.msra.mxu0 0.0
    %2843 = vmatprep.subr.mxu0 0.0
    %2844 = vmatpush1.msra.mxu0 0.0
    %2845 = vmatprep.subr.mxu0 0.0
    %2846 = vmatpush1.msra.mxu0 0.0
    %2847 = vmatprep.subr.mxu0 0.0
    %2848 = vmatpush1.msra.mxu0 0.0
    %2849 = vmatprep.subr.mxu0 0.0
    %2850 = vmatpush1.msra.mxu0 0.0
    %2851 = vmatprep.subr.mxu0 0.0
    %2852 = vmatpush1.msra.mxu0 0.0
    %2853 = vmatprep.subr.mxu0 0.0
    %2854 = vmatpush1.msra.mxu0 0.0
    %2855 = vmatprep.subr.mxu0 0.0
    %2856 = vmatpush1.msra.mxu0 0.0
    %2857 = vmatprep.subr.mxu0 0.0
    %2858 = vmatpush1.msra.mxu0 0.0
    %2859 = vmatprep.subr.mxu0 0.0
    %2860 = vmatpush1.msra.mxu0 0.0
    %2861 = vmatprep.subr.mxu0 0.0
    %2862 = vmatpush1.msra.mxu0 0.0
    %2863 = vmatprep.subr.mxu0 0.0
    %2864 = vmatpush1.msra.mxu0 0.0
    %2865 = vmatprep.subr.mxu0 0.0
    %2866 = vmatpush1.msra.mxu0 0.0
    %2867 = vmatprep.subr.mxu0 0.0
    %2868 = vmatpush1.msra.mxu0 0.0
    %2869 = vmatprep.subr.mxu0 0.0
    %2870 = vmatpush1.msra.mxu0 0.0
    %2871 = vmatprep.subr.mxu0 0.0
    %2872 = vmatpush1.msra.mxu0 0.0
    %2873 = vmatprep.subr.mxu0 0.0
    %2874 = vmatpush1.msra.mxu0 0.0
    %2875 = vmatprep.subr.mxu0 0.0
    %2876 = vmatpush1.msra.mxu0 0.0
    %2877 = vmatprep.subr.mxu0 0.0
    %2878 = vmatpush1.msra.mxu0 0.0
    %2879 = vmatprep.subr.mxu0 0.0
    %2880 = vmatpush1.msra.mxu0 0.0
    %2881 = vmatprep.subr.mxu0 0.0
    %2882 = vmatpush1.msra.mxu0 0.0
    %2883 = vmatprep.subr.mxu0 0.0
    %2884 = vmatpush1.msra.mxu0 0.0
    %2885 = vmatprep.subr.mxu0 0.0
    %2886 = vmatpush1.msra.mxu0 0.0
    %2887 = vmatprep.subr.mxu0 0.0
    %2888 = vmatpush1.msra.mxu0 0.0
    %2889 = vmatprep.subr.mxu0 0.0
    %2890 = vmatpush1.msra.mxu0 0.0
    %2891 = vmatprep.subr.mxu0 0.0
    %2892 = vmatpush1.msra.mxu0 0.0
    %2893 = vmatprep.mubr.f32.mxu0 0.0
    %2894 = vmatmul.mubr.f32.gmra.mrb[0].mxu0 %v2733
    %v2895 = vpop.f32.mrb[0].mxu0
    %v2896 = vadd.f32 %v2478, %v2895
    %v2897 = vpop.f32.mrb[0].mxu0
    %2898 = vdwg.mxu0
    %2900 = vrot.lane.b32.xlu0 %v2828, 32
    %v2901 = vpop.permute.xlu0 %2900
    %v2902 = vsel %vm225, %v2901, 0
    %2904 = vmatprep.subr.mxu0 0.0
    %2905 = vmatpush1.msra.mxu0 %v137
    %2906 = vmatprep.subr.mxu0 0.0
    %2907 = vmatpush1.msra.mxu0 %v138
    %2908 = vmatprep.subr.mxu0 0.0
    %2909 = vmatpush1.msra.mxu0 %v139
    %2910 = vmatprep.subr.mxu0 0.0
    %2911 = vmatpush1.msra.mxu0 %v140
    %2912 = vmatprep.subr.mxu0 0.0
    %2913 = vmatpush1.msra.mxu0 0.0
    %2914 = vmatprep.subr.mxu0 0.0
    %2915 = vmatpush1.msra.mxu0 0.0
    %2916 = vmatprep.subr.mxu0 0.0
    %2917 = vmatpush1.msra.mxu0 0.0
    %2918 = vmatprep.subr.mxu0 0.0
    %2919 = vmatpush1.msra.mxu0 0.0
    %2920 = vmatprep.subr.mxu0 0.0
    %2921 = vmatpush1.msra.mxu0 0.0
    %2922 = vmatprep.subr.mxu0 0.0
    %2923 = vmatpush1.msra.mxu0 0.0
    %2924 = vmatprep.subr.mxu0 0.0
    %2925 = vmatpush1.msra.mxu0 0.0
    %2926 = vmatprep.subr.mxu0 0.0
    %2927 = vmatpush1.msra.mxu0 0.0
    %2928 = vmatprep.subr.mxu0 0.0
    %2929 = vmatpush1.msra.mxu0 0.0
    %2930 = vmatprep.subr.mxu0 0.0
    %2931 = vmatpush1.msra.mxu0 0.0
    %2932 = vmatprep.subr.mxu0 0.0
    %2933 = vmatpush1.msra.mxu0 0.0
    %2934 = vmatprep.subr.mxu0 0.0
    %2935 = vmatpush1.msra.mxu0 0.0
    %2936 = vmatprep.subr.mxu0 0.0
    %2937 = vmatpush1.msra.mxu0 0.0
    %2938 = vmatprep.subr.mxu0 0.0
    %2939 = vmatpush1.msra.mxu0 0.0
    %2940 = vmatprep.subr.mxu0 0.0
    %2941 = vmatpush1.msra.mxu0 0.0
    %2942 = vmatprep.subr.mxu0 0.0
    %2943 = vmatpush1.msra.mxu0 0.0
    %2944 = vmatprep.subr.mxu0 0.0
    %2945 = vmatpush1.msra.mxu0 0.0
    %2946 = vmatprep.subr.mxu0 0.0
    %2947 = vmatpush1.msra.mxu0 0.0
    %2948 = vmatprep.subr.mxu0 0.0
    %2949 = vmatpush1.msra.mxu0 0.0
    %2950 = vmatprep.subr.mxu0 0.0
    %2951 = vmatpush1.msra.mxu0 0.0
    %2952 = vmatprep.subr.mxu0 0.0
    %2953 = vmatpush1.msra.mxu0 0.0
    %2954 = vmatprep.subr.mxu0 0.0
    %2955 = vmatpush1.msra.mxu0 0.0
    %2956 = vmatprep.subr.mxu0 0.0
    %2957 = vmatpush1.msra.mxu0 0.0
    %2958 = vmatprep.subr.mxu0 0.0
    %2959 = vmatpush1.msra.mxu0 0.0
    %2960 = vmatprep.subr.mxu0 0.0
    %2961 = vmatpush1.msra.mxu0 0.0
    %2962 = vmatprep.subr.mxu0 0.0
    %2963 = vmatpush1.msra.mxu0 0.0
    %2964 = vmatprep.subr.mxu0 0.0
    %2965 = vmatpush1.msra.mxu0 0.0
    %2966 = vmatprep.subr.mxu0 0.0
    %2967 = vmatpush1.msra.mxu0 0.0
    %2968 = vmatprep.mubr.f32.mxu0 0.0
    %2969 = vmatmul.mubr.f32.gmra.mrb[0].mxu0 %v2902
    %v2970 = vpop.f32.mrb[0].mxu0
    %v2971 = vadd.f32 %v2896, %v2970
    %v2972 = vpop.f32.mrb[0].mxu0
    %2973 = vdwg.mxu0
    %v2974 = vxor.u32 %v2971, 2147483648
    %v2975 = vmul.f32 %v2974, 1.442695
    %v2976 = vpow.pop %v2975
    %v2977 = vadd.f32 %v2976, 1.0
    %v2978 = vrcp.pop %v2977
    %v2979 = vmul.f32 1.0, %v2978
    %v2980 = vtanh.pop %v2971
    %v2981 = vmul.f32 %v2979, %v2647
    %2983 = vrot.lane.b32.xlu0 %v2980, 64
    %v2984 = vpop.permute.xlu0 %2983
    %v2986 = vmul.f32 %v2979, %v2984
    %2988 = vrot.lane.b32.xlu0 %v2986, 32
    %v2989 = vpop.permute.xlu0 %2988
    %v2991 = vadd.f32 %v2981, %v2989
    %v2992 = vtanh.pop %v2991
    %2994 = vrot.lane.b32.xlu0 %v2992, 64
    %v2995 = vpop.permute.xlu0 %2994
    %v2997 = vmul.f32 %v2979, %v2995
    %2998 = vmatprep.subr.mxu0 0.0
    %2999 = vmatpush1.msra.mxu0 %v125
    %3000 = vmatprep.subr.mxu0 0.0
    %3001 = vmatpush1.msra.mxu0 %v126
    %3002 = vmatprep.subr.mxu0 0.0
    %3003 = vmatpush1.msra.mxu0 %v127
    %3004 = vmatprep.subr.mxu0 0.0
    %3005 = vmatpush1.msra.mxu0 %v128
    %3006 = vmatprep.subr.mxu0 0.0
    %3007 = vmatpush1.msra.mxu0 0.0
    %3008 = vmatprep.subr.mxu0 0.0
    %3009 = vmatpush1.msra.mxu0 0.0
    %3010 = vmatprep.subr.mxu0 0.0
    %3011 = vmatpush1.msra.mxu0 0.0
    %3012 = vmatprep.subr.mxu0 0.0
    %3013 = vmatpush1.msra.mxu0 0.0
    %3014 = vmatprep.subr.mxu0 0.0
    %3015 = vmatpush1.msra.mxu0 0.0
    %3016 = vmatprep.subr.mxu0 0.0
    %3017 = vmatpush1.msra.mxu0 0.0
    %3018 = vmatprep.subr.mxu0 0.0
    %3019 = vmatpush1.msra.mxu0 0.0
    %3020 = vmatprep.subr.mxu0 0.0
    %3021 = vmatpush1.msra.mxu0 0.0
    %3022 = vmatprep.subr.mxu0 0.0
    %3023 = vmatpush1.msra.mxu0 0.0
    %3024 = vmatprep.subr.mxu0 0.0
    %3025 = vmatpush1.msra.mxu0 0.0
    %3026 = vmatprep.subr.mxu0 0.0
    %3027 = vmatpush1.msra.mxu0 0.0
    %3028 = vmatprep.subr.mxu0 0.0
    %3029 = vmatpush1.msra.mxu0 0.0
    %3030 = vmatprep.subr.mxu0 0.0
    %3031 = vmatpush1.msra.mxu0 0.0
    %3032 = vmatprep.subr.mxu0 0.0
    %3033 = vmatpush1.msra.mxu0 0.0
    %3034 = vmatprep.subr.mxu0 0.0
    %3035 = vmatpush1.msra.mxu0 0.0
    %3036 = vmatprep.subr.mxu0 0.0
    %3037 = vmatpush1.msra.mxu0 0.0
    %3038 = vmatprep.subr.mxu0 0.0
    %3039 = vmatpush1.msra.mxu0 0.0
    %3040 = vmatprep.subr.mxu0 0.0
    %3041 = vmatpush1.msra.mxu0 0.0
    %3042 = vmatprep.subr.mxu0 0.0
    %3043 = vmatpush1.msra.mxu0 0.0
    %3044 = vmatprep.subr.mxu0 0.0
    %3045 = vmatpush1.msra.mxu0 0.0
    %3046 = vmatprep.subr.mxu0 0.0
    %3047 = vmatpush1.msra.mxu0 0.0
    %3048 = vmatprep.subr.mxu0 0.0
    %3049 = vmatpush1.msra.mxu0 0.0
    %3050 = vmatprep.subr.mxu0 0.0
    %3051 = vmatpush1.msra.mxu0 0.0
    %3052 = vmatprep.subr.mxu0 0.0
    %3053 = vmatpush1.msra.mxu0 0.0
    %3054 = vmatprep.subr.mxu0 0.0
    %3055 = vmatpush1.msra.mxu0 0.0
    %3056 = vmatprep.subr.mxu0 0.0
    %3057 = vmatpush1.msra.mxu0 0.0
    %3058 = vmatprep.subr.mxu0 0.0
    %3059 = vmatpush1.msra.mxu0 0.0
    %3060 = vmatprep.subr.mxu0 0.0
    %3061 = vmatpush1.msra.mxu0 0.0
    %3062 = vmatprep.mubr.f32.mxu0 0.0
    %3063 = vmatmul.mubr.f32.gmra.mrb[0].mxu0 %v2902
    %v3064 = vpop.f32.mrb[0].mxu0
    %v3065 = vadd.f32 %v2658, %v3064
    %v3066 = vpop.f32.mrb[0].mxu0
    %3067 = vdwg.mxu0
    %3069 = vrot.lane.b32.xlu0 %v2997, 32
    %v3070 = vpop.permute.xlu0 %3069
    %v3071 = vsel %vm225, %v3070, 0
    %3073 = vmatprep.subr.mxu0 0.0
    %3074 = vmatpush1.msra.mxu0 %v141
    %3075 = vmatprep.subr.mxu0 0.0
    %3076 = vmatpush1.msra.mxu0 %v142
    %3077 = vmatprep.subr.mxu0 0.0
    %3078 = vmatpush1.msra.mxu0 %v143
    %3079 = vmatprep.subr.mxu0 0.0
    %3080 = vmatpush1.msra.mxu0 %v144
    %3081 = vmatprep.subr.mxu0 0.0
    %3082 = vmatpush1.msra.mxu0 0.0
    %3083 = vmatprep.subr.mxu0 0.0
    %3084 = vmatpush1.msra.mxu0 0.0
    %3085 = vmatprep.subr.mxu0 0.0
    %3086 = vmatpush1.msra.mxu0 0.0
    %3087 = vmatprep.subr.mxu0 0.0
    %3088 = vmatpush1.msra.mxu0 0.0
    %3089 = vmatprep.subr.mxu0 0.0
    %3090 = vmatpush1.msra.mxu0 0.0
    %3091 = vmatprep.subr.mxu0 0.0
    %3092 = vmatpush1.msra.mxu0 0.0
    %3093 = vmatprep.subr.mxu0 0.0
    %3094 = vmatpush1.msra.mxu0 0.0
    %3095 = vmatprep.subr.mxu0 0.0
    %3096 = vmatpush1.msra.mxu0 0.0
    %3097 = vmatprep.subr.mxu0 0.0
    %3098 = vmatpush1.msra.mxu0 0.0
    %3099 = vmatprep.subr.mxu0 0.0
    %3100 = vmatpush1.msra.mxu0 0.0
    %3101 = vmatprep.subr.mxu0 0.0
    %3102 = vmatpush1.msra.mxu0 0.0
    %3103 = vmatprep.subr.mxu0 0.0
    %3104 = vmatpush1.msra.mxu0 0.0
    %3105 = vmatprep.subr.mxu0 0.0
    %3106 = vmatpush1.msra.mxu0 0.0
    %3107 = vmatprep.subr.mxu0 0.0
    %3108 = vmatpush1.msra.mxu0 0.0
    %3109 = vmatprep.subr.mxu0 0.0
    %3110 = vmatpush1.msra.mxu0 0.0
    %3111 = vmatprep.subr.mxu0 0.0
    %3112 = vmatpush1.msra.mxu0 0.0
    %3113 = vmatprep.subr.mxu0 0.0
    %3114 = vmatpush1.msra.mxu0 0.0
    %3115 = vmatprep.subr.mxu0 0.0
    %3116 = vmatpush1.msra.mxu0 0.0
    %3117 = vmatprep.subr.mxu0 0.0
    %3118 = vmatpush1.msra.mxu0 0.0
    %3119 = vmatprep.subr.mxu0 0.0
    %3120 = vmatpush1.msra.mxu0 0.0
    %3121 = vmatprep.subr.mxu0 0.0
    %3122 = vmatpush1.msra.mxu0 0.0
    %3123 = vmatprep.subr.mxu0 0.0
    %3124 = vmatpush1.msra.mxu0 0.0
    %3125 = vmatprep.subr.mxu0 0.0
    %3126 = vmatpush1.msra.mxu0 0.0
    %3127 = vmatprep.subr.mxu0 0.0
    %3128 = vmatpush1.msra.mxu0 0.0
    %3129 = vmatprep.subr.mxu0 0.0
    %3130 = vmatpush1.msra.mxu0 0.0
    %3131 = vmatprep.subr.mxu0 0.0
    %3132 = vmatpush1.msra.mxu0 0.0
    %3133 = vmatprep.subr.mxu0 0.0
    %3134 = vmatpush1.msra.mxu0 0.0
    %3135 = vmatprep.subr.mxu0 0.0
    %3136 = vmatpush1.msra.mxu0 0.0
    %3137 = vmatprep.mubr.f32.mxu0 0.0
    %3138 = vmatmul.mubr.f32.gmra.mrb[0].mxu0 %v3071
    %v3139 = vpop.f32.mrb[0].mxu0
    %v3140 = vadd.f32 %v3065, %v3139
    %v3141 = vpop.f32.mrb[0].mxu0
    %3142 = vdwg.mxu0
    %v3143 = vxor.u32 %v3140, 2147483648
    %v3144 = vmul.f32 %v3143, 1.442695
    %v3145 = vpow.pop %v3144
    %v3146 = vadd.f32 %v3145, 1.0
    %v3147 = vrcp.pop %v3146
    %v3148 = vmul.f32 1.0, %v3147
    %v3149 = vtanh.pop %v3140
    %v3150 = vmul.f32 %v3148, %v2822
    %3152 = vrot.lane.b32.xlu0 %v3149, 64
    %v3153 = vpop.permute.xlu0 %3152
    %v3155 = vmul.f32 %v3148, %v3153
    %3157 = vrot.lane.b32.xlu0 %v3155, 32
    %v3158 = vpop.permute.xlu0 %3157
    %v3160 = vadd.f32 %v3150, %v3158
    %v3161 = vtanh.pop %v3160
    %3163 = vrot.lane.b32.xlu0 %v3161, 64
    %v3164 = vpop.permute.xlu0 %3163
    %v3166 = vmul.f32 %v3148, %v3164
    %3167 = vmatprep.subr.mxu0 0.0
    %3168 = vmatpush1.msra.mxu0 %v130
    %3169 = vmatprep.subr.mxu0 0.0
    %3170 = vmatpush1.msra.mxu0 %v131
    %3171 = vmatprep.subr.mxu0 0.0
    %3172 = vmatpush1.msra.mxu0 %v132
    %3173 = vmatprep.subr.mxu0 0.0
    %3174 = vmatpush1.msra.mxu0 %v133
    %3175 = vmatprep.subr.mxu0 0.0
    %3176 = vmatpush1.msra.mxu0 0.0
    %3177 = vmatprep.subr.mxu0 0.0
    %3178 = vmatpush1.msra.mxu0 0.0
    %3179 = vmatprep.subr.mxu0 0.0
    %3180 = vmatpush1.msra.mxu0 0.0
    %3181 = vmatprep.subr.mxu0 0.0
    %3182 = vmatpush1.msra.mxu0 0.0
    %3183 = vmatprep.subr.mxu0 0.0
    %3184 = vmatpush1.msra.mxu0 0.0
    %3185 = vmatprep.subr.mxu0 0.0
    %3186 = vmatpush1.msra.mxu0 0.0
    %3187 = vmatprep.subr.mxu0 0.0
    %3188 = vmatpush1.msra.mxu0 0.0
    %3189 = vmatprep.subr.mxu0 0.0
    %3190 = vmatpush1.msra.mxu0 0.0
    %3191 = vmatprep.subr.mxu0 0.0
    %3192 = vmatpush1.msra.mxu0 0.0
    %3193 = vmatprep.subr.mxu0 0.0
    %3194 = vmatpush1.msra.mxu0 0.0
    %3195 = vmatprep.subr.mxu0 0.0
    %3196 = vmatpush1.msra.mxu0 0.0
    %3197 = vmatprep.subr.mxu0 0.0
    %3198 = vmatpush1.msra.mxu0 0.0
    %3199 = vmatprep.subr.mxu0 0.0
    %3200 = vmatpush1.msra.mxu0 0.0
    %3201 = vmatprep.subr.mxu0 0.0
    %3202 = vmatpush1.msra.mxu0 0.0
    %3203 = vmatprep.subr.mxu0 0.0
    %3204 = vmatpush1.msra.mxu0 0.0
    %3205 = vmatprep.subr.mxu0 0.0
    %3206 = vmatpush1.msra.mxu0 0.0
    %3207 = vmatprep.subr.mxu0 0.0
    %3208 = vmatpush1.msra.mxu0 0.0
    %3209 = vmatprep.subr.mxu0 0.0
    %3210 = vmatpush1.msra.mxu0 0.0
    %3211 = vmatprep.subr.mxu0 0.0
    %3212 = vmatpush1.msra.mxu0 0.0
    %3213 = vmatprep.subr.mxu0 0.0
    %3214 = vmatpush1.msra.mxu0 0.0
    %3215 = vmatprep.subr.mxu0 0.0
    %3216 = vmatpush1.msra.mxu0 0.0
    %3217 = vmatprep.subr.mxu0 0.0
    %3218 = vmatpush1.msra.mxu0 0.0
    %3219 = vmatprep.subr.mxu0 0.0
    %3220 = vmatpush1.msra.mxu0 0.0
    %3221 = vmatprep.subr.mxu0 0.0
    %3222 = vmatpush1.msra.mxu0 0.0
    %3223 = vmatprep.subr.mxu0 0.0
    %3224 = vmatpush1.msra.mxu0 0.0
    %3225 = vmatprep.subr.mxu0 0.0
    %3226 = vmatpush1.msra.mxu0 0.0
    %3227 = vmatprep.subr.mxu0 0.0
    %3228 = vmatpush1.msra.mxu0 0.0
    %3229 = vmatprep.subr.mxu0 0.0
    %3230 = vmatpush1.msra.mxu0 0.0
    %3231 = vmatprep.mubr.f32.mxu0 0.0
    %3232 = vmatmul.mubr.f32.gmra.mrb[0].mxu0 %v3071
    %v3233 = vpop.f32.mrb[0].mxu0
    %v3234 = vadd.f32 %v2478, %v3233
    %v3235 = vpop.f32.mrb[0].mxu0
    %3236 = vdwg.mxu0
    %3238 = vrot.lane.b32.xlu0 %v3166, 32
    %v3239 = vpop.permute.xlu0 %3238
    %v3240 = vsel %vm225, %v3239, 0
    %3242 = vmatprep.subr.mxu0 0.0
    %3243 = vmatpush1.msra.mxu0 %v137
    %3244 = vmatprep.subr.mxu0 0.0
    %3245 = vmatpush1.msra.mxu0 %v138
    %3246 = vmatprep.subr.mxu0 0.0
    %3247 = vmatpush1.msra.mxu0 %v139
    %3248 = vmatprep.subr.mxu0 0.0
    %3249 = vmatpush1.msra.mxu0 %v140
    %3250 = vmatprep.subr.mxu0 0.0
    %3251 = vmatpush1.msra.mxu0 0.0
    %3252 = vmatprep.subr.mxu0 0.0
    %3253 = vmatpush1.msra.mxu0 0.0
    %3254 = vmatprep.subr.mxu0 0.0
    %3255 = vmatpush1.msra.mxu0 0.0
    %3256 = vmatprep.subr.mxu0 0.0
    %3257 = vmatpush1.msra.mxu0 0.0
    %3258 = vmatprep.subr.mxu0 0.0
    %3259 = vmatpush1.msra.mxu0 0.0
    %3260 = vmatprep.subr.mxu0 0.0
    %3261 = vmatpush1.msra.mxu0 0.0
    %3262 = vmatprep.subr.mxu0 0.0
    %3263 = vmatpush1.msra.mxu0 0.0
    %3264 = vmatprep.subr.mxu0 0.0
    %3265 = vmatpush1.msra.mxu0 0.0
    %3266 = vmatprep.subr.mxu0 0.0
    %3267 = vmatpush1.msra.mxu0 0.0
    %3268 = vmatprep.subr.mxu0 0.0
    %3269 = vmatpush1.msra.mxu0 0.0
    %3270 = vmatprep.subr.mxu0 0.0
    %3271 = vmatpush1.msra.mxu0 0.0
    %3272 = vmatprep.subr.mxu0 0.0
    %3273 = vmatpush1.msra.mxu0 0.0
    %3274 = vmatprep.subr.mxu0 0.0
    %3275 = vmatpush1.msra.mxu0 0.0
    %3276 = vmatprep.subr.mxu0 0.0
    %3277 = vmatpush1.msra.mxu0 0.0
    %3278 = vmatprep.subr.mxu0 0.0
    %3279 = vmatpush1.msra.mxu0 0.0
    %3280 = vmatprep.subr.mxu0 0.0
    %3281 = vmatpush1.msra.mxu0 0.0
    %3282 = vmatprep.subr.mxu0 0.0
    %3283 = vmatpush1.msra.mxu0 0.0
    %3284 = vmatprep.subr.mxu0 0.0
    %3285 = vmatpush1.msra.mxu0 0.0
    %3286 = vmatprep.subr.mxu0 0.0
    %3287 = vmatpush1.msra.mxu0 0.0
    %3288 = vmatprep.subr.mxu0 0.0
    %3289 = vmatpush1.msra.mxu0 0.0
    %3290 = vmatprep.subr.mxu0 0.0
    %3291 = vmatpush1.msra.mxu0 0.0
    %3292 = vmatprep.subr.mxu0 0.0
    %3293 = vmatpush1.msra.mxu0 0.0
    %3294 = vmatprep.subr.mxu0 0.0
    %3295 = vmatpush1.msra.mxu0 0.0
    %3296 = vmatprep.subr.mxu0 0.0
    %3297 = vmatpush1.msra.mxu0 0.0
    %3298 = vmatprep.subr.mxu0 0.0
    %3299 = vmatpush1.msra.mxu0 0.0
    %3300 = vmatprep.subr.mxu0 0.0
    %3301 = vmatpush1.msra.mxu0 0.0
    %3302 = vmatprep.subr.mxu0 0.0
    %3303 = vmatpush1.msra.mxu0 0.0
    %3304 = vmatprep.subr.mxu0 0.0
    %3305 = vmatpush1.msra.mxu0 0.0
    %3306 = vmatprep.mubr.f32.mxu0 0.0
    %3307 = vmatmul.mubr.f32.gmra.mrb[0].mxu0 %v3240
    %v3308 = vpop.f32.mrb[0].mxu0
    %v3309 = vadd.f32 %v3234, %v3308
    %v3310 = vpop.f32.mrb[0].mxu0
    %3311 = vdwg.mxu0
    %v3312 = vxor.u32 %v3309, 2147483648
    %v3313 = vmul.f32 %v3312, 1.442695
    %v3314 = vpow.pop %v3313
    %v3315 = vadd.f32 %v3314, 1.0
    %v3316 = vrcp.pop %v3315
    %v3317 = vmul.f32 1.0, %v3316
    %v3318 = vtanh.pop %v3309
    %v3319 = vmul.f32 %v3317, %v2991
    %3321 = vrot.lane.b32.xlu0 %v3318, 64
    %v3322 = vpop.permute.xlu0 %3321
    %v3324 = vmul.f32 %v3317, %v3322
    %3326 = vrot.lane.b32.xlu0 %v3324, 32
    %v3327 = vpop.permute.xlu0 %3326
    %v3329 = vadd.f32 %v3319, %v3327
    %v3330 = vtanh.pop %v3329
    %3332 = vrot.lane.b32.xlu0 %v3330, 64
    %v3333 = vpop.permute.xlu0 %3332
    %v3335 = vmul.f32 %v3317, %v3333
    %3336 = vmatprep.subr.mxu0 0.0
    %3337 = vmatpush1.msra.mxu0 %v125
    %3338 = vmatprep.subr.mxu0 0.0
    %3339 = vmatpush1.msra.mxu0 %v126
    %3340 = vmatprep.subr.mxu0 0.0
    %3341 = vmatpush1.msra.mxu0 %v127
    %3342 = vmatprep.subr.mxu0 0.0
    %3343 = vmatpush1.msra.mxu0 %v128
    %3344 = vmatprep.subr.mxu0 0.0
    %3345 = vmatpush1.msra.mxu0 0.0
    %3346 = vmatprep.subr.mxu0 0.0
    %3347 = vmatpush1.msra.mxu0 0.0
    %3348 = vmatprep.subr.mxu0 0.0
    %3349 = vmatpush1.msra.mxu0 0.0
    %3350 = vmatprep.subr.mxu0 0.0
    %3351 = vmatpush1.msra.mxu0 0.0
    %3352 = vmatprep.subr.mxu0 0.0
    %3353 = vmatpush1.msra.mxu0 0.0
    %3354 = vmatprep.subr.mxu0 0.0
    %3355 = vmatpush1.msra.mxu0 0.0
    %3356 = vmatprep.subr.mxu0 0.0
    %3357 = vmatpush1.msra.mxu0 0.0
    %3358 = vmatprep.subr.mxu0 0.0
    %3359 = vmatpush1.msra.mxu0 0.0
    %3360 = vmatprep.subr.mxu0 0.0
    %3361 = vmatpush1.msra.mxu0 0.0
    %3362 = vmatprep.subr.mxu0 0.0
    %3363 = vmatpush1.msra.mxu0 0.0
    %3364 = vmatprep.subr.mxu0 0.0
    %3365 = vmatpush1.msra.mxu0 0.0
    %3366 = vmatprep.subr.mxu0 0.0
    %3367 = vmatpush1.msra.mxu0 0.0
    %3368 = vmatprep.subr.mxu0 0.0
    %3369 = vmatpush1.msra.mxu0 0.0
    %3370 = vmatprep.subr.mxu0 0.0
    %3371 = vmatpush1.msra.mxu0 0.0
    %3372 = vmatprep.subr.mxu0 0.0
    %3373 = vmatpush1.msra.mxu0 0.0
    %3374 = vmatprep.subr.mxu0 0.0
    %3375 = vmatpush1.msra.mxu0 0.0
    %3376 = vmatprep.subr.mxu0 0.0
    %3377 = vmatpush1.msra.mxu0 0.0
    %3378 = vmatprep.subr.mxu0 0.0
    %3379 = vmatpush1.msra.mxu0 0.0
    %3380 = vmatprep.subr.mxu0 0.0
    %3381 = vmatpush1.msra.mxu0 0.0
    %3382 = vmatprep.subr.mxu0 0.0
    %3383 = vmatpush1.msra.mxu0 0.0
    %3384 = vmatprep.subr.mxu0 0.0
    %3385 = vmatpush1.msra.mxu0 0.0
    %3386 = vmatprep.subr.mxu0 0.0
    %3387 = vmatpush1.msra.mxu0 0.0
    %3388 = vmatprep.subr.mxu0 0.0
    %3389 = vmatpush1.msra.mxu0 0.0
    %3390 = vmatprep.subr.mxu0 0.0
    %3391 = vmatpush1.msra.mxu0 0.0
    %3392 = vmatprep.subr.mxu0 0.0
    %3393 = vmatpush1.msra.mxu0 0.0
    %3394 = vmatprep.subr.mxu0 0.0
    %3395 = vmatpush1.msra.mxu0 0.0
    %3396 = vmatprep.subr.mxu0 0.0
    %3397 = vmatpush1.msra.mxu0 0.0
    %3398 = vmatprep.subr.mxu0 0.0
    %3399 = vmatpush1.msra.mxu0 0.0
    %3400 = vmatprep.mubr.f32.mxu0 0.0
    %3401 = vmatmul.mubr.f32.gmra.mrb[0].mxu0 %v3240
    %v3402 = vpop.f32.mrb[0].mxu0
    %v3403 = vadd.f32 %v2658, %v3402
    %v3404 = vpop.f32.mrb[0].mxu0
    %3405 = vdwg.mxu0
    %3407 = vrot.lane.b32.xlu0 %v3335, 32
    %v3408 = vpop.permute.xlu0 %3407
    %v3409 = vsel %vm225, %v3408, 0
    %3411 = vmatprep.subr.mxu0 0.0
    %3412 = vmatpush1.msra.mxu0 %v141
    %3413 = vmatprep.subr.mxu0 0.0
    %3414 = vmatpush1.msra.mxu0 %v142
    %3415 = vmatprep.subr.mxu0 0.0
    %3416 = vmatpush1.msra.mxu0 %v143
    %3417 = vmatprep.subr.mxu0 0.0
    %3418 = vmatpush1.msra.mxu0 %v144
    %3419 = vmatprep.subr.mxu0 0.0
    %3420 = vmatpush1.msra.mxu0 0.0
    %3421 = vmatprep.subr.mxu0 0.0
    %3422 = vmatpush1.msra.mxu0 0.0
    %3423 = vmatprep.subr.mxu0 0.0
    %3424 = vmatpush1.msra.mxu0 0.0
    %3425 = vmatprep.subr.mxu0 0.0
    %3426 = vmatpush1.msra.mxu0 0.0
    %3427 = vmatprep.subr.mxu0 0.0
    %3428 = vmatpush1.msra.mxu0 0.0
    %3429 = vmatprep.subr.mxu0 0.0
    %3430 = vmatpush1.msra.mxu0 0.0
    %3431 = vmatprep.subr.mxu0 0.0
    %3432 = vmatpush1.msra.mxu0 0.0
    %3433 = vmatprep.subr.mxu0 0.0
    %3434 = vmatpush1.msra.mxu0 0.0
    %3435 = vmatprep.subr.mxu0 0.0
    %3436 = vmatpush1.msra.mxu0 0.0
    %3437 = vmatprep.subr.mxu0 0.0
    %3438 = vmatpush1.msra.mxu0 0.0
    %3439 = vmatprep.subr.mxu0 0.0
    %3440 = vmatpush1.msra.mxu0 0.0
    %3441 = vmatprep.subr.mxu0 0.0
    %3442 = vmatpush1.msra.mxu0 0.0
    %3443 = vmatprep.subr.mxu0 0.0
    %3444 = vmatpush1.msra.mxu0 0.0
    %3445 = vmatprep.subr.mxu0 0.0
    %3446 = vmatpush1.msra.mxu0 0.0
    %3447 = vmatprep.subr.mxu0 0.0
    %3448 = vmatpush1.msra.mxu0 0.0
    %3449 = vmatprep.subr.mxu0 0.0
    %3450 = vmatpush1.msra.mxu0 0.0
    %3451 = vmatprep.subr.mxu0 0.0
    %3452 = vmatpush1.msra.mxu0 0.0
    %3453 = vmatprep.subr.mxu0 0.0
    %3454 = vmatpush1.msra.mxu0 0.0
    %3455 = vmatprep.subr.mxu0 0.0
    %3456 = vmatpush1.msra.mxu0 0.0
    %3457 = vmatprep.subr.mxu0 0.0
    %3458 = vmatpush1.msra.mxu0 0.0
    %3459 = vmatprep.subr.mxu0 0.0
    %3460 = vmatpush1.msra.mxu0 0.0
    %3461 = vmatprep.subr.mxu0 0.0
    %3462 = vmatpush1.msra.mxu0 0.0
    %3463 = vmatprep.subr.mxu0 0.0
    %3464 = vmatpush1.msra.mxu0 0.0
    %3465 = vmatprep.subr.mxu0 0.0
    %3466 = vmatpush1.msra.mxu0 0.0
    %3467 = vmatprep.subr.mxu0 0.0
    %3468 = vmatpush1.msra.mxu0 0.0
    %3469 = vmatprep.subr.mxu0 0.0
    %3470 = vmatpush1.msra.mxu0 0.0
    %3471 = vmatprep.subr.mxu0 0.0
    %3472 = vmatpush1.msra.mxu0 0.0
    %3473 = vmatprep.subr.mxu0 0.0
    %3474 = vmatpush1.msra.mxu0 0.0
    %3475 = vmatprep.mubr.f32.mxu0 0.0
    %3476 = vmatmul.mubr.f32.gmra.mrb[0].mxu0 %v3409
    %v3477 = vpop.f32.mrb[0].mxu0
    %v3478 = vadd.f32 %v3403, %v3477
    %v3479 = vpop.f32.mrb[0].mxu0
    %3480 = vdwg.mxu0
    %v3481 = vxor.u32 %v3478, 2147483648
    %v3482 = vmul.f32 %v3481, 1.442695
    %v3483 = vpow.pop %v3482
    %v3484 = vadd.f32 %v3483, 1.0
    %v3485 = vrcp.pop %v3484
    %v3486 = vmul.f32 1.0, %v3485
    %v3487 = vtanh.pop %v3478
    %v3488 = vmul.f32 %v3486, %v3160
    %3490 = vrot.lane.b32.xlu0 %v3487, 64
    %v3491 = vpop.permute.xlu0 %3490
    %v3493 = vmul.f32 %v3486, %v3491
    %3495 = vrot.lane.b32.xlu0 %v3493, 32
    %v3496 = vpop.permute.xlu0 %3495
    %v3498 = vadd.f32 %v3488, %v3496
    %v3499 = vtanh.pop %v3498
    %3501 = vrot.lane.b32.xlu0 %v3499, 64
    %v3502 = vpop.permute.xlu0 %3501
    %v3504 = vmul.f32 %v3486, %v3502
    %3505 = vmatprep.subr.mxu0 0.0
    %3506 = vmatpush1.msra.mxu0 %v130
    %3507 = vmatprep.subr.mxu0 0.0
    %3508 = vmatpush1.msra.mxu0 %v131
    %3509 = vmatprep.subr.mxu0 0.0
    %3510 = vmatpush1.msra.mxu0 %v132
    %3511 = vmatprep.subr.mxu0 0.0
    %3512 = vmatpush1.msra.mxu0 %v133
    %3513 = vmatprep.subr.mxu0 0.0
    %3514 = vmatpush1.msra.mxu0 0.0
    %3515 = vmatprep.subr.mxu0 0.0
    %3516 = vmatpush1.msra.mxu0 0.0
    %3517 = vmatprep.subr.mxu0 0.0
    %3518 = vmatpush1.msra.mxu0 0.0
    %3519 = vmatprep.subr.mxu0 0.0
    %3520 = vmatpush1.msra.mxu0 0.0
    %3521 = vmatprep.subr.mxu0 0.0
    %3522 = vmatpush1.msra.mxu0 0.0
    %3523 = vmatprep.subr.mxu0 0.0
    %3524 = vmatpush1.msra.mxu0 0.0
    %3525 = vmatprep.subr.mxu0 0.0
    %3526 = vmatpush1.msra.mxu0 0.0
    %3527 = vmatprep.subr.mxu0 0.0
    %3528 = vmatpush1.msra.mxu0 0.0
    %3529 = vmatprep.subr.mxu0 0.0
    %3530 = vmatpush1.msra.mxu0 0.0
    %3531 = vmatprep.subr.mxu0 0.0
    %3532 = vmatpush1.msra.mxu0 0.0
    %3533 = vmatprep.subr.mxu0 0.0
    %3534 = vmatpush1.msra.mxu0 0.0
    %3535 = vmatprep.subr.mxu0 0.0
    %3536 = vmatpush1.msra.mxu0 0.0
    %3537 = vmatprep.subr.mxu0 0.0
    %3538 = vmatpush1.msra.mxu0 0.0
    %3539 = vmatprep.subr.mxu0 0.0
    %3540 = vmatpush1.msra.mxu0 0.0
    %3541 = vmatprep.subr.mxu0 0.0
    %3542 = vmatpush1.msra.mxu0 0.0
    %3543 = vmatprep.subr.mxu0 0.0
    %3544 = vmatpush1.msra.mxu0 0.0
    %3545 = vmatprep.subr.mxu0 0.0
    %3546 = vmatpush1.msra.mxu0 0.0
    %3547 = vmatprep.subr.mxu0 0.0
    %3548 = vmatpush1.msra.mxu0 0.0
    %3549 = vmatprep.subr.mxu0 0.0
    %3550 = vmatpush1.msra.mxu0 0.0
    %3551 = vmatprep.subr.mxu0 0.0
    %3552 = vmatpush1.msra.mxu0 0.0
    %3553 = vmatprep.subr.mxu0 0.0
    %3554 = vmatpush1.msra.mxu0 0.0
    %3555 = vmatprep.subr.mxu0 0.0
    %3556 = vmatpush1.msra.mxu0 0.0
    %3557 = vmatprep.subr.mxu0 0.0
    %3558 = vmatpush1.msra.mxu0 0.0
    %3559 = vmatprep.subr.mxu0 0.0
    %3560 = vmatpush1.msra.mxu0 0.0
    %3561 = vmatprep.subr.mxu0 0.0
    %3562 = vmatpush1.msra.mxu0 0.0
    %3563 = vmatprep.subr.mxu0 0.0
    %3564 = vmatpush1.msra.mxu0 0.0
    %3565 = vmatprep.subr.mxu0 0.0
    %3566 = vmatpush1.msra.mxu0 0.0
    %3567 = vmatprep.subr.mxu0 0.0
    %3568 = vmatpush1.msra.mxu0 0.0
    %3569 = vmatprep.mubr.f32.mxu0 0.0
    %3570 = vmatmul.mubr.f32.gmra.mrb[0].mxu0 %v3409
    %v3571 = vpop.f32.mrb[0].mxu0
    %v3572 = vadd.f32 %v2478, %v3571
    %v3573 = vpop.f32.mrb[0].mxu0
    %3574 = vdwg.mxu0
    %3576 = vrot.lane.b32.xlu0 %v3504, 32
    %v3577 = vpop.permute.xlu0 %3576
    %v3578 = vsel %vm225, %v3577, 0
    %3580 = vmatprep.subr.mxu0 0.0
    %3581 = vmatpush1.msra.mxu0 %v137
    %3582 = vmatprep.subr.mxu0 0.0
    %3583 = vmatpush1.msra.mxu0 %v138
    %3584 = vmatprep.subr.mxu0 0.0
    %3585 = vmatpush1.msra.mxu0 %v139
    %3586 = vmatprep.subr.mxu0 0.0
    %3587 = vmatpush1.msra.mxu0 %v140
    %3588 = vmatprep.subr.mxu0 0.0
    %3589 = vmatpush1.msra.mxu0 0.0
    %3590 = vmatprep.subr.mxu0 0.0
    %3591 = vmatpush1.msra.mxu0 0.0
    %3592 = vmatprep.subr.mxu0 0.0
    %3593 = vmatpush1.msra.mxu0 0.0
    %3594 = vmatprep.subr.mxu0 0.0
    %3595 = vmatpush1.msra.mxu0 0.0
    %3596 = vmatprep.subr.mxu0 0.0
    %3597 = vmatpush1.msra.mxu0 0.0
    %3598 = vmatprep.subr.mxu0 0.0
    %3599 = vmatpush1.msra.mxu0 0.0
    %3600 = vmatprep.subr.mxu0 0.0
    %3601 = vmatpush1.msra.mxu0 0.0
    %3602 = vmatprep.subr.mxu0 0.0
    %3603 = vmatpush1.msra.mxu0 0.0
    %3604 = vmatprep.subr.mxu0 0.0
    %3605 = vmatpush1.msra.mxu0 0.0
    %3606 = vmatprep.subr.mxu0 0.0
    %3607 = vmatpush1.msra.mxu0 0.0
    %3608 = vmatprep.subr.mxu0 0.0
    %3609 = vmatpush1.msra.mxu0 0.0
    %3610 = vmatprep.subr.mxu0 0.0
    %3611 = vmatpush1.msra.mxu0 0.0
    %3612 = vmatprep.subr.mxu0 0.0
    %3613 = vmatpush1.msra.mxu0 0.0
    %3614 = vmatprep.subr.mxu0 0.0
    %3615 = vmatpush1.msra.mxu0 0.0
    %3616 = vmatprep.subr.mxu0 0.0
    %3617 = vmatpush1.msra.mxu0 0.0
    %3618 = vmatprep.subr.mxu0 0.0
    %3619 = vmatpush1.msra.mxu0 0.0
    %3620 = vmatprep.subr.mxu0 0.0
    %3621 = vmatpush1.msra.mxu0 0.0
    %3622 = vmatprep.subr.mxu0 0.0
    %3623 = vmatpush1.msra.mxu0 0.0
    %3624 = vmatprep.subr.mxu0 0.0
    %3625 = vmatpush1.msra.mxu0 0.0
    %3626 = vmatprep.subr.mxu0 0.0
    %3627 = vmatpush1.msra.mxu0 0.0
    %3628 = vmatprep.subr.mxu0 0.0
    %3629 = vmatpush1.msra.mxu0 0.0
    %3630 = vmatprep.subr.mxu0 0.0
    %3631 = vmatpush1.msra.mxu0 0.0
    %3632 = vmatprep.subr.mxu0 0.0
    %3633 = vmatpush1.msra.mxu0 0.0
    %3634 = vmatprep.subr.mxu0 0.0
    %3635 = vmatpush1.msra.mxu0 0.0
    %3636 = vmatprep.subr.mxu0 0.0
    %3637 = vmatpush1.msra.mxu0 0.0
    %3638 = vmatprep.subr.mxu0 0.0
    %3639 = vmatpush1.msra.mxu0 0.0
    %3640 = vmatprep.subr.mxu0 0.0
    %3641 = vmatpush1.msra.mxu0 0.0
    %3642 = vmatprep.subr.mxu0 0.0
    %3643 = vmatpush1.msra.mxu0 0.0
    %3644 = vmatprep.mubr.f32.mxu0 0.0
    %3645 = vmatmul.mubr.f32.gmra.mrb[0].mxu0 %v3578
    %v3646 = vpop.f32.mrb[0].mxu0
    %v3647 = vadd.f32 %v3572, %v3646
    %v3648 = vpop.f32.mrb[0].mxu0
    %3649 = vdwg.mxu0
    %v3650 = vxor.u32 %v3647, 2147483648
    %v3651 = vmul.f32 %v3650, 1.442695
    %v3652 = vpow.pop %v3651
    %v3653 = vadd.f32 %v3652, 1.0
    %v3654 = vrcp.pop %v3653
    %v3655 = vmul.f32 1.0, %v3654
    %v3656 = vtanh.pop %v3647
    %v3657 = vmul.f32 %v3655, %v3329
    %3659 = vrot.lane.b32.xlu0 %v3656, 64
    %v3660 = vpop.permute.xlu0 %3659
    %v3662 = vmul.f32 %v3655, %v3660
    %3664 = vrot.lane.b32.xlu0 %v3662, 32
    %v3665 = vpop.permute.xlu0 %3664
    %v3667 = vadd.f32 %v3657, %v3665
    %v3668 = vtanh.pop %v3667
    %3670 = vrot.lane.b32.xlu0 %v3668, 64
    %v3671 = vpop.permute.xlu0 %3670
    %v3673 = vmul.f32 %v3655, %v3671
    %3674 = vmatprep.subr.mxu0 0.0
    %3675 = vmatpush1.msra.mxu0 %v125
    %3676 = vmatprep.subr.mxu0 0.0
    %3677 = vmatpush1.msra.mxu0 %v126
    %3678 = vmatprep.subr.mxu0 0.0
    %3679 = vmatpush1.msra.mxu0 %v127
    %3680 = vmatprep.subr.mxu0 0.0
    %3681 = vmatpush1.msra.mxu0 %v128
    %3682 = vmatprep.subr.mxu0 0.0
    %3683 = vmatpush1.msra.mxu0 0.0
    %3684 = vmatprep.subr.mxu0 0.0
    %3685 = vmatpush1.msra.mxu0 0.0
    %3686 = vmatprep.subr.mxu0 0.0
    %3687 = vmatpush1.msra.mxu0 0.0
    %3688 = vmatprep.subr.mxu0 0.0
    %3689 = vmatpush1.msra.mxu0 0.0
    %3690 = vmatprep.subr.mxu0 0.0
    %3691 = vmatpush1.msra.mxu0 0.0
    %3692 = vmatprep.subr.mxu0 0.0
    %3693 = vmatpush1.msra.mxu0 0.0
    %3694 = vmatprep.subr.mxu0 0.0
    %3695 = vmatpush1.msra.mxu0 0.0
    %3696 = vmatprep.subr.mxu0 0.0
    %3697 = vmatpush1.msra.mxu0 0.0
    %3698 = vmatprep.subr.mxu0 0.0
    %3699 = vmatpush1.msra.mxu0 0.0
    %3700 = vmatprep.subr.mxu0 0.0
    %3701 = vmatpush1.msra.mxu0 0.0
    %3702 = vmatprep.subr.mxu0 0.0
    %3703 = vmatpush1.msra.mxu0 0.0
    %3704 = vmatprep.subr.mxu0 0.0
    %3705 = vmatpush1.msra.mxu0 0.0
    %3706 = vmatprep.subr.mxu0 0.0
    %3707 = vmatpush1.msra.mxu0 0.0
    %3708 = vmatprep.subr.mxu0 0.0
    %3709 = vmatpush1.msra.mxu0 0.0
    %3710 = vmatprep.subr.mxu0 0.0
    %3711 = vmatpush1.msra.mxu0 0.0
    %3712 = vmatprep.subr.mxu0 0.0
    %3713 = vmatpush1.msra.mxu0 0.0
    %3714 = vmatprep.subr.mxu0 0.0
    %3715 = vmatpush1.msra.mxu0 0.0
    %3716 = vmatprep.subr.mxu0 0.0
    %3717 = vmatpush1.msra.mxu0 0.0
    %3718 = vmatprep.subr.mxu0 0.0
    %3719 = vmatpush1.msra.mxu0 0.0
    %3720 = vmatprep.subr.mxu0 0.0
    %3721 = vmatpush1.msra.mxu0 0.0
    %3722 = vmatprep.subr.mxu0 0.0
    %3723 = vmatpush1.msra.mxu0 0.0
    %3724 = vmatprep.subr.mxu0 0.0
    %3725 = vmatpush1.msra.mxu0 0.0
    %3726 = vmatprep.subr.mxu0 0.0
    %3727 = vmatpush1.msra.mxu0 0.0
    %3728 = vmatprep.subr.mxu0 0.0
    %3729 = vmatpush1.msra.mxu0 0.0
    %3730 = vmatprep.subr.mxu0 0.0
    %3731 = vmatpush1.msra.mxu0 0.0
    %3732 = vmatprep.subr.mxu0 0.0
    %3733 = vmatpush1.msra.mxu0 0.0
    %3734 = vmatprep.subr.mxu0 0.0
    %3735 = vmatpush1.msra.mxu0 0.0
    %3736 = vmatprep.subr.mxu0 0.0
    %3737 = vmatpush1.msra.mxu0 0.0
    %3738 = vmatprep.mubr.f32.mxu0 0.0
    %3739 = vmatmul.mubr.f32.gmra.mrb[0].mxu0 %v3578
    %v3740 = vpop.f32.mrb[0].mxu0
    %v3741 = vadd.f32 %v2658, %v3740
    %v3742 = vpop.f32.mrb[0].mxu0
    %3743 = vdwg.mxu0
    %3745 = vrot.lane.b32.xlu0 %v3673, 32
    %v3746 = vpop.permute.xlu0 %3745
    %v3747 = vsel %vm225, %v3746, 0
    %3749 = vmatprep.subr.mxu0 0.0
    %3750 = vmatpush1.msra.mxu0 %v141
    %3751 = vmatprep.subr.mxu0 0.0
    %3752 = vmatpush1.msra.mxu0 %v142
    %3753 = vmatprep.subr.mxu0 0.0
    %3754 = vmatpush1.msra.mxu0 %v143
    %3755 = vmatprep.subr.mxu0 0.0
    %3756 = vmatpush1.msra.mxu0 %v144
    %3757 = vmatprep.subr.mxu0 0.0
    %3758 = vmatpush1.msra.mxu0 0.0
    %3759 = vmatprep.subr.mxu0 0.0
    %3760 = vmatpush1.msra.mxu0 0.0
    %3761 = vmatprep.subr.mxu0 0.0
    %3762 = vmatpush1.msra.mxu0 0.0
    %3763 = vmatprep.subr.mxu0 0.0
    %3764 = vmatpush1.msra.mxu0 0.0
    %3765 = vmatprep.subr.mxu0 0.0
    %3766 = vmatpush1.msra.mxu0 0.0
    %3767 = vmatprep.subr.mxu0 0.0
    %3768 = vmatpush1.msra.mxu0 0.0
    %3769 = vmatprep.subr.mxu0 0.0
    %3770 = vmatpush1.msra.mxu0 0.0
    %3771 = vmatprep.subr.mxu0 0.0
    %3772 = vmatpush1.msra.mxu0 0.0
    %3773 = vmatprep.subr.mxu0 0.0
    %3774 = vmatpush1.msra.mxu0 0.0
    %3775 = vmatprep.subr.mxu0 0.0
    %3776 = vmatpush1.msra.mxu0 0.0
    %3777 = vmatprep.subr.mxu0 0.0
    %3778 = vmatpush1.msra.mxu0 0.0
    %3779 = vmatprep.subr.mxu0 0.0
    %3780 = vmatpush1.msra.mxu0 0.0
    %3781 = vmatprep.subr.mxu0 0.0
    %3782 = vmatpush1.msra.mxu0 0.0
    %3783 = vmatprep.subr.mxu0 0.0
    %3784 = vmatpush1.msra.mxu0 0.0
    %3785 = vmatprep.subr.mxu0 0.0
    %3786 = vmatpush1.msra.mxu0 0.0
    %3787 = vmatprep.subr.mxu0 0.0
    %3788 = vmatpush1.msra.mxu0 0.0
    %3789 = vmatprep.subr.mxu0 0.0
    %3790 = vmatpush1.msra.mxu0 0.0
    %3791 = vmatprep.subr.mxu0 0.0
    %3792 = vmatpush1.msra.mxu0 0.0
    %3793 = vmatprep.subr.mxu0 0.0
    %3794 = vmatpush1.msra.mxu0 0.0
    %3795 = vmatprep.subr.mxu0 0.0
    %3796 = vmatpush1.msra.mxu0 0.0
    %3797 = vmatprep.subr.mxu0 0.0
    %3798 = vmatpush1.msra.mxu0 0.0
    %3799 = vmatprep.subr.mxu0 0.0
    %3800 = vmatpush1.msra.mxu0 0.0
    %3801 = vmatprep.subr.mxu0 0.0
    %3802 = vmatpush1.msra.mxu0 0.0
    %3803 = vmatprep.subr.mxu0 0.0
    %3804 = vmatpush1.msra.mxu0 0.0
    %3805 = vmatprep.subr.mxu0 0.0
    %3806 = vmatpush1.msra.mxu0 0.0
    %3807 = vmatprep.subr.mxu0 0.0
    %3808 = vmatpush1.msra.mxu0 0.0
    %3809 = vmatprep.subr.mxu0 0.0
    %3810 = vmatpush1.msra.mxu0 0.0
    %3811 = vmatprep.subr.mxu0 0.0
    %3812 = vmatpush1.msra.mxu0 0.0
    %3813 = vmatprep.mubr.f32.mxu0 0.0
    %3814 = vmatmul.mubr.f32.gmra.mrb[0].mxu0 %v3747
    %v3815 = vpop.f32.mrb[0].mxu0
    %v3816 = vadd.f32 %v3741, %v3815
    %v3817 = vpop.f32.mrb[0].mxu0
    %3818 = vdwg.mxu0
    %v3819 = vxor.u32 %v3816, 2147483648
    %v3820 = vmul.f32 %v3819, 1.442695
    %v3821 = vpow.pop %v3820
    %v3822 = vadd.f32 %v3821, 1.0
    %v3823 = vrcp.pop %v3822
    %v3824 = vmul.f32 1.0, %v3823
    %v3825 = vtanh.pop %v3816
    %v3826 = vmul.f32 %v3824, %v3498
    %3828 = vrot.lane.b32.xlu0 %v3825, 64
    %v3829 = vpop.permute.xlu0 %3828
    %v3831 = vmul.f32 %v3824, %v3829
    %3833 = vrot.lane.b32.xlu0 %v3831, 32
    %v3834 = vpop.permute.xlu0 %3833
    %v3836 = vadd.f32 %v3826, %v3834
    %v3837 = vtanh.pop %v3836
    %3839 = vrot.lane.b32.xlu0 %v3837, 64
    %v3840 = vpop.permute.xlu0 %3839
    %v3842 = vmul.f32 %v3824, %v3840
    %3843 = vmatprep.subr.mxu0 0.0
    %3844 = vmatpush1.msra.mxu0 %v130
    %3845 = vmatprep.subr.mxu0 0.0
    %3846 = vmatpush1.msra.mxu0 %v131
    %3847 = vmatprep.subr.mxu0 0.0
    %3848 = vmatpush1.msra.mxu0 %v132
    %3849 = vmatprep.subr.mxu0 0.0
    %3850 = vmatpush1.msra.mxu0 %v133
    %3851 = vmatprep.subr.mxu0 0.0
    %3852 = vmatpush1.msra.mxu0 0.0
    %3853 = vmatprep.subr.mxu0 0.0
    %3854 = vmatpush1.msra.mxu0 0.0
    %3855 = vmatprep.subr.mxu0 0.0
    %3856 = vmatpush1.msra.mxu0 0.0
    %3857 = vmatprep.subr.mxu0 0.0
    %3858 = vmatpush1.msra.mxu0 0.0
    %3859 = vmatprep.subr.mxu0 0.0
    %3860 = vmatpush1.msra.mxu0 0.0
    %3861 = vmatprep.subr.mxu0 0.0
    %3862 = vmatpush1.msra.mxu0 0.0
    %3863 = vmatprep.subr.mxu0 0.0
    %3864 = vmatpush1.msra.mxu0 0.0
    %3865 = vmatprep.subr.mxu0 0.0
    %3866 = vmatpush1.msra.mxu0 0.0
    %3867 = vmatprep.subr.mxu0 0.0
    %3868 = vmatpush1.msra.mxu0 0.0
    %3869 = vmatprep.subr.mxu0 0.0
    %3870 = vmatpush1.msra.mxu0 0.0
    %3871 = vmatprep.subr.mxu0 0.0
    %3872 = vmatpush1.msra.mxu0 0.0
    %3873 = vmatprep.subr.mxu0 0.0
    %3874 = vmatpush1.msra.mxu0 0.0
    %3875 = vmatprep.subr.mxu0 0.0
    %3876 = vmatpush1.msra.mxu0 0.0
    %3877 = vmatprep.subr.mxu0 0.0
    %3878 = vmatpush1.msra.mxu0 0.0
    %3879 = vmatprep.subr.mxu0 0.0
    %3880 = vmatpush1.msra.mxu0 0.0
    %3881 = vmatprep.subr.mxu0 0.0
    %3882 = vmatpush1.msra.mxu0 0.0
    %3883 = vmatprep.subr.mxu0 0.0
    %3884 = vmatpush1.msra.mxu0 0.0
    %3885 = vmatprep.subr.mxu0 0.0
    %3886 = vmatpush1.msra.mxu0 0.0
    %3887 = vmatprep.subr.mxu0 0.0
    %3888 = vmatpush1.msra.mxu0 0.0
    %3889 = vmatprep.subr.mxu0 0.0
    %3890 = vmatpush1.msra.mxu0 0.0
    %3891 = vmatprep.subr.mxu0 0.0
    %3892 = vmatpush1.msra.mxu0 0.0
    %3893 = vmatprep.subr.mxu0 0.0
    %3894 = vmatpush1.msra.mxu0 0.0
    %3895 = vmatprep.subr.mxu0 0.0
    %3896 = vmatpush1.msra.mxu0 0.0
    %3897 = vmatprep.subr.mxu0 0.0
    %3898 = vmatpush1.msra.mxu0 0.0
    %3899 = vmatprep.subr.mxu0 0.0
    %3900 = vmatpush1.msra.mxu0 0.0
    %3901 = vmatprep.subr.mxu0 0.0
    %3902 = vmatpush1.msra.mxu0 0.0
    %3903 = vmatprep.subr.mxu0 0.0
    %3904 = vmatpush1.msra.mxu0 0.0
    %3905 = vmatprep.subr.mxu0 0.0
    %3906 = vmatpush1.msra.mxu0 0.0
    %3907 = vmatprep.mubr.f32.mxu0 0.0
    %3908 = vmatmul.mubr.f32.gmra.mrb[0].mxu0 %v3747
    %v3909 = vpop.f32.mrb[0].mxu0
    %v3910 = vadd.f32 %v2478, %v3909
    %v3911 = vpop.f32.mrb[0].mxu0
    %3912 = vdwg.mxu0
    %3914 = vrot.lane.b32.xlu0 %v3842, 32
    %v3915 = vpop.permute.xlu0 %3914
    %v3916 = vsel %vm225, %v3915, 0
    %3918 = vmatprep.subr.mxu0 0.0
    %3919 = vmatpush1.msra.mxu0 %v137
    %3920 = vmatprep.subr.mxu0 0.0
    %3921 = vmatpush1.msra.mxu0 %v138
    %3922 = vmatprep.subr.mxu0 0.0
    %3923 = vmatpush1.msra.mxu0 %v139
    %3924 = vmatprep.subr.mxu0 0.0
    %3925 = vmatpush1.msra.mxu0 %v140
    %3926 = vmatprep.subr.mxu0 0.0
    %3927 = vmatpush1.msra.mxu0 0.0
    %3928 = vmatprep.subr.mxu0 0.0
    %3929 = vmatpush1.msra.mxu0 0.0
    %3930 = vmatprep.subr.mxu0 0.0
    %3931 = vmatpush1.msra.mxu0 0.0
    %3932 = vmatprep.subr.mxu0 0.0
    %3933 = vmatpush1.msra.mxu0 0.0
    %3934 = vmatprep.subr.mxu0 0.0
    %3935 = vmatpush1.msra.mxu0 0.0
    %3936 = vmatprep.subr.mxu0 0.0
    %3937 = vmatpush1.msra.mxu0 0.0
    %3938 = vmatprep.subr.mxu0 0.0
    %3939 = vmatpush1.msra.mxu0 0.0
    %3940 = vmatprep.subr.mxu0 0.0
    %3941 = vmatpush1.msra.mxu0 0.0
    %3942 = vmatprep.subr.mxu0 0.0
    %3943 = vmatpush1.msra.mxu0 0.0
    %3944 = vmatprep.subr.mxu0 0.0
    %3945 = vmatpush1.msra.mxu0 0.0
    %3946 = vmatprep.subr.mxu0 0.0
    %3947 = vmatpush1.msra.mxu0 0.0
    %3948 = vmatprep.subr.mxu0 0.0
    %3949 = vmatpush1.msra.mxu0 0.0
    %3950 = vmatprep.subr.mxu0 0.0
    %3951 = vmatpush1.msra.mxu0 0.0
    %3952 = vmatprep.subr.mxu0 0.0
    %3953 = vmatpush1.msra.mxu0 0.0
    %3954 = vmatprep.subr.mxu0 0.0
    %3955 = vmatpush1.msra.mxu0 0.0
    %3956 = vmatprep.subr.mxu0 0.0
    %3957 = vmatpush1.msra.mxu0 0.0
    %3958 = vmatprep.subr.mxu0 0.0
    %3959 = vmatpush1.msra.mxu0 0.0
    %3960 = vmatprep.subr.mxu0 0.0
    %3961 = vmatpush1.msra.mxu0 0.0
    %3962 = vmatprep.subr.mxu0 0.0
    %3963 = vmatpush1.msra.mxu0 0.0
    %3964 = vmatprep.subr.mxu0 0.0
    %3965 = vmatpush1.msra.mxu0 0.0
    %3966 = vmatprep.subr.mxu0 0.0
    %3967 = vmatpush1.msra.mxu0 0.0
    %3968 = vmatprep.subr.mxu0 0.0
    %3969 = vmatpush1.msra.mxu0 0.0
    %3970 = vmatprep.subr.mxu0 0.0
    %3971 = vmatpush1.msra.mxu0 0.0
    %3972 = vmatprep.subr.mxu0 0.0
    %3973 = vmatpush1.msra.mxu0 0.0
    %3974 = vmatprep.subr.mxu0 0.0
    %3975 = vmatpush1.msra.mxu0 0.0
    %3976 = vmatprep.subr.mxu0 0.0
    %3977 = vmatpush1.msra.mxu0 0.0
    %3978 = vmatprep.subr.mxu0 0.0
    %3979 = vmatpush1.msra.mxu0 0.0
    %3980 = vmatprep.subr.mxu0 0.0
    %3981 = vmatpush1.msra.mxu0 0.0
    %3982 = vmatprep.mubr.f32.mxu0 0.0
    %3983 = vmatmul.mubr.f32.gmra.mrb[0].mxu0 %v3916
    %v3984 = vpop.f32.mrb[0].mxu0
    %v3985 = vadd.f32 %v3910, %v3984
    %v3986 = vpop.f32.mrb[0].mxu0
    %3987 = vdwg.mxu0
    %v3988 = vxor.u32 %v3985, 2147483648
    %v3989 = vmul.f32 %v3988, 1.442695
    %v3990 = vpow.pop %v3989
    %v3991 = vadd.f32 %v3990, 1.0
    %v3992 = vrcp.pop %v3991
    %v3993 = vmul.f32 1.0, %v3992
    %v3994 = vtanh.pop %v3985
    %v3995 = vmul.f32 %v3993, %v3667
    %3997 = vrot.lane.b32.xlu0 %v3994, 64
    %v3998 = vpop.permute.xlu0 %3997
    %v4000 = vmul.f32 %v3993, %v3998
    %4002 = vrot.lane.b32.xlu0 %v4000, 32
    %v4003 = vpop.permute.xlu0 %4002
    %v4005 = vadd.f32 %v3995, %v4003
    %v4006 = vtanh.pop %v4005
    %4008 = vrot.lane.b32.xlu0 %v4006, 64
    %v4009 = vpop.permute.xlu0 %4008
    %v4011 = vmul.f32 %v3993, %v4009
    %4012 = vmatprep.subr.mxu0 0.0
    %4013 = vmatpush1.msra.mxu0 %v125
    %4014 = vmatprep.subr.mxu0 0.0
    %4015 = vmatpush1.msra.mxu0 %v126
    %4016 = vmatprep.subr.mxu0 0.0
    %4017 = vmatpush1.msra.mxu0 %v127
    %4018 = vmatprep.subr.mxu0 0.0
    %4019 = vmatpush1.msra.mxu0 %v128
    %4020 = vmatprep.subr.mxu0 0.0
    %4021 = vmatpush1.msra.mxu0 0.0
    %4022 = vmatprep.subr.mxu0 0.0
    %4023 = vmatpush1.msra.mxu0 0.0
    %4024 = vmatprep.subr.mxu0 0.0
    %4025 = vmatpush1.msra.mxu0 0.0
    %4026 = vmatprep.subr.mxu0 0.0
    %4027 = vmatpush1.msra.mxu0 0.0
    %4028 = vmatprep.subr.mxu0 0.0
    %4029 = vmatpush1.msra.mxu0 0.0
    %4030 = vmatprep.subr.mxu0 0.0
    %4031 = vmatpush1.msra.mxu0 0.0
    %4032 = vmatprep.subr.mxu0 0.0
    %4033 = vmatpush1.msra.mxu0 0.0
    %4034 = vmatprep.subr.mxu0 0.0
    %4035 = vmatpush1.msra.mxu0 0.0
    %4036 = vmatprep.subr.mxu0 0.0
    %4037 = vmatpush1.msra.mxu0 0.0
    %4038 = vmatprep.subr.mxu0 0.0
    %4039 = vmatpush1.msra.mxu0 0.0
    %4040 = vmatprep.subr.mxu0 0.0
    %4041 = vmatpush1.msra.mxu0 0.0
    %4042 = vmatprep.subr.mxu0 0.0
    %4043 = vmatpush1.msra.mxu0 0.0
    %4044 = vmatprep.subr.mxu0 0.0
    %4045 = vmatpush1.msra.mxu0 0.0
    %4046 = vmatprep.subr.mxu0 0.0
    %4047 = vmatpush1.msra.mxu0 0.0
    %4048 = vmatprep.subr.mxu0 0.0
    %4049 = vmatpush1.msra.mxu0 0.0
    %4050 = vmatprep.subr.mxu0 0.0
    %4051 = vmatpush1.msra.mxu0 0.0
    %4052 = vmatprep.subr.mxu0 0.0
    %4053 = vmatpush1.msra.mxu0 0.0
    %4054 = vmatprep.subr.mxu0 0.0
    %4055 = vmatpush1.msra.mxu0 0.0
    %4056 = vmatprep.subr.mxu0 0.0
    %4057 = vmatpush1.msra.mxu0 0.0
    %4058 = vmatprep.subr.mxu0 0.0
    %4059 = vmatpush1.msra.mxu0 0.0
    %4060 = vmatprep.subr.mxu0 0.0
    %4061 = vmatpush1.msra.mxu0 0.0
    %4062 = vmatprep.subr.mxu0 0.0
    %4063 = vmatpush1.msra.mxu0 0.0
    %4064 = vmatprep.subr.mxu0 0.0
    %4065 = vmatpush1.msra.mxu0 0.0
    %4066 = vmatprep.subr.mxu0 0.0
    %4067 = vmatpush1.msra.mxu0 0.0
    %4068 = vmatprep.subr.mxu0 0.0
    %4069 = vmatpush1.msra.mxu0 0.0
    %4070 = vmatprep.subr.mxu0 0.0
    %4071 = vmatpush1.msra.mxu0 0.0
    %4072 = vmatprep.subr.mxu0 0.0
    %4073 = vmatpush1.msra.mxu0 0.0
    %4074 = vmatprep.subr.mxu0 0.0
    %4075 = vmatpush1.msra.mxu0 0.0
    %4076 = vmatprep.mubr.f32.mxu0 0.0
    %4077 = vmatmul.mubr.f32.gmra.mrb[0].mxu0 %v3916
    %v4078 = vpop.f32.mrb[0].mxu0
    %v4079 = vadd.f32 %v2658, %v4078
    %v4080 = vpop.f32.mrb[0].mxu0
    %4081 = vdwg.mxu0
    %4083 = vrot.lane.b32.xlu0 %v4011, 32
    %v4084 = vpop.permute.xlu0 %4083
    %v4085 = vsel %vm225, %v4084, 0
    %4087 = vmatprep.subr.mxu0 0.0
    %4088 = vmatpush1.msra.mxu0 %v141
    %4089 = vmatprep.subr.mxu0 0.0
    %4090 = vmatpush1.msra.mxu0 %v142
    %4091 = vmatprep.subr.mxu0 0.0
    %4092 = vmatpush1.msra.mxu0 %v143
    %4093 = vmatprep.subr.mxu0 0.0
    %4094 = vmatpush1.msra.mxu0 %v144
    %4095 = vmatprep.subr.mxu0 0.0
    %4096 = vmatpush1.msra.mxu0 0.0
    %4097 = vmatprep.subr.mxu0 0.0
    %4098 = vmatpush1.msra.mxu0 0.0
    %4099 = vmatprep.subr.mxu0 0.0
    %4100 = vmatpush1.msra.mxu0 0.0
    %4101 = vmatprep.subr.mxu0 0.0
    %4102 = vmatpush1.msra.mxu0 0.0
    %4103 = vmatprep.subr.mxu0 0.0
    %4104 = vmatpush1.msra.mxu0 0.0
    %4105 = vmatprep.subr.mxu0 0.0
    %4106 = vmatpush1.msra.mxu0 0.0
    %4107 = vmatprep.subr.mxu0 0.0
    %4108 = vmatpush1.msra.mxu0 0.0
    %4109 = vmatprep.subr.mxu0 0.0
    %4110 = vmatpush1.msra.mxu0 0.0
    %4111 = vmatprep.subr.mxu0 0.0
    %4112 = vmatpush1.msra.mxu0 0.0
    %4113 = vmatprep.subr.mxu0 0.0
    %4114 = vmatpush1.msra.mxu0 0.0
    %4115 = vmatprep.subr.mxu0 0.0
    %4116 = vmatpush1.msra.mxu0 0.0
    %4117 = vmatprep.subr.mxu0 0.0
    %4118 = vmatpush1.msra.mxu0 0.0
    %4119 = vmatprep.subr.mxu0 0.0
    %4120 = vmatpush1.msra.mxu0 0.0
    %4121 = vmatprep.subr.mxu0 0.0
    %4122 = vmatpush1.msra.mxu0 0.0
    %4123 = vmatprep.subr.mxu0 0.0
    %4124 = vmatpush1.msra.mxu0 0.0
    %4125 = vmatprep.subr.mxu0 0.0
    %4126 = vmatpush1.msra.mxu0 0.0
    %4127 = vmatprep.subr.mxu0 0.0
    %4128 = vmatpush1.msra.mxu0 0.0
    %4129 = vmatprep.subr.mxu0 0.0
    %4130 = vmatpush1.msra.mxu0 0.0
    %4131 = vmatprep.subr.mxu0 0.0
    %4132 = vmatpush1.msra.mxu0 0.0
    %4133 = vmatprep.subr.mxu0 0.0
    %4134 = vmatpush1.msra.mxu0 0.0
    %4135 = vmatprep.subr.mxu0 0.0
    %4136 = vmatpush1.msra.mxu0 0.0
    %4137 = vmatprep.subr.mxu0 0.0
    %4138 = vmatpush1.msra.mxu0 0.0
    %4139 = vmatprep.subr.mxu0 0.0
    %4140 = vmatpush1.msra.mxu0 0.0
    %4141 = vmatprep.subr.mxu0 0.0
    %4142 = vmatpush1.msra.mxu0 0.0
    %4143 = vmatprep.subr.mxu0 0.0
    %4144 = vmatpush1.msra.mxu0 0.0
    %4145 = vmatprep.subr.mxu0 0.0
    %4146 = vmatpush1.msra.mxu0 0.0
    %4147 = vmatprep.subr.mxu0 0.0
    %4148 = vmatpush1.msra.mxu0 0.0
    %4149 = vmatprep.subr.mxu0 0.0
    %4150 = vmatpush1.msra.mxu0 0.0
    %4151 = vmatprep.mubr.f32.mxu0 0.0
    %4152 = vmatmul.mubr.f32.gmra.mrb[0].mxu0 %v4085
    %v4153 = vpop.f32.mrb[0].mxu0
    %v4154 = vadd.f32 %v4079, %v4153
    %v4155 = vpop.f32.mrb[0].mxu0
    %4156 = vdwg.mxu0
    %v4157 = vxor.u32 %v4154, 2147483648
    %v4158 = vmul.f32 %v4157, 1.442695
    %v4159 = vpow.pop %v4158
    %v4160 = vadd.f32 %v4159, 1.0
    %v4161 = vrcp.pop %v4160
    %v4162 = vmul.f32 1.0, %v4161
    %v4163 = vtanh.pop %v4154
    %v4164 = vmul.f32 %v4162, %v3836
    %4166 = vrot.lane.b32.xlu0 %v4163, 64
    %v4167 = vpop.permute.xlu0 %4166
    %v4169 = vmul.f32 %v4162, %v4167
    %4171 = vrot.lane.b32.xlu0 %v4169, 32
    %v4172 = vpop.permute.xlu0 %4171
    %v4174 = vadd.f32 %v4164, %v4172
    %v4175 = vtanh.pop %v4174
    %4177 = vrot.lane.b32.xlu0 %v4175, 64
    %v4178 = vpop.permute.xlu0 %4177
    %v4180 = vmul.f32 %v4162, %v4178
    %4181 = vmatprep.subr.mxu0 0.0
    %4182 = vmatpush1.msra.mxu0 %v130
    %4183 = vmatprep.subr.mxu0 0.0
    %4184 = vmatpush1.msra.mxu0 %v131
    %4185 = vmatprep.subr.mxu0 0.0
    %4186 = vmatpush1.msra.mxu0 %v132
    %4187 = vmatprep.subr.mxu0 0.0
    %4188 = vmatpush1.msra.mxu0 %v133
    %4189 = vmatprep.subr.mxu0 0.0
    %4190 = vmatpush1.msra.mxu0 0.0
    %4191 = vmatprep.subr.mxu0 0.0
    %4192 = vmatpush1.msra.mxu0 0.0
    %4193 = vmatprep.subr.mxu0 0.0
    %4194 = vmatpush1.msra.mxu0 0.0
    %4195 = vmatprep.subr.mxu0 0.0
    %4196 = vmatpush1.msra.mxu0 0.0
    %4197 = vmatprep.subr.mxu0 0.0
    %4198 = vmatpush1.msra.mxu0 0.0
    %4199 = vmatprep.subr.mxu0 0.0
    %4200 = vmatpush1.msra.mxu0 0.0
    %4201 = vmatprep.subr.mxu0 0.0
    %4202 = vmatpush1.msra.mxu0 0.0
    %4203 = vmatprep.subr.mxu0 0.0
    %4204 = vmatpush1.msra.mxu0 0.0
    %4205 = vmatprep.subr.mxu0 0.0
    %4206 = vmatpush1.msra.mxu0 0.0
    %4207 = vmatprep.subr.mxu0 0.0
    %4208 = vmatpush1.msra.mxu0 0.0
    %4209 = vmatprep.subr.mxu0 0.0
    %4210 = vmatpush1.msra.mxu0 0.0
    %4211 = vmatprep.subr.mxu0 0.0
    %4212 = vmatpush1.msra.mxu0 0.0
    %4213 = vmatprep.subr.mxu0 0.0
    %4214 = vmatpush1.msra.mxu0 0.0
    %4215 = vmatprep.subr.mxu0 0.0
    %4216 = vmatpush1.msra.mxu0 0.0
    %4217 = vmatprep.subr.mxu0 0.0
    %4218 = vmatpush1.msra.mxu0 0.0
    %4219 = vmatprep.subr.mxu0 0.0
    %4220 = vmatpush1.msra.mxu0 0.0
    %4221 = vmatprep.subr.mxu0 0.0
    %4222 = vmatpush1.msra.mxu0 0.0
    %4223 = vmatprep.subr.mxu0 0.0
    %4224 = vmatpush1.msra.mxu0 0.0
    %4225 = vmatprep.subr.mxu0 0.0
    %4226 = vmatpush1.msra.mxu0 0.0
    %4227 = vmatprep.subr.mxu0 0.0
    %4228 = vmatpush1.msra.mxu0 0.0
    %4229 = vmatprep.subr.mxu0 0.0
    %4230 = vmatpush1.msra.mxu0 0.0
    %4231 = vmatprep.subr.mxu0 0.0
    %4232 = vmatpush1.msra.mxu0 0.0
    %4233 = vmatprep.subr.mxu0 0.0
    %4234 = vmatpush1.msra.mxu0 0.0
    %4235 = vmatprep.subr.mxu0 0.0
    %4236 = vmatpush1.msra.mxu0 0.0
    %4237 = vmatprep.subr.mxu0 0.0
    %4238 = vmatpush1.msra.mxu0 0.0
    %4239 = vmatprep.subr.mxu0 0.0
    %4240 = vmatpush1.msra.mxu0 0.0
    %4241 = vmatprep.subr.mxu0 0.0
    %4242 = vmatpush1.msra.mxu0 0.0
    %4243 = vmatprep.subr.mxu0 0.0
    %4244 = vmatpush1.msra.mxu0 0.0
    %4245 = vmatprep.mubr.f32.mxu0 0.0
    %4246 = vmatmul.mubr.f32.gmra.mrb[0].mxu0 %v4085
    %v4247 = vpop.f32.mrb[0].mxu0
    %v4248 = vadd.f32 %v2478, %v4247
    %v4249 = vpop.f32.mrb[0].mxu0
    %4250 = vdwg.mxu0
    %4252 = vrot.lane.b32.xlu0 %v4180, 32
    %v4253 = vpop.permute.xlu0 %4252
    %v4254 = vsel %vm225, %v4253, 0
    %4256 = vmatprep.subr.mxu0 0.0
    %4257 = vmatpush1.msra.mxu0 %v137
    %4258 = vmatprep.subr.mxu0 0.0
    %4259 = vmatpush1.msra.mxu0 %v138
    %4260 = vmatprep.subr.mxu0 0.0
    %4261 = vmatpush1.msra.mxu0 %v139
    %4262 = vmatprep.subr.mxu0 0.0
    %4263 = vmatpush1.msra.mxu0 %v140
    %4264 = vmatprep.subr.mxu0 0.0
    %4265 = vmatpush1.msra.mxu0 0.0
    %4266 = vmatprep.subr.mxu0 0.0
    %4267 = vmatpush1.msra.mxu0 0.0
    %4268 = vmatprep.subr.mxu0 0.0
    %4269 = vmatpush1.msra.mxu0 0.0
    %4270 = vmatprep.subr.mxu0 0.0
    %4271 = vmatpush1.msra.mxu0 0.0
    %4272 = vmatprep.subr.mxu0 0.0
    %4273 = vmatpush1.msra.mxu0 0.0
    %4274 = vmatprep.subr.mxu0 0.0
    %4275 = vmatpush1.msra.mxu0 0.0
    %4276 = vmatprep.subr.mxu0 0.0
    %4277 = vmatpush1.msra.mxu0 0.0
    %4278 = vmatprep.subr.mxu0 0.0
    %4279 = vmatpush1.msra.mxu0 0.0
    %4280 = vmatprep.subr.mxu0 0.0
    %4281 = vmatpush1.msra.mxu0 0.0
    %4282 = vmatprep.subr.mxu0 0.0
    %4283 = vmatpush1.msra.mxu0 0.0
    %4284 = vmatprep.subr.mxu0 0.0
    %4285 = vmatpush1.msra.mxu0 0.0
    %4286 = vmatprep.subr.mxu0 0.0
    %4287 = vmatpush1.msra.mxu0 0.0
    %4288 = vmatprep.subr.mxu0 0.0
    %4289 = vmatpush1.msra.mxu0 0.0
    %4290 = vmatprep.subr.mxu0 0.0
    %4291 = vmatpush1.msra.mxu0 0.0
    %4292 = vmatprep.subr.mxu0 0.0
    %4293 = vmatpush1.msra.mxu0 0.0
    %4294 = vmatprep.subr.mxu0 0.0
    %4295 = vmatpush1.msra.mxu0 0.0
    %4296 = vmatprep.subr.mxu0 0.0
    %4297 = vmatpush1.msra.mxu0 0.0
    %4298 = vmatprep.subr.mxu0 0.0
    %4299 = vmatpush1.msra.mxu0 0.0
    %4300 = vmatprep.subr.mxu0 0.0
    %4301 = vmatpush1.msra.mxu0 0.0
    %4302 = vmatprep.subr.mxu0 0.0
    %4303 = vmatpush1.msra.mxu0 0.0
    %4304 = vmatprep.subr.mxu0 0.0
    %4305 = vmatpush1.msra.mxu0 0.0
    %4306 = vmatprep.subr.mxu0 0.0
    %4307 = vmatpush1.msra.mxu0 0.0
    %4308 = vmatprep.subr.mxu0 0.0
    %4309 = vmatpush1.msra.mxu0 0.0
    %4310 = vmatprep.subr.mxu0 0.0
    %4311 = vmatpush1.msra.mxu0 0.0
    %4312 = vmatprep.subr.mxu0 0.0
    %4313 = vmatpush1.msra.mxu0 0.0
    %4314 = vmatprep.subr.mxu0 0.0
    %4315 = vmatpush1.msra.mxu0 0.0
    %4316 = vmatprep.subr.mxu0 0.0
    %4317 = vmatpush1.msra.mxu0 0.0
    %4318 = vmatprep.subr.mxu0 0.0
    %4319 = vmatpush1.msra.mxu0 0.0
    %4320 = vmatprep.mubr.f32.mxu0 0.0
    %4321 = vmatmul.mubr.f32.gmra.mrb[0].mxu0 %v4254
    %v4322 = vpop.f32.mrb[0].mxu0
    %v4323 = vadd.f32 %v4248, %v4322
    %v4324 = vpop.f32.mrb[0].mxu0
    %4325 = vdwg.mxu0
    %v4326 = vxor.u32 %v4323, 2147483648
    %v4327 = vmul.f32 %v4326, 1.442695
    %v4328 = vpow.pop %v4327
    %v4329 = vadd.f32 %v4328, 1.0
    %v4330 = vrcp.pop %v4329
    %v4331 = vmul.f32 1.0, %v4330
    %v4332 = vtanh.pop %v4323
    %v4333 = vmul.f32 %v4331, %v4005
    %4335 = vrot.lane.b32.xlu0 %v4332, 64
    %v4336 = vpop.permute.xlu0 %4335
    %v4338 = vmul.f32 %v4331, %v4336
    %4340 = vrot.lane.b32.xlu0 %v4338, 32
    %v4341 = vpop.permute.xlu0 %4340
    %v4343 = vadd.f32 %v4333, %v4341
    %v4344 = vtanh.pop %v4343
    %4346 = vrot.lane.b32.xlu0 %v4344, 64
    %v4347 = vpop.permute.xlu0 %4346
    %v4349 = vmul.f32 %v4331, %v4347
    %4350 = vmatprep.subr.mxu0 0.0
    %4351 = vmatpush1.msra.mxu0 %v125
    %4352 = vmatprep.subr.mxu0 0.0
    %4353 = vmatpush1.msra.mxu0 %v126
    %4354 = vmatprep.subr.mxu0 0.0
    %4355 = vmatpush1.msra.mxu0 %v127
    %4356 = vmatprep.subr.mxu0 0.0
    %4357 = vmatpush1.msra.mxu0 %v128
    %4358 = vmatprep.subr.mxu0 0.0
    %4359 = vmatpush1.msra.mxu0 0.0
    %4360 = vmatprep.subr.mxu0 0.0
    %4361 = vmatpush1.msra.mxu0 0.0
    %4362 = vmatprep.subr.mxu0 0.0
    %4363 = vmatpush1.msra.mxu0 0.0
    %4364 = vmatprep.subr.mxu0 0.0
    %4365 = vmatpush1.msra.mxu0 0.0
    %4366 = vmatprep.subr.mxu0 0.0
    %4367 = vmatpush1.msra.mxu0 0.0
    %4368 = vmatprep.subr.mxu0 0.0
    %4369 = vmatpush1.msra.mxu0 0.0
    %4370 = vmatprep.subr.mxu0 0.0
    %4371 = vmatpush1.msra.mxu0 0.0
    %4372 = vmatprep.subr.mxu0 0.0
    %4373 = vmatpush1.msra.mxu0 0.0
    %4374 = vmatprep.subr.mxu0 0.0
    %4375 = vmatpush1.msra.mxu0 0.0
    %4376 = vmatprep.subr.mxu0 0.0
    %4377 = vmatpush1.msra.mxu0 0.0
    %4378 = vmatprep.subr.mxu0 0.0
    %4379 = vmatpush1.msra.mxu0 0.0
    %4380 = vmatprep.subr.mxu0 0.0
    %4381 = vmatpush1.msra.mxu0 0.0
    %4382 = vmatprep.subr.mxu0 0.0
    %4383 = vmatpush1.msra.mxu0 0.0
    %4384 = vmatprep.subr.mxu0 0.0
    %4385 = vmatpush1.msra.mxu0 0.0
    %4386 = vmatprep.subr.mxu0 0.0
    %4387 = vmatpush1.msra.mxu0 0.0
    %4388 = vmatprep.subr.mxu0 0.0
    %4389 = vmatpush1.msra.mxu0 0.0
    %4390 = vmatprep.subr.mxu0 0.0
    %4391 = vmatpush1.msra.mxu0 0.0
    %4392 = vmatprep.subr.mxu0 0.0
    %4393 = vmatpush1.msra.mxu0 0.0
    %4394 = vmatprep.subr.mxu0 0.0
    %4395 = vmatpush1.msra.mxu0 0.0
    %4396 = vmatprep.subr.mxu0 0.0
    %4397 = vmatpush1.msra.mxu0 0.0
    %4398 = vmatprep.subr.mxu0 0.0
    %4399 = vmatpush1.msra.mxu0 0.0
    %4400 = vmatprep.subr.mxu0 0.0
    %4401 = vmatpush1.msra.mxu0 0.0
    %4402 = vmatprep.subr.mxu0 0.0
    %4403 = vmatpush1.msra.mxu0 0.0
    %4404 = vmatprep.subr.mxu0 0.0
    %4405 = vmatpush1.msra.mxu0 0.0
    %4406 = vmatprep.subr.mxu0 0.0
    %4407 = vmatpush1.msra.mxu0 0.0
    %4408 = vmatprep.subr.mxu0 0.0
    %4409 = vmatpush1.msra.mxu0 0.0
    %4410 = vmatprep.subr.mxu0 0.0
    %4411 = vmatpush1.msra.mxu0 0.0
    %4412 = vmatprep.subr.mxu0 0.0
    %4413 = vmatpush1.msra.mxu0 0.0
    %4414 = vmatprep.mubr.f32.mxu0 0.0
    %4415 = vmatmul.mubr.f32.gmra.mrb[0].mxu0 %v4254
    %v4416 = vpop.f32.mrb[0].mxu0
    %v4417 = vadd.f32 %v2658, %v4416
    %v4418 = vpop.f32.mrb[0].mxu0
    %4419 = vdwg.mxu0
    %4421 = vrot.lane.b32.xlu0 %v4349, 32
    %v4422 = vpop.permute.xlu0 %4421
    %v4423 = vsel %vm225, %v4422, 0
    %4425 = vmatprep.subr.mxu0 0.0
    %4426 = vmatpush1.msra.mxu0 %v141
    %4427 = vmatprep.subr.mxu0 0.0
    %4428 = vmatpush1.msra.mxu0 %v142
    %4429 = vmatprep.subr.mxu0 0.0
    %4430 = vmatpush1.msra.mxu0 %v143
    %4431 = vmatprep.subr.mxu0 0.0
    %4432 = vmatpush1.msra.mxu0 %v144
    %4433 = vmatprep.subr.mxu0 0.0
    %4434 = vmatpush1.msra.mxu0 0.0
    %4435 = vmatprep.subr.mxu0 0.0
    %4436 = vmatpush1.msra.mxu0 0.0
    %4437 = vmatprep.subr.mxu0 0.0
    %4438 = vmatpush1.msra.mxu0 0.0
    %4439 = vmatprep.subr.mxu0 0.0
    %4440 = vmatpush1.msra.mxu0 0.0
    %4441 = vmatprep.subr.mxu0 0.0
    %4442 = vmatpush1.msra.mxu0 0.0
    %4443 = vmatprep.subr.mxu0 0.0
    %4444 = vmatpush1.msra.mxu0 0.0
    %4445 = vmatprep.subr.mxu0 0.0
    %4446 = vmatpush1.msra.mxu0 0.0
    %4447 = vmatprep.subr.mxu0 0.0
    %4448 = vmatpush1.msra.mxu0 0.0
    %4449 = vmatprep.subr.mxu0 0.0
    %4450 = vmatpush1.msra.mxu0 0.0
    %4451 = vmatprep.subr.mxu0 0.0
    %4452 = vmatpush1.msra.mxu0 0.0
    %4453 = vmatprep.subr.mxu0 0.0
    %4454 = vmatpush1.msra.mxu0 0.0
    %4455 = vmatprep.subr.mxu0 0.0
    %4456 = vmatpush1.msra.mxu0 0.0
    %4457 = vmatprep.subr.mxu0 0.0
    %4458 = vmatpush1.msra.mxu0 0.0
    %4459 = vmatprep.subr.mxu0 0.0
    %4460 = vmatpush1.msra.mxu0 0.0
    %4461 = vmatprep.subr.mxu0 0.0
    %4462 = vmatpush1.msra.mxu0 0.0
    %4463 = vmatprep.subr.mxu0 0.0
    %4464 = vmatpush1.msra.mxu0 0.0
    %4465 = vmatprep.subr.mxu0 0.0
    %4466 = vmatpush1.msra.mxu0 0.0
    %4467 = vmatprep.subr.mxu0 0.0
    %4468 = vmatpush1.msra.mxu0 0.0
    %4469 = vmatprep.subr.mxu0 0.0
    %4470 = vmatpush1.msra.mxu0 0.0
    %4471 = vmatprep.subr.mxu0 0.0
    %4472 = vmatpush1.msra.mxu0 0.0
    %4473 = vmatprep.subr.mxu0 0.0
    %4474 = vmatpush1.msra.mxu0 0.0
    %4475 = vmatprep.subr.mxu0 0.0
    %4476 = vmatpush1.msra.mxu0 0.0
    %4477 = vmatprep.subr.mxu0 0.0
    %4478 = vmatpush1.msra.mxu0 0.0
    %4479 = vmatprep.subr.mxu0 0.0
    %4480 = vmatpush1.msra.mxu0 0.0
    %4481 = vmatprep.subr.mxu0 0.0
    %4482 = vmatpush1.msra.mxu0 0.0
    %4483 = vmatprep.subr.mxu0 0.0
    %4484 = vmatpush1.msra.mxu0 0.0
    %4485 = vmatprep.subr.mxu0 0.0
    %4486 = vmatpush1.msra.mxu0 0.0
    %4487 = vmatprep.subr.mxu0 0.0
    %4488 = vmatpush1.msra.mxu0 0.0
    %4489 = vmatprep.mubr.f32.mxu0 0.0
    %4490 = vmatmul.mubr.f32.gmra.mrb[0].mxu0 %v4423
    %v4491 = vpop.f32.mrb[0].mxu0
    %v4492 = vadd.f32 %v4417, %v4491
    %v4493 = vpop.f32.mrb[0].mxu0
    %4494 = vdwg.mxu0
    %v4495 = vxor.u32 %v4492, 2147483648
    %v4496 = vmul.f32 %v4495, 1.442695
    %v4497 = vpow.pop %v4496
    %v4498 = vadd.f32 %v4497, 1.0
    %v4499 = vrcp.pop %v4498
    %v4500 = vmul.f32 1.0, %v4499
    %v4501 = vtanh.pop %v4492
    %v4502 = vmul.f32 %v4500, %v4174
    %4504 = vrot.lane.b32.xlu0 %v4501, 64
    %v4505 = vpop.permute.xlu0 %4504
    %v4507 = vmul.f32 %v4500, %v4505
    %4509 = vrot.lane.b32.xlu0 %v4507, 32
    %v4510 = vpop.permute.xlu0 %4509
    %v4512 = vadd.f32 %v4502, %v4510
    %v4513 = vtanh.pop %v4512
    %4515 = vrot.lane.b32.xlu0 %v4513, 64
    %v4516 = vpop.permute.xlu0 %4515
    %v4518 = vmul.f32 %v4500, %v4516
    %4519 = vmatprep.subr.mxu0 0.0
    %4520 = vmatpush1.msra.mxu0 %v130
    %4521 = vmatprep.subr.mxu0 0.0
    %4522 = vmatpush1.msra.mxu0 %v131
    %4523 = vmatprep.subr.mxu0 0.0
    %4524 = vmatpush1.msra.mxu0 %v132
    %4525 = vmatprep.subr.mxu0 0.0
    %4526 = vmatpush1.msra.mxu0 %v133
    %4527 = vmatprep.subr.mxu0 0.0
    %4528 = vmatpush1.msra.mxu0 0.0
    %4529 = vmatprep.subr.mxu0 0.0
    %4530 = vmatpush1.msra.mxu0 0.0
    %4531 = vmatprep.subr.mxu0 0.0
    %4532 = vmatpush1.msra.mxu0 0.0
    %4533 = vmatprep.subr.mxu0 0.0
    %4534 = vmatpush1.msra.mxu0 0.0
    %4535 = vmatprep.subr.mxu0 0.0
    %4536 = vmatpush1.msra.mxu0 0.0
    %4537 = vmatprep.subr.mxu0 0.0
    %4538 = vmatpush1.msra.mxu0 0.0
    %4539 = vmatprep.subr.mxu0 0.0
    %4540 = vmatpush1.msra.mxu0 0.0
    %4541 = vmatprep.subr.mxu0 0.0
    %4542 = vmatpush1.msra.mxu0 0.0
    %4543 = vmatprep.subr.mxu0 0.0
    %4544 = vmatpush1.msra.mxu0 0.0
    %4545 = vmatprep.subr.mxu0 0.0
    %4546 = vmatpush1.msra.mxu0 0.0
    %4547 = vmatprep.subr.mxu0 0.0
    %4548 = vmatpush1.msra.mxu0 0.0
    %4549 = vmatprep.subr.mxu0 0.0
    %4550 = vmatpush1.msra.mxu0 0.0
    %4551 = vmatprep.subr.mxu0 0.0
    %4552 = vmatpush1.msra.mxu0 0.0
    %4553 = vmatprep.subr.mxu0 0.0
    %4554 = vmatpush1.msra.mxu0 0.0
    %4555 = vmatprep.subr.mxu0 0.0
    %4556 = vmatpush1.msra.mxu0 0.0
    %4557 = vmatprep.subr.mxu0 0.0
    %4558 = vmatpush1.msra.mxu0 0.0
    %4559 = vmatprep.subr.mxu0 0.0
    %4560 = vmatpush1.msra.mxu0 0.0
    %4561 = vmatprep.subr.mxu0 0.0
    %4562 = vmatpush1.msra.mxu0 0.0
    %4563 = vmatprep.subr.mxu0 0.0
    %4564 = vmatpush1.msra.mxu0 0.0
    %4565 = vmatprep.subr.mxu0 0.0
    %4566 = vmatpush1.msra.mxu0 0.0
    %4567 = vmatprep.subr.mxu0 0.0
    %4568 = vmatpush1.msra.mxu0 0.0
    %4569 = vmatprep.subr.mxu0 0.0
    %4570 = vmatpush1.msra.mxu0 0.0
    %4571 = vmatprep.subr.mxu0 0.0
    %4572 = vmatpush1.msra.mxu0 0.0
    %4573 = vmatprep.subr.mxu0 0.0
    %4574 = vmatpush1.msra.mxu0 0.0
    %4575 = vmatprep.subr.mxu0 0.0
    %4576 = vmatpush1.msra.mxu0 0.0
    %4577 = vmatprep.subr.mxu0 0.0
    %4578 = vmatpush1.msra.mxu0 0.0
    %4579 = vmatprep.subr.mxu0 0.0
    %4580 = vmatpush1.msra.mxu0 0.0
    %4581 = vmatprep.subr.mxu0 0.0
    %4582 = vmatpush1.msra.mxu0 0.0
    %4583 = vmatprep.mubr.f32.mxu0 0.0
    %4584 = vmatmul.mubr.f32.gmra.mrb[0].mxu0 %v4423
    %v4585 = vpop.f32.mrb[0].mxu0
    %v4586 = vadd.f32 %v2478, %v4585
    %v4587 = vpop.f32.mrb[0].mxu0
    %4588 = vdwg.mxu0
    %4590 = vrot.lane.b32.xlu0 %v4518, 32
    %v4591 = vpop.permute.xlu0 %4590
    %v4592 = vsel %vm225, %v4591, 0
    %4594 = vmatprep.subr.mxu0 0.0
    %4595 = vmatpush1.msra.mxu0 %v137
    %4596 = vmatprep.subr.mxu0 0.0
    %4597 = vmatpush1.msra.mxu0 %v138
    %4598 = vmatprep.subr.mxu0 0.0
    %4599 = vmatpush1.msra.mxu0 %v139
    %4600 = vmatprep.subr.mxu0 0.0
    %4601 = vmatpush1.msra.mxu0 %v140
    %4602 = vmatprep.subr.mxu0 0.0
    %4603 = vmatpush1.msra.mxu0 0.0
    %4604 = vmatprep.subr.mxu0 0.0
    %4605 = vmatpush1.msra.mxu0 0.0
    %4606 = vmatprep.subr.mxu0 0.0
    %4607 = vmatpush1.msra.mxu0 0.0
    %4608 = vmatprep.subr.mxu0 0.0
    %4609 = vmatpush1.msra.mxu0 0.0
    %4610 = vmatprep.subr.mxu0 0.0
    %4611 = vmatpush1.msra.mxu0 0.0
    %4612 = vmatprep.subr.mxu0 0.0
    %4613 = vmatpush1.msra.mxu0 0.0
    %4614 = vmatprep.subr.mxu0 0.0
    %4615 = vmatpush1.msra.mxu0 0.0
    %4616 = vmatprep.subr.mxu0 0.0
    %4617 = vmatpush1.msra.mxu0 0.0
    %4618 = vmatprep.subr.mxu0 0.0
    %4619 = vmatpush1.msra.mxu0 0.0
    %4620 = vmatprep.subr.mxu0 0.0
    %4621 = vmatpush1.msra.mxu0 0.0
    %4622 = vmatprep.subr.mxu0 0.0
    %4623 = vmatpush1.msra.mxu0 0.0
    %4624 = vmatprep.subr.mxu0 0.0
    %4625 = vmatpush1.msra.mxu0 0.0
    %4626 = vmatprep.subr.mxu0 0.0
    %4627 = vmatpush1.msra.mxu0 0.0
    %4628 = vmatprep.subr.mxu0 0.0
    %4629 = vmatpush1.msra.mxu0 0.0
    %4630 = vmatprep.subr.mxu0 0.0
    %4631 = vmatpush1.msra.mxu0 0.0
    %4632 = vmatprep.subr.mxu0 0.0
    %4633 = vmatpush1.msra.mxu0 0.0
    %4634 = vmatprep.subr.mxu0 0.0
    %4635 = vmatpush1.msra.mxu0 0.0
    %4636 = vmatprep.subr.mxu0 0.0
    %4637 = vmatpush1.msra.mxu0 0.0
    %4638 = vmatprep.subr.mxu0 0.0
    %4639 = vmatpush1.msra.mxu0 0.0
    %4640 = vmatprep.subr.mxu0 0.0
    %4641 = vmatpush1.msra.mxu0 0.0
    %4642 = vmatprep.subr.mxu0 0.0
    %4643 = vmatpush1.msra.mxu0 0.0
    %4644 = vmatprep.subr.mxu0 0.0
    %4645 = vmatpush1.msra.mxu0 0.0
    %4646 = vmatprep.subr.mxu0 0.0
    %4647 = vmatpush1.msra.mxu0 0.0
    %4648 = vmatprep.subr.mxu0 0.0
    %4649 = vmatpush1.msra.mxu0 0.0
    %4650 = vmatprep.subr.mxu0 0.0
    %4651 = vmatpush1.msra.mxu0 0.0
    %4652 = vmatprep.subr.mxu0 0.0
    %4653 = vmatpush1.msra.mxu0 0.0
    %4654 = vmatprep.subr.mxu0 0.0
    %4655 = vmatpush1.msra.mxu0 0.0
    %4656 = vmatprep.subr.mxu0 0.0
    %4657 = vmatpush1.msra.mxu0 0.0
    %4658 = vmatprep.mubr.f32.mxu0 0.0
    %4659 = vmatmul.mubr.f32.gmra.mrb[0].mxu0 %v4592
    %v4660 = vpop.f32.mrb[0].mxu0
    %v4661 = vadd.f32 %v4586, %v4660
    %v4662 = vpop.f32.mrb[0].mxu0
    %4663 = vdwg.mxu0
    %v4664 = vxor.u32 %v4661, 2147483648
    %v4665 = vmul.f32 %v4664, 1.442695
    %v4666 = vpow.pop %v4665
    %v4667 = vadd.f32 %v4666, 1.0
    %v4668 = vrcp.pop %v4667
    %v4669 = vmul.f32 1.0, %v4668
    %v4670 = vtanh.pop %v4661
    %v4671 = vmul.f32 %v4669, %v4343
    %4673 = vrot.lane.b32.xlu0 %v4670, 64
    %v4674 = vpop.permute.xlu0 %4673
    %v4676 = vmul.f32 %v4669, %v4674
    %4678 = vrot.lane.b32.xlu0 %v4676, 32
    %v4679 = vpop.permute.xlu0 %4678
    %v4681 = vadd.f32 %v4671, %v4679
    %v4682 = vtanh.pop %v4681
    %4684 = vrot.lane.b32.xlu0 %v4682, 64
    %v4685 = vpop.permute.xlu0 %4684
    %v4687 = vmul.f32 %v4669, %v4685
    %4688 = vmatprep.subr.mxu0 0.0
    %4689 = vmatpush1.msra.mxu0 %v125
    %4690 = vmatprep.subr.mxu0 0.0
    %4691 = vmatpush1.msra.mxu0 %v126
    %4692 = vmatprep.subr.mxu0 0.0
    %4693 = vmatpush1.msra.mxu0 %v127
    %4694 = vmatprep.subr.mxu0 0.0
    %4695 = vmatpush1.msra.mxu0 %v128
    %4696 = vmatprep.subr.mxu0 0.0
    %4697 = vmatpush1.msra.mxu0 0.0
    %4698 = vmatprep.subr.mxu0 0.0
    %4699 = vmatpush1.msra.mxu0 0.0
    %4700 = vmatprep.subr.mxu0 0.0
    %4701 = vmatpush1.msra.mxu0 0.0
    %4702 = vmatprep.subr.mxu0 0.0
    %4703 = vmatpush1.msra.mxu0 0.0
    %4704 = vmatprep.subr.mxu0 0.0
    %4705 = vmatpush1.msra.mxu0 0.0
    %4706 = vmatprep.subr.mxu0 0.0
    %4707 = vmatpush1.msra.mxu0 0.0
    %4708 = vmatprep.subr.mxu0 0.0
    %4709 = vmatpush1.msra.mxu0 0.0
    %4710 = vmatprep.subr.mxu0 0.0
    %4711 = vmatpush1.msra.mxu0 0.0
    %4712 = vmatprep.subr.mxu0 0.0
    %4713 = vmatpush1.msra.mxu0 0.0
    %4714 = vmatprep.subr.mxu0 0.0
    %4715 = vmatpush1.msra.mxu0 0.0
    %4716 = vmatprep.subr.mxu0 0.0
    %4717 = vmatpush1.msra.mxu0 0.0
    %4718 = vmatprep.subr.mxu0 0.0
    %4719 = vmatpush1.msra.mxu0 0.0
    %4720 = vmatprep.subr.mxu0 0.0
    %4721 = vmatpush1.msra.mxu0 0.0
    %4722 = vmatprep.subr.mxu0 0.0
    %4723 = vmatpush1.msra.mxu0 0.0
    %4724 = vmatprep.subr.mxu0 0.0
    %4725 = vmatpush1.msra.mxu0 0.0
    %4726 = vmatprep.subr.mxu0 0.0
    %4727 = vmatpush1.msra.mxu0 0.0
    %4728 = vmatprep.subr.mxu0 0.0
    %4729 = vmatpush1.msra.mxu0 0.0
    %4730 = vmatprep.subr.mxu0 0.0
    %4731 = vmatpush1.msra.mxu0 0.0
    %4732 = vmatprep.subr.mxu0 0.0
    %4733 = vmatpush1.msra.mxu0 0.0
    %4734 = vmatprep.subr.mxu0 0.0
    %4735 = vmatpush1.msra.mxu0 0.0
    %4736 = vmatprep.subr.mxu0 0.0
    %4737 = vmatpush1.msra.mxu0 0.0
    %4738 = vmatprep.subr.mxu0 0.0
    %4739 = vmatpush1.msra.mxu0 0.0
    %4740 = vmatprep.subr.mxu0 0.0
    %4741 = vmatpush1.msra.mxu0 0.0
    %4742 = vmatprep.subr.mxu0 0.0
    %4743 = vmatpush1.msra.mxu0 0.0
    %4744 = vmatprep.subr.mxu0 0.0
    %4745 = vmatpush1.msra.mxu0 0.0
    %4746 = vmatprep.subr.mxu0 0.0
    %4747 = vmatpush1.msra.mxu0 0.0
    %4748 = vmatprep.subr.mxu0 0.0
    %4749 = vmatpush1.msra.mxu0 0.0
    %4750 = vmatprep.subr.mxu0 0.0
    %4751 = vmatpush1.msra.mxu0 0.0
    %4752 = vmatprep.mubr.f32.mxu0 0.0
    %4753 = vmatmul.mubr.f32.gmra.mrb[0].mxu0 %v4592
    %v4754 = vpop.f32.mrb[0].mxu0
    %v4755 = vadd.f32 %v2658, %v4754
    %v4756 = vpop.f32.mrb[0].mxu0
    %4757 = vdwg.mxu0
    %4759 = vrot.lane.b32.xlu0 %v4687, 32
    %v4760 = vpop.permute.xlu0 %4759
    %v4761 = vsel %vm225, %v4760, 0
    %4763 = vmatprep.subr.mxu0 0.0
    %4764 = vmatpush1.msra.mxu0 %v141
    %4765 = vmatprep.subr.mxu0 0.0
    %4766 = vmatpush1.msra.mxu0 %v142
    %4767 = vmatprep.subr.mxu0 0.0
    %4768 = vmatpush1.msra.mxu0 %v143
    %4769 = vmatprep.subr.mxu0 0.0
    %4770 = vmatpush1.msra.mxu0 %v144
    %4771 = vmatprep.subr.mxu0 0.0
    %4772 = vmatpush1.msra.mxu0 0.0
    %4773 = vmatprep.subr.mxu0 0.0
    %4774 = vmatpush1.msra.mxu0 0.0
    %4775 = vmatprep.subr.mxu0 0.0
    %4776 = vmatpush1.msra.mxu0 0.0
    %4777 = vmatprep.subr.mxu0 0.0
    %4778 = vmatpush1.msra.mxu0 0.0
    %4779 = vmatprep.subr.mxu0 0.0
    %4780 = vmatpush1.msra.mxu0 0.0
    %4781 = vmatprep.subr.mxu0 0.0
    %4782 = vmatpush1.msra.mxu0 0.0
    %4783 = vmatprep.subr.mxu0 0.0
    %4784 = vmatpush1.msra.mxu0 0.0
    %4785 = vmatprep.subr.mxu0 0.0
    %4786 = vmatpush1.msra.mxu0 0.0
    %4787 = vmatprep.subr.mxu0 0.0
    %4788 = vmatpush1.msra.mxu0 0.0
    %4789 = vmatprep.subr.mxu0 0.0
    %4790 = vmatpush1.msra.mxu0 0.0
    %4791 = vmatprep.subr.mxu0 0.0
    %4792 = vmatpush1.msra.mxu0 0.0
    %4793 = vmatprep.subr.mxu0 0.0
    %4794 = vmatpush1.msra.mxu0 0.0
    %4795 = vmatprep.subr.mxu0 0.0
    %4796 = vmatpush1.msra.mxu0 0.0
    %4797 = vmatprep.subr.mxu0 0.0
    %4798 = vmatpush1.msra.mxu0 0.0
    %4799 = vmatprep.subr.mxu0 0.0
    %4800 = vmatpush1.msra.mxu0 0.0
    %4801 = vmatprep.subr.mxu0 0.0
    %4802 = vmatpush1.msra.mxu0 0.0
    %4803 = vmatprep.subr.mxu0 0.0
    %4804 = vmatpush1.msra.mxu0 0.0
    %4805 = vmatprep.subr.mxu0 0.0
    %4806 = vmatpush1.msra.mxu0 0.0
    %4807 = vmatprep.subr.mxu0 0.0
    %4808 = vmatpush1.msra.mxu0 0.0
    %4809 = vmatprep.subr.mxu0 0.0
    %4810 = vmatpush1.msra.mxu0 0.0
    %4811 = vmatprep.subr.mxu0 0.0
    %4812 = vmatpush1.msra.mxu0 0.0
    %4813 = vmatprep.subr.mxu0 0.0
    %4814 = vmatpush1.msra.mxu0 0.0
    %4815 = vmatprep.subr.mxu0 0.0
    %4816 = vmatpush1.msra.mxu0 0.0
    %4817 = vmatprep.subr.mxu0 0.0
    %4818 = vmatpush1.msra.mxu0 0.0
    %4819 = vmatprep.subr.mxu0 0.0
    %4820 = vmatpush1.msra.mxu0 0.0
    %4821 = vmatprep.subr.mxu0 0.0
    %4822 = vmatpush1.msra.mxu0 0.0
    %4823 = vmatprep.subr.mxu0 0.0
    %4824 = vmatpush1.msra.mxu0 0.0
    %4825 = vmatprep.subr.mxu0 0.0
    %4826 = vmatpush1.msra.mxu0 0.0
    %4827 = vmatprep.mubr.f32.mxu0 0.0
    %4828 = vmatmul.mubr.f32.gmra.mrb[0].mxu0 %v4761
    %v4829 = vpop.f32.mrb[0].mxu0
    %v4830 = vadd.f32 %v4755, %v4829
    %v4831 = vpop.f32.mrb[0].mxu0
    %4832 = vdwg.mxu0
    %v4833 = vxor.u32 %v4830, 2147483648
    %v4834 = vmul.f32 %v4833, 1.442695
    %v4835 = vpow.pop %v4834
    %v4836 = vadd.f32 %v4835, 1.0
    %v4837 = vrcp.pop %v4836
    %v4838 = vmul.f32 1.0, %v4837
    %v4839 = vtanh.pop %v4830
    %v4840 = vmul.f32 %v4838, %v4512
    %4842 = vrot.lane.b32.xlu0 %v4839, 64
    %v4843 = vpop.permute.xlu0 %4842
    %v4845 = vmul.f32 %v4838, %v4843
    %4847 = vrot.lane.b32.xlu0 %v4845, 32
    %v4848 = vpop.permute.xlu0 %4847
    %v4850 = vadd.f32 %v4840, %v4848
    %v4851 = vtanh.pop %v4850
    %4853 = vrot.lane.b32.xlu0 %v4851, 64
    %v4854 = vpop.permute.xlu0 %4853
    %v4856 = vmul.f32 %v4838, %v4854
    %4857 = vmatprep.subr.mxu0 0.0
    %4858 = vmatpush1.msra.mxu0 %v130
    %4859 = vmatprep.subr.mxu0 0.0
    %4860 = vmatpush1.msra.mxu0 %v131
    %4861 = vmatprep.subr.mxu0 0.0
    %4862 = vmatpush1.msra.mxu0 %v132
    %4863 = vmatprep.subr.mxu0 0.0
    %4864 = vmatpush1.msra.mxu0 %v133
    %4865 = vmatprep.subr.mxu0 0.0
    %4866 = vmatpush1.msra.mxu0 0.0
    %4867 = vmatprep.subr.mxu0 0.0
    %4868 = vmatpush1.msra.mxu0 0.0
    %4869 = vmatprep.subr.mxu0 0.0
    %4870 = vmatpush1.msra.mxu0 0.0
    %4871 = vmatprep.subr.mxu0 0.0
    %4872 = vmatpush1.msra.mxu0 0.0
    %4873 = vmatprep.subr.mxu0 0.0
    %4874 = vmatpush1.msra.mxu0 0.0
    %4875 = vmatprep.subr.mxu0 0.0
    %4876 = vmatpush1.msra.mxu0 0.0
    %4877 = vmatprep.subr.mxu0 0.0
    %4878 = vmatpush1.msra.mxu0 0.0
    %4879 = vmatprep.subr.mxu0 0.0
    %4880 = vmatpush1.msra.mxu0 0.0
    %4881 = vmatprep.subr.mxu0 0.0
    %4882 = vmatpush1.msra.mxu0 0.0
    %4883 = vmatprep.subr.mxu0 0.0
    %4884 = vmatpush1.msra.mxu0 0.0
    %4885 = vmatprep.subr.mxu0 0.0
    %4886 = vmatpush1.msra.mxu0 0.0
    %4887 = vmatprep.subr.mxu0 0.0
    %4888 = vmatpush1.msra.mxu0 0.0
    %4889 = vmatprep.subr.mxu0 0.0
    %4890 = vmatpush1.msra.mxu0 0.0
    %4891 = vmatprep.subr.mxu0 0.0
    %4892 = vmatpush1.msra.mxu0 0.0
    %4893 = vmatprep.subr.mxu0 0.0
    %4894 = vmatpush1.msra.mxu0 0.0
    %4895 = vmatprep.subr.mxu0 0.0
    %4896 = vmatpush1.msra.mxu0 0.0
    %4897 = vmatprep.subr.mxu0 0.0
    %4898 = vmatpush1.msra.mxu0 0.0
    %4899 = vmatprep.subr.mxu0 0.0
    %4900 = vmatpush1.msra.mxu0 0.0
    %4901 = vmatprep.subr.mxu0 0.0
    %4902 = vmatpush1.msra.mxu0 0.0
    %4903 = vmatprep.subr.mxu0 0.0
    %4904 = vmatpush1.msra.mxu0 0.0
    %4905 = vmatprep.subr.mxu0 0.0
    %4906 = vmatpush1.msra.mxu0 0.0
    %4907 = vmatprep.subr.mxu0 0.0
    %4908 = vmatpush1.msra.mxu0 0.0
    %4909 = vmatprep.subr.mxu0 0.0
    %4910 = vmatpush1.msra.mxu0 0.0
    %4911 = vmatprep.subr.mxu0 0.0
    %4912 = vmatpush1.msra.mxu0 0.0
    %4913 = vmatprep.subr.mxu0 0.0
    %4914 = vmatpush1.msra.mxu0 0.0
    %4915 = vmatprep.subr.mxu0 0.0
    %4916 = vmatpush1.msra.mxu0 0.0
    %4917 = vmatprep.subr.mxu0 0.0
    %4918 = vmatpush1.msra.mxu0 0.0
    %4919 = vmatprep.subr.mxu0 0.0
    %4920 = vmatpush1.msra.mxu0 0.0
    %4921 = vmatprep.mubr.f32.mxu0 0.0
    %4922 = vmatmul.mubr.f32.gmra.mrb[0].mxu0 %v4761
    %v4923 = vpop.f32.mrb[0].mxu0
    %v4924 = vadd.f32 %v2478, %v4923
    %v4925 = vpop.f32.mrb[0].mxu0
    %4926 = vdwg.mxu0
    %4928 = vrot.lane.b32.xlu0 %v4856, 32
    %v4929 = vpop.permute.xlu0 %4928
    %v4930 = vsel %vm225, %v4929, 0
    %4932 = vmatprep.subr.mxu0 0.0
    %4933 = vmatpush1.msra.mxu0 %v137
    %4934 = vmatprep.subr.mxu0 0.0
    %4935 = vmatpush1.msra.mxu0 %v138
    %4936 = vmatprep.subr.mxu0 0.0
    %4937 = vmatpush1.msra.mxu0 %v139
    %4938 = vmatprep.subr.mxu0 0.0
    %4939 = vmatpush1.msra.mxu0 %v140
    %4940 = vmatprep.subr.mxu0 0.0
    %4941 = vmatpush1.msra.mxu0 0.0
    %4942 = vmatprep.subr.mxu0 0.0
    %4943 = vmatpush1.msra.mxu0 0.0
    %4944 = vmatprep.subr.mxu0 0.0
    %4945 = vmatpush1.msra.mxu0 0.0
    %4946 = vmatprep.subr.mxu0 0.0
    %4947 = vmatpush1.msra.mxu0 0.0
    %4948 = vmatprep.subr.mxu0 0.0
    %4949 = vmatpush1.msra.mxu0 0.0
    %4950 = vmatprep.subr.mxu0 0.0
    %4951 = vmatpush1.msra.mxu0 0.0
    %4952 = vmatprep.subr.mxu0 0.0
    %4953 = vmatpush1.msra.mxu0 0.0
    %4954 = vmatprep.subr.mxu0 0.0
    %4955 = vmatpush1.msra.mxu0 0.0
    %4956 = vmatprep.subr.mxu0 0.0
    %4957 = vmatpush1.msra.mxu0 0.0
    %4958 = vmatprep.subr.mxu0 0.0
    %4959 = vmatpush1.msra.mxu0 0.0
    %4960 = vmatprep.subr.mxu0 0.0
    %4961 = vmatpush1.msra.mxu0 0.0
    %4962 = vmatprep.subr.mxu0 0.0
    %4963 = vmatpush1.msra.mxu0 0.0
    %4964 = vmatprep.subr.mxu0 0.0
    %4965 = vmatpush1.msra.mxu0 0.0
    %4966 = vmatprep.subr.mxu0 0.0
    %4967 = vmatpush1.msra.mxu0 0.0
    %4968 = vmatprep.subr.mxu0 0.0
    %4969 = vmatpush1.msra.mxu0 0.0
    %4970 = vmatprep.subr.mxu0 0.0
    %4971 = vmatpush1.msra.mxu0 0.0
    %4972 = vmatprep.subr.mxu0 0.0
    %4973 = vmatpush1.msra.mxu0 0.0
    %4974 = vmatprep.subr.mxu0 0.0
    %4975 = vmatpush1.msra.mxu0 0.0
    %4976 = vmatprep.subr.mxu0 0.0
    %4977 = vmatpush1.msra.mxu0 0.0
    %4978 = vmatprep.subr.mxu0 0.0
    %4979 = vmatpush1.msra.mxu0 0.0
    %4980 = vmatprep.subr.mxu0 0.0
    %4981 = vmatpush1.msra.mxu0 0.0
    %4982 = vmatprep.subr.mxu0 0.0
    %4983 = vmatpush1.msra.mxu0 0.0
    %4984 = vmatprep.subr.mxu0 0.0
    %4985 = vmatpush1.msra.mxu0 0.0
    %4986 = vmatprep.subr.mxu0 0.0
    %4987 = vmatpush1.msra.mxu0 0.0
    %4988 = vmatprep.subr.mxu0 0.0
    %4989 = vmatpush1.msra.mxu0 0.0
    %4990 = vmatprep.subr.mxu0 0.0
    %4991 = vmatpush1.msra.mxu0 0.0
    %4992 = vmatprep.subr.mxu0 0.0
    %4993 = vmatpush1.msra.mxu0 0.0
    %4994 = vmatprep.subr.mxu0 0.0
    %4995 = vmatpush1.msra.mxu0 0.0
    %4996 = vmatprep.mubr.f32.mxu0 0.0
    %4997 = vmatmul.mubr.f32.gmra.mrb[0].mxu0 %v4930
    %v4998 = vpop.f32.mrb[0].mxu0
    %v4999 = vadd.f32 %v4924, %v4998
    %v5000 = vpop.f32.mrb[0].mxu0
    %5001 = vdwg.mxu0
    %v5002 = vxor.u32 %v4999, 2147483648
    %v5003 = vmul.f32 %v5002, 1.442695
    %v5004 = vpow.pop %v5003
    %v5005 = vadd.f32 %v5004, 1.0
    %v5006 = vrcp.pop %v5005
    %v5007 = vmul.f32 1.0, %v5006
    %v5008 = vtanh.pop %v4999
    %v5009 = vmul.f32 %v5007, %v4681
    %5011 = vrot.lane.b32.xlu0 %v5008, 64
    %v5012 = vpop.permute.xlu0 %5011
    %v5014 = vmul.f32 %v5007, %v5012
    %5016 = vrot.lane.b32.xlu0 %v5014, 32
    %v5017 = vpop.permute.xlu0 %5016
    %v5019 = vadd.f32 %v5009, %v5017
    %v5020 = vtanh.pop %v5019
    %5022 = vrot.lane.b32.xlu0 %v5020, 64
    %v5023 = vpop.permute.xlu0 %5022
    %v5025 = vmul.f32 %v5007, %v5023
    %v5027 = vlaneseq
    %v5028 = vshrl.u32 %v5027, 7
    %v5029 = vsub.s32 0, %v5028
    %v5030 = vrot.slane %v146, %v5029
    %5031 = vrot.lane.b32.xlu0 %v5030, 96
    %v5032 = vpop.permute.xlu0 %5031
    %v5034 = vmul.f32 %v2653, %v5032
    %v5035 = vmul.f32 %v2997, %v5032
    %v5036 = vmul.f32 %v3335, %v5032
    %v5037 = vmul.f32 %v3673, %v5032
    %v5038 = vmul.f32 %v4011, %v5032
    %v5039 = vmul.f32 %v4349, %v5032
    %v5040 = vmul.f32 %v4687, %v5032
    %v5041 = vmul.f32 %v5025, %v5032
    %5050 = vrot.lane.b32.xlu0 %v5034, 32
    %v5051 = vpop.permute.xlu0 %5050
    %5052 = vrot.lane.b32.xlu0 %v5035, 32
    %v5053 = vpop.permute.xlu0 %5052
    %5054 = vrot.lane.b32.xlu0 %v5036, 32
    %v5055 = vpop.permute.xlu0 %5054
    %5056 = vrot.lane.b32.xlu0 %v5037, 32
    %v5057 = vpop.permute.xlu0 %5056
    %5058 = vrot.lane.b32.xlu0 %v5038, 32
    %v5059 = vpop.permute.xlu0 %5058
    %5060 = vrot.lane.b32.xlu0 %v5039, 32
    %v5061 = vpop.permute.xlu0 %5060
    %5062 = vrot.lane.b32.xlu0 %v5040, 32
    %v5063 = vpop.permute.xlu0 %5062
    %5064 = vrot.lane.b32.xlu0 %v5041, 32
    %v5065 = vpop.permute.xlu0 %5064
    %vm5074 = vcmask 254976
    %v5075 = vsel %vm5074, %v5051, 0.0
    %5076 = vadd.xlane.f32.xlu0 %v5075
    %v5077 = vpop.xlane.xlu0 %5076
    %v5078 = vsel %vm5074, %v5053, 0.0
    %5079 = vadd.xlane.f32.xlu0 %v5078
    %v5080 = vpop.xlane.xlu0 %5079
    %v5081 = vsel %vm5074, %v5055, 0.0
    %5082 = vadd.xlane.f32.xlu0 %v5081
    %v5083 = vpop.xlane.xlu0 %5082
    %v5084 = vsel %vm5074, %v5057, 0.0
    %5085 = vadd.xlane.f32.xlu0 %v5084
    %v5086 = vpop.xlane.xlu0 %5085
    %v5087 = vsel %vm5074, %v5059, 0.0
    %5088 = vadd.xlane.f32.xlu0 %v5087
    %v5089 = vpop.xlane.xlu0 %5088
    %v5090 = vsel %vm5074, %v5061, 0.0
    %5091 = vadd.xlane.f32.xlu0 %v5090
    %v5092 = vpop.xlane.xlu0 %5091
    %v5093 = vsel %vm5074, %v5063, 0.0
    %5094 = vadd.xlane.f32.xlu0 %v5093
    %v5095 = vpop.xlane.xlu0 %5094
    %v5096 = vsel %vm5074, %v5065, 0.0
    %5097 = vadd.xlane.f32.xlu0 %v5096
    %v5098 = vpop.xlane.xlu0 %5097
    %v5100 = vlaneseq
    %v5101 = vshrl.u32 %v5100, 7
    %v5102 = vsub.s32 0, %v5101
    %v5103 = vrot.slane %v147, %v5102
    %5104 = vset.pattern.permute.xlu0 0
    %5105 = vperm.xlu0 %5104, %v5103
    %v5106 = vpop.permute.xlu0 %5105
    %v5108 = vadd.f32 %v5077, %v5106
    %v5109 = vadd.f32 %v5080, %v5106
    %v5110 = vadd.f32 %v5083, %v5106
    %v5111 = vadd.f32 %v5086, %v5106
    %v5112 = vadd.f32 %v5089, %v5106
    %v5113 = vadd.f32 %v5092, %v5106
    %v5114 = vadd.f32 %v5095, %v5106
    %v5115 = vadd.f32 %v5098, %v5106
    %v5124 = vlaneseq
    %v5125 = vand.u32 %v5124, 127
    %v5126 = vlaneseq
    %v5127 = vshrl.u32 %v5126, 7
    %v5128 = vsub.s32 %v5125, %v5127
    %v5129 = vrot.slane %v5108, %v5128
    %v5130 = vlaneseq
    %v5131 = vshrl.u32 %v5130, 7
    %v5132 = vsub.s32 %v5125, %v5131
    %v5133 = vrot.slane %v5109, %v5132
    %v5134 = vlaneseq
    %v5135 = vshrl.u32 %v5134, 7
    %v5136 = vsub.s32 %v5125, %v5135
    %v5137 = vrot.slane %v5110, %v5136
    %v5138 = vlaneseq
    %v5139 = vshrl.u32 %v5138, 7
    %v5140 = vsub.s32 %v5125, %v5139
    %v5141 = vrot.slane %v5111, %v5140
    %v5142 = vlaneseq
    %v5143 = vshrl.u32 %v5142, 7
    %v5144 = vsub.s32 %v5125, %v5143
    %v5145 = vrot.slane %v5112, %v5144
    %v5146 = vlaneseq
    %v5147 = vshrl.u32 %v5146, 7
    %v5148 = vsub.s32 %v5125, %v5147
    %v5149 = vrot.slane %v5113, %v5148
    %v5150 = vlaneseq
    %v5151 = vshrl.u32 %v5150, 7
    %v5152 = vsub.s32 %v5125, %v5151
    %v5153 = vrot.slane %v5114, %v5152
    %v5154 = vlaneseq
    %v5155 = vshrl.u32 %v5154, 7
    %v5156 = vsub.s32 %v5125, %v5155
    %v5157 = vrot.slane %v5115, %v5156
    %vm5158 = vcmask 1041409
    %v5159 = vsel %vm5158, %v5133, %v5129
    %vm5160 = vcmask 1042434
    %v5161 = vsel %vm5160, %v5137, %v5159
    %vm5162 = vcmask 1043459
    %v5163 = vsel %vm5162, %v5141, %v5161
    %vm5164 = vcmask 1044484
    %v5165 = vsel %vm5164, %v5145, %v5163
    %vm5166 = vcmask 1045509
    %v5167 = vsel %vm5166, %v5149, %v5165
    %vm5168 = vcmask 1046534
    %v5169 = vsel %vm5168, %v5153, %v5167
    %vm5170 = vcmask 1047559
    %v5171 = vsel %vm5170, %v5157, %v5169
    %vm5173 = vcmask 15360
    %5174 = vst.msk [vmem:[%s12] sm:$0xff] %vm5173, %v5171
    // Predicated region
    $region70: #{_seq2seq_device.1} parent=1 // pred_check
      _
    $region71: #{_seq2seq_device.1} parent=1 // pred_check_branch
      %5176 = sbr.rel (0) target = $region73
    $region72: #{_seq2seq_device.1} parent=1 // pred_region
      _
    $region73: #{_seq2seq_device.1} parent=1 // pred_fallthru
      _
    // Predicated region
    $region74: #{_seq2seq_device.1} parent=1 // pred_check
      _
    $region75: #{_seq2seq_device.1} parent=1 // pred_check_branch
      %5178 = sbr.rel (0) target = $region77
    $region76: #{_seq2seq_device.1} parent=1 // pred_region
      _
    $region77: #{_seq2seq_device.1} parent=1 // pred_fallthru
      _
    %5179 = vsyncpa [#allocation4], 1
    %5180 = vsyncpa [#allocation6], 1
    %5181 = vsyncpa [#allocation9], 1

</llo_original>
